<compile_context>
chip_gen: v7x
topology: tpu7x:2x2x1
jax: 0.10.0
libtpu: 0.0.40
codegen_flags: <defaults>
</compile_context>

<pallas_src>
import jax
import jax.numpy as jnp
from jax.experimental import pallas as pl
from jax.experimental.pallas import tpu as pltpu


def multvae_kernel(
    x_ref,
    w_e1_ref, b_e1_ref,
    w_e2_ref, b_e2_ref,
    w_ml_ref, b_ml_ref,      # fused [mu | logvar] projection
    w_d1_ref, b_d1_ref,      # w_d1 zero-padded to [2*latent, hidden]
    w_d2_ref, b_d2_ref,
    w_it_ref, b_it_ref,
    items_ref, mulv_ref,
):
    x = x_ref[...]  # [TB, item_dim] float32

    def mm(a_f32, w_ref, b_ref):
        # bf16 MXU operands, f32 accumulation, f32 bias add.
        return (
            jnp.dot(a_f32.astype(jnp.bfloat16), w_ref[...],
                    preferred_element_type=jnp.float32)
            + b_ref[...]
        )

    # ---------------- encoder (Dropout == identity in eval) ----------------
    h = jnp.tanh(mm(x, w_e1_ref, b_e1_ref))
    h = jnp.tanh(mm(h, w_e2_ref, b_e2_ref))

    # fused mu|logvar projection -> single lane-dense [TB, 2*latent] store
    mulv = mm(h, w_ml_ref, b_ml_ref)
    mulv_ref[...] = mulv

    # -------- reparameterize (eval: z = mu) + decoder --------
    # w_d1's rows for the logvar half are zero, so feeding the full lane-dense
    # mulv is mathematically identical to mu @ w_d1 and avoids a 64-of-128-lane
    # slice relayout / K=64 MXU operand.
    d = jnp.tanh(mm(mulv, w_d1_ref, b_d1_ref))
    d = jnp.tanh(mm(d, w_d2_ref, b_d2_ref))
    logits = jnp.tanh(mm(d, w_it_ref, b_it_ref))

    # Softmax over the item dim (torch dim=2 after flattening the size-1 middle dim).
    # logits = tanh(...) is in [-1, 1], so exp() is safe without max-subtraction
    # (removes an XLU row-max reduce + full-tile subtract over [TB, item_dim]).
    e = jnp.exp(logits)
    denom = jnp.sum(e, axis=-1, keepdims=True)                                 # [TB, 1]
    nnz = jnp.sum((x != 0.0).astype(jnp.float32), axis=-1, keepdims=True)      # [TB, 1]
    # count_nonzero scale folded into one EUP approx-reciprocal multiply.
    # Note: each items row sums to nnz only to ~1e-3 relative (approx reciprocal).
    items_ref[...] = e * (nnz * pl.reciprocal(denom, approx=True))


def multvae_forward(x, kernel_params, *, tb=None):
    """x: [B, 1, item_dim] float32. Returns (items, mu, logvar) with torch shapes."""
    B, S, item_dim = x.shape
    assert S == 1, "torch expand() in the module requires the middle dim to be 1"
    x2 = x.reshape(B, item_dim)

    (w_e1, b_e1, w_e2, b_e2, w_ml, b_ml,
     w_d1, b_d1, w_d2, b_d2, w_it, b_it) = kernel_params

    hidden_dim = w_e1.shape[1]
    latent2 = w_ml.shape[1]          # 2 * latent_dim
    latent_dim = latent2 // 2

    if tb is None:
        tb = min(128, B)             # MXU row count -> full-row MXU tiles
    # lane/sublane density requirements for this fully-resident variant
    assert tb % 8 == 0 and B % tb == 0
    assert item_dim % 128 == 0 and hidden_dim % 128 == 0 and latent2 % 128 == 0
    # TODO(synk): pad item_dim/hidden/2*latent to the next multiple of 128 (and mask
    #             padded logits) when real deployment dims are not 128-multiples.

    grid = (B // tb,)

    weight_arrays = [w_e1, b_e1, w_e2, b_e2, w_ml, b_ml,
                     w_d1, b_d1, w_d2, b_d2, w_it, b_it]

    x_spec = pl.BlockSpec((tb, item_dim), lambda i: (i, 0))
    out_shapes = (
        jax.ShapeDtypeStruct((B, item_dim), jnp.float32),   # items
        jax.ShapeDtypeStruct((B, latent2), jnp.float32),    # [mu | logvar]
    )
    out_specs = (
        pl.BlockSpec((tb, item_dim), lambda i: (i, 0)),
        pl.BlockSpec((tb, latent2), lambda i: (i, 0)),
    )

    # ---- VMEM budget: single-buffered weights + double-buffered I/O tiles +
    #      activation scratch + small headroom, capped at physical VMEM. ----
    def nbytes(a):
        return a.size * a.dtype.itemsize
    weight_bytes = sum(nbytes(a) for a in weight_arrays)                 # x1 (single buffer)
    io_tile_bytes = 4 * tb * (2 * item_dim + latent2)                    # x + items + mulv (f32)
    act_bytes = 4 * tb * (2 * item_dim + 4 * hidden_dim + latent2)       # logits/e + h/d + mulv
    budget = weight_bytes + 2 * io_tile_bytes + act_bytes + (4 << 20)
    try:
        vmem_cap = int(getattr(pltpu.get_tpu_info(), "vmem_capacity_bytes", 64 << 20))
    except Exception:
        vmem_cap = 64 << 20                                              # v7x-safe fallback
    # floor at 32 MiB for compiler internal scratch; never exceed physical - 4 MiB
    vmem_limit = int(min(max(budget, 32 << 20), vmem_cap - (4 << 20)))

    flops = 2 * B * (item_dim * hidden_dim + hidden_dim * hidden_dim
                     + hidden_dim * latent2 + latent2 * hidden_dim
                     + hidden_dim * hidden_dim + hidden_dim * item_dim)
    transcendentals = B * (4 * hidden_dim + 2 * item_dim)
    bytes_accessed = weight_bytes + nbytes(x2) + 4 * (B * item_dim + B * latent2)

    def make_call(single_buffer_weights):
        def resident_spec(shape):
            nd = len(shape)
            idx = lambda i, _nd=nd: (0,) * _nd          # same block every step -> stays resident
            if single_buffer_weights:
                return pl.BlockSpec(shape, idx,
                                    pipeline_mode=pl.Buffered(buffer_count=1))
            return pl.BlockSpec(shape, idx)

        in_specs = [x_spec] + [resident_spec(a.shape) for a in weight_arrays]
        return pl.pallas_call(
            multvae_kernel,
            out_shape=out_shapes,
            grid_spec=pltpu.PrefetchScalarGridSpec(
                num_scalar_prefetch=0,
                grid=grid,
                in_specs=in_specs,
                out_specs=out_specs,
            ),
            compiler_params=pltpu.CompilerParams(
                dimension_semantics=("parallel",),      # batch axis -> megacore on v7x
                vmem_limit_bytes=vmem_limit,
            ),
            cost_estimate=pl.CostEstimate(
                flops=int(flops),
                transcendentals=int(transcendentals),
                bytes_accessed=int(bytes_accessed),
            ),
        )

    try:
        items2, mulv2 = make_call(True)(x2, *weight_arrays)
    except Exception:
        # Older jax without pipeline_mode / Buffered(1): fall back to default
        # double-buffered resident weights (correctness identical).
        items2, mulv2 = make_call(False)(x2, *weight_arrays)

    mu2 = mulv2[:, :latent_dim]
    lv2 = mulv2[:, latent_dim:]

    # restore torch shapes: items [B, 1, item_dim], mu/logvar [B, 1, latent_dim]
    return (
        items2.reshape(B, 1, item_dim),
        mu2.reshape(B, 1, latent_dim),
        lv2.reshape(B, 1, latent_dim),
    )


def init_params(key, item_dim, hidden_dim, latent_dim):
    """nn.Linear-style init. Weights (in, out); biases (1, out)."""
    def linear(k, fan_in, fan_out):
        kw, kb = jax.random.split(k)
        bound = 1.0 / jnp.sqrt(fan_in)
        w = jax.random.uniform(kw, (fan_in, fan_out), jnp.float32, -bound, bound)
        b = jax.random.uniform(kb, (1, fan_out), jnp.float32, -bound, bound)
        return w, b

    keys = jax.random.split(key, 7)
    w_e1, b_e1 = linear(keys[0], item_dim, hidden_dim)     # linear_enc_1
    w_e2, b_e2 = linear(keys[1], hidden_dim, hidden_dim)   # hidden_enc_1
    w_mu, b_mu = linear(keys[2], hidden_dim, latent_dim)   # mu
    w_lv, b_lv = linear(keys[3], hidden_dim, latent_dim)   # logvar
    w_d1, b_d1 = linear(keys[4], latent_dim, hidden_dim)   # linear_dec_1
    w_d2, b_d2 = linear(keys[5], hidden_dim, hidden_dim)   # hidden_dec_1
    w_it, b_it = linear(keys[6], hidden_dim, item_dim)     # item_layer
    return (w_e1, b_e1, w_e2, b_e2, w_mu, b_mu, w_lv, b_lv,
            w_d1, b_d1, w_d2, b_d2, w_it, b_it)


def prepare_kernel_params(params):
    """Fuse mu|logvar projection, zero-pad w_d1 to [2*latent, hidden], cast weights to bf16."""
    (w_e1, b_e1, w_e2, b_e2, w_mu, b_mu, w_lv, b_lv,
     w_d1, b_d1, w_d2, b_d2, w_it, b_it) = params
    w_ml = jnp.concatenate([w_mu, w_lv], axis=1)
    b_ml = jnp.concatenate([b_mu, b_lv], axis=1)
    # zero rows for the logvar half -> full lane-dense mulv can feed the decoder
    w_d1p = jnp.concatenate([w_d1, jnp.zeros_like(w_d1)], axis=0)
    bf = lambda w: w.astype(jnp.bfloat16)
    return (bf(w_e1), b_e1, bf(w_e2), b_e2, bf(w_ml), b_ml,
            bf(w_d1p), b_d1, bf(w_d2), b_d2, bf(w_it), b_it)


def reference_forward(x2, kernel_params):
    """Pure-JAX reference (eval-mode MultVae) using the same bf16 weights / bf16 dot inputs."""
    (w_e1, b_e1, w_e2, b_e2, w_ml, b_ml,
     w_d1p, b_d1, w_d2, b_d2, w_it, b_it) = kernel_params

    def mm(a, w, b):
        return jnp.dot(a.astype(jnp.bfloat16), w,
                       preferred_element_type=jnp.float32) + b

    h = jnp.tanh(mm(x2, w_e1, b_e1))
    h = jnp.tanh(mm(h, w_e2, b_e2))
    mulv = mm(h, w_ml, b_ml)
    latent = mulv.shape[-1] // 2
    mu, lv = mulv[:, :latent], mulv[:, latent:]
    d = jnp.tanh(mm(mulv, w_d1p, b_d1))    # logvar rows are zero -> z = mu
    d = jnp.tanh(mm(d, w_d2, b_d2))
    logits = jnp.tanh(mm(d, w_it, b_it))
    sm = jax.nn.softmax(logits, axis=-1)
    nnz = jnp.sum((x2 != 0.0).astype(jnp.float32), axis=-1, keepdims=True)
    return sm * nnz, mu, lv


if __name__ == "__main__":
    # Small, lane/sublane-aligned shapes; B=256 -> tb auto-selects 128, grid=(2,)
    # so both v7x TensorCores get a full-MXU-row batch tile.
    B, item_dim, hidden_dim, latent_dim = 256, 256, 128, 64

    key = jax.random.PRNGKey(0)
    k_x, k_p = jax.random.split(key)

    # Sparse non-negative "interaction" input of shape [B, 1, item_dim]
    raw = jax.random.uniform(k_x, (B, 1, item_dim), jnp.float32)
    x = jnp.where(raw > 0.7, raw, 0.0)

    params = init_params(k_p, item_dim, hidden_dim, latent_dim)
    kparams = prepare_kernel_params(params)

    items, mu, logvar = multvae_forward(x, kparams)
    items, mu, logvar = jax.block_until_ready((items, mu, logvar))

    # sanity check against pure-JAX reference (bf16 weights + approx recip -> looser tolerance)
    ref_items, ref_mu, ref_lv = reference_forward(x.reshape(B, item_dim), kparams)
    assert jnp.allclose(items.reshape(B, item_dim), ref_items, atol=5e-3, rtol=5e-3)
    assert jnp.allclose(mu.reshape(B, latent_dim), ref_mu, atol=5e-3, rtol=5e-3)
    assert jnp.allclose(logvar.reshape(B, latent_dim), ref_lv, atol=5e-3, rtol=5e-3)

    print("KERNEL_OK")
</pallas_src>

<mosaic_0001>
module attributes {stable_mosaic.version = 11 : i64} {
  func.func @multvae_kernel(%arg0: i32, %arg1: memref<128x256xf32, #tpu.memory_space<vmem>>, %arg2: memref<256x128xbf16, #tpu.memory_space<vmem>>, %arg3: memref<1x128xf32, #tpu.memory_space<vmem>>, %arg4: memref<128x128xbf16, #tpu.memory_space<vmem>>, %arg5: memref<1x128xf32, #tpu.memory_space<vmem>>, %arg6: memref<128x128xbf16, #tpu.memory_space<vmem>>, %arg7: memref<1x128xf32, #tpu.memory_space<vmem>>, %arg8: memref<128x128xbf16, #tpu.memory_space<vmem>>, %arg9: memref<1x128xf32, #tpu.memory_space<vmem>>, %arg10: memref<128x128xbf16, #tpu.memory_space<vmem>>, %arg11: memref<1x128xf32, #tpu.memory_space<vmem>>, %arg12: memref<128x256xbf16, #tpu.memory_space<vmem>>, %arg13: memref<1x256xf32, #tpu.memory_space<vmem>>, %arg14: memref<128x256xf32, #tpu.memory_space<vmem>>, %arg15: memref<128x128xf32, #tpu.memory_space<vmem>>) attributes {dimension_semantics = [#tpu.dimension_semantics<parallel>], iteration_bounds = array<i64: 2>, scalar_prefetch = 0 : i64, scratch_operands = 0 : i64, tpu.core_type = #tpu.core_type<tc>, window_params = [{transform_indices = @transform_0, window_bounds = array<i64: 128, 256>}, {pipeline_mode = #tpu.pipeline_mode<synchronous>, transform_indices = @transform_1, window_bounds = array<i64: 256, 128>}, {pipeline_mode = #tpu.pipeline_mode<synchronous>, transform_indices = @transform_2, window_bounds = array<i64: 1, 128>}, {pipeline_mode = #tpu.pipeline_mode<synchronous>, transform_indices = @transform_3, window_bounds = array<i64: 128, 128>}, {pipeline_mode = #tpu.pipeline_mode<synchronous>, transform_indices = @transform_4, window_bounds = array<i64: 1, 128>}, {pipeline_mode = #tpu.pipeline_mode<synchronous>, transform_indices = @transform_5, window_bounds = array<i64: 128, 128>}, {pipeline_mode = #tpu.pipeline_mode<synchronous>, transform_indices = @transform_6, window_bounds = array<i64: 1, 128>}, {pipeline_mode = #tpu.pipeline_mode<synchronous>, transform_indices = @transform_7, window_bounds = array<i64: 128, 128>}, {pipeline_mode = #tpu.pipeline_mode<synchronous>, transform_indices = @transform_8, window_bounds = array<i64: 1, 128>}, {pipeline_mode = #tpu.pipeline_mode<synchronous>, transform_indices = @transform_9, window_bounds = array<i64: 128, 128>}, {pipeline_mode = #tpu.pipeline_mode<synchronous>, transform_indices = @transform_10, window_bounds = array<i64: 1, 128>}, {pipeline_mode = #tpu.pipeline_mode<synchronous>, transform_indices = @transform_11, window_bounds = array<i64: 128, 256>}, {pipeline_mode = #tpu.pipeline_mode<synchronous>, transform_indices = @transform_12, window_bounds = array<i64: 1, 256>}, {transform_indices = @transform_13, window_bounds = array<i64: 128, 256>}, {transform_indices = @transform_14, window_bounds = array<i64: 128, 128>}]} {
    %c0 = arith.constant 0 : index
    %c0_0 = arith.constant 0 : index
    %0 = vector.load %arg1[%c0, %c0_0] : memref<128x256xf32, #tpu.memory_space<vmem>>, vector<128x256xf32>
    %1 = arith.truncf %0 : vector<128x256xf32> to vector<128x256xbf16>
    %c0_1 = arith.constant 0 : index
    %c0_2 = arith.constant 0 : index
    %2 = vector.load %arg2[%c0_1, %c0_2] : memref<256x128xbf16, #tpu.memory_space<vmem>>, vector<256x128xbf16>
    %cst = arith.constant dense<0.000000e+00> : vector<128x128xf32>
    %3 = tpu.matmul %1, %2, %cst {dimension_numbers = #tpu.dot_dimension_numbers<[1], [0], [0], [1], [0, 0, 1, 1], [], []>} : vector<128x256xbf16>, vector<256x128xbf16>, vector<128x128xf32> -> vector<128x128xf32>
    %c0_3 = arith.constant 0 : index
    %c0_4 = arith.constant 0 : index
    %4 = vector.load %arg3[%c0_3, %c0_4] : memref<1x128xf32, #tpu.memory_space<vmem>>, vector<1x128xf32>
    %5 = vector.broadcast %4 : vector<1x128xf32> to vector<128x128xf32>
    %6 = arith.addf %3, %5 : vector<128x128xf32>
    %7 = math.tanh %6 : vector<128x128xf32>
    %8 = arith.truncf %7 : vector<128x128xf32> to vector<128x128xbf16>
    %c0_5 = arith.constant 0 : index
    %c0_6 = arith.constant 0 : index
    %9 = vector.load %arg4[%c0_5, %c0_6] : memref<128x128xbf16, #tpu.memory_space<vmem>>, vector<128x128xbf16>
    %cst_7 = arith.constant dense<0.000000e+00> : vector<128x128xf32>
    %10 = tpu.matmul %8, %9, %cst_7 {dimension_numbers = #tpu.dot_dimension_numbers<[1], [0], [0], [1], [0, 0, 1, 1], [], []>} : vector<128x128xbf16>, vector<128x128xbf16>, vector<128x128xf32> -> vector<128x128xf32>
    %c0_8 = arith.constant 0 : index
    %c0_9 = arith.constant 0 : index
    %11 = vector.load %arg5[%c0_8, %c0_9] : memref<1x128xf32, #tpu.memory_space<vmem>>, vector<1x128xf32>
    %12 = vector.broadcast %11 : vector<1x128xf32> to vector<128x128xf32>
    %13 = arith.addf %10, %12 : vector<128x128xf32>
    %14 = math.tanh %13 : vector<128x128xf32>
    %15 = arith.truncf %14 : vector<128x128xf32> to vector<128x128xbf16>
    %c0_10 = arith.constant 0 : index
    %c0_11 = arith.constant 0 : index
    %16 = vector.load %arg6[%c0_10, %c0_11] : memref<128x128xbf16, #tpu.memory_space<vmem>>, vector<128x128xbf16>
    %cst_12 = arith.constant dense<0.000000e+00> : vector<128x128xf32>
    %17 = tpu.matmul %15, %16, %cst_12 {dimension_numbers = #tpu.dot_dimension_numbers<[1], [0], [0], [1], [0, 0, 1, 1], [], []>} : vector<128x128xbf16>, vector<128x128xbf16>, vector<128x128xf32> -> vector<128x128xf32>
    %c0_13 = arith.constant 0 : index
    %c0_14 = arith.constant 0 : index
    %18 = vector.load %arg7[%c0_13, %c0_14] : memref<1x128xf32, #tpu.memory_space<vmem>>, vector<1x128xf32>
    %19 = vector.broadcast %18 : vector<1x128xf32> to vector<128x128xf32>
    %20 = arith.addf %17, %19 : vector<128x128xf32>
    %c0_15 = arith.constant 0 : index
    %c0_16 = arith.constant 0 : index
    %21 = vector.load %arg15[%c0_15, %c0_16] : memref<128x128xf32, #tpu.memory_space<vmem>>, vector<128x128xf32>
    tpu.vector_store %arg15[%c0_15, %c0_16], %20 {strides = array<i32>} : memref<128x128xf32, #tpu.memory_space<vmem>>, vector<128x128xf32>,
    %22 = arith.truncf %20 : vector<128x128xf32> to vector<128x128xbf16>
    %c0_17 = arith.constant 0 : index
    %c0_18 = arith.constant 0 : index
    %23 = vector.load %arg8[%c0_17, %c0_18] : memref<128x128xbf16, #tpu.memory_space<vmem>>, vector<128x128xbf16>
    %cst_19 = arith.constant dense<0.000000e+00> : vector<128x128xf32>
    %24 = tpu.matmul %22, %23, %cst_19 {dimension_numbers = #tpu.dot_dimension_numbers<[1], [0], [0], [1], [0, 0, 1, 1], [], []>} : vector<128x128xbf16>, vector<128x128xbf16>, vector<128x128xf32> -> vector<128x128xf32>
    %c0_20 = arith.constant 0 : index
    %c0_21 = arith.constant 0 : index
    %25 = vector.load %arg9[%c0_20, %c0_21] : memref<1x128xf32, #tpu.memory_space<vmem>>, vector<1x128xf32>
    %26 = vector.broadcast %25 : vector<1x128xf32> to vector<128x128xf32>
    %27 = arith.addf %24, %26 : vector<128x128xf32>
    %28 = math.tanh %27 : vector<128x128xf32>
    %29 = arith.truncf %28 : vector<128x128xf32> to vector<128x128xbf16>
    %c0_22 = arith.constant 0 : index
    %c0_23 = arith.constant 0 : index
    %30 = vector.load %arg10[%c0_22, %c0_23] : memref<128x128xbf16, #tpu.memory_space<vmem>>, vector<128x128xbf16>
    %cst_24 = arith.constant dense<0.000000e+00> : vector<128x128xf32>
    %31 = tpu.matmul %29, %30, %cst_24 {dimension_numbers = #tpu.dot_dimension_numbers<[1], [0], [0], [1], [0, 0, 1, 1], [], []>} : vector<128x128xbf16>, vector<128x128xbf16>, vector<128x128xf32> -> vector<128x128xf32>
    %c0_25 = arith.constant 0 : index
    %c0_26 = arith.constant 0 : index
    %32 = vector.load %arg11[%c0_25, %c0_26] : memref<1x128xf32, #tpu.memory_space<vmem>>, vector<1x128xf32>
    %33 = vector.broadcast %32 : vector<1x128xf32> to vector<128x128xf32>
    %34 = arith.addf %31, %33 : vector<128x128xf32>
    %35 = math.tanh %34 : vector<128x128xf32>
    %36 = arith.truncf %35 : vector<128x128xf32> to vector<128x128xbf16>
    %c0_27 = arith.constant 0 : index
    %c0_28 = arith.constant 0 : index
    %37 = vector.load %arg12[%c0_27, %c0_28] : memref<128x256xbf16, #tpu.memory_space<vmem>>, vector<128x256xbf16>
    %cst_29 = arith.constant dense<0.000000e+00> : vector<128x256xf32>
    %38 = tpu.matmul %36, %37, %cst_29 {dimension_numbers = #tpu.dot_dimension_numbers<[1], [0], [0], [1], [0, 0, 1, 1], [], []>} : vector<128x128xbf16>, vector<128x256xbf16>, vector<128x256xf32> -> vector<128x256xf32>
    %c0_30 = arith.constant 0 : index
    %c0_31 = arith.constant 0 : index
    %39 = vector.load %arg13[%c0_30, %c0_31] : memref<1x256xf32, #tpu.memory_space<vmem>>, vector<1x256xf32>
    %40 = vector.broadcast %39 : vector<1x256xf32> to vector<128x256xf32>
    %41 = arith.addf %38, %40 : vector<128x256xf32>
    %42 = math.tanh %41 : vector<128x256xf32>
    %43 = math.exp %42 : vector<128x256xf32>
    %cst_32 = arith.constant dense<0.000000e+00> : vector<128xf32>
    %44 = vector.multi_reduction <add>, %43, %cst_32 [1] : vector<128x256xf32> to vector<128xf32>
    %45 = vector.shape_cast %44 : vector<128xf32> to vector<128x1xf32>
    %cst_33 = arith.constant 0.000000e+00 : f32
    %46 = vector.broadcast %cst_33 : f32 to vector<128x256xf32>
    %47 = arith.cmpf one, %0, %46 : vector<128x256xf32>
    %48 = arith.extui %47 : vector<128x256xi1> to vector<128x256xi32>
    %49 = arith.sitofp %48 : vector<128x256xi32> to vector<128x256xf32>
    %cst_34 = arith.constant dense<0.000000e+00> : vector<128xf32>
    %50 = vector.multi_reduction <add>, %49, %cst_34 [1] : vector<128x256xf32> to vector<128xf32>
    %51 = vector.shape_cast %50 : vector<128xf32> to vector<128x1xf32>
    %52 = tpu.reciprocal %45 {approx = true} : vector<128x1xf32> -> vector<128x1xf32>
    %53 = arith.mulf %51, %52 : vector<128x1xf32>
    %54 = vector.broadcast %53 : vector<128x1xf32> to vector<128x256xf32>
    %55 = arith.mulf %43, %54 : vector<128x256xf32>
    %c0_35 = arith.constant 0 : index
    %c0_36 = arith.constant 0 : index
    %56 = vector.load %arg14[%c0_35, %c0_36] : memref<128x256xf32, #tpu.memory_space<vmem>>, vector<128x256xf32>
    tpu.vector_store %arg14[%c0_35, %c0_36], %55 {strides = array<i32>} : memref<128x256xf32, #tpu.memory_space<vmem>>, vector<128x256xf32>,
    return
  }
  func.func @transform_0(%arg0: i32) -> (i32, i32) {
    %c0_i32 = arith.constant 0 : i32
    %c0_i32_0 = arith.constant 0 : i32
    return %arg0, %c0_i32 : i32, i32
  }
  func.func @transform_1(%arg0: i32) -> (i32, i32) {
    %c0_i32 = arith.constant 0 : i32
    %c0_i32_0 = arith.constant 0 : i32
    %c0_i32_1 = arith.constant 0 : i32
    return %c0_i32, %c0_i32_0 : i32, i32
  }
  func.func @transform_2(%arg0: i32) -> (i32, i32) {
    %c0_i32 = arith.constant 0 : i32
    %c0_i32_0 = arith.constant 0 : i32
    %c0_i32_1 = arith.constant 0 : i32
    return %c0_i32, %c0_i32_0 : i32, i32
  }
  func.func @transform_3(%arg0: i32) -> (i32, i32) {
    %c0_i32 = arith.constant 0 : i32
    %c0_i32_0 = arith.constant 0 : i32
    %c0_i32_1 = arith.constant 0 : i32
    return %c0_i32, %c0_i32_0 : i32, i32
  }
  func.func @transform_4(%arg0: i32) -> (i32, i32) {
    %c0_i32 = arith.constant 0 : i32
    %c0_i32_0 = arith.constant 0 : i32
    %c0_i32_1 = arith.constant 0 : i32
    return %c0_i32, %c0_i32_0 : i32, i32
  }
  func.func @transform_5(%arg0: i32) -> (i32, i32) {
    %c0_i32 = arith.constant 0 : i32
    %c0_i32_0 = arith.constant 0 : i32
    %c0_i32_1 = arith.constant 0 : i32
    return %c0_i32, %c0_i32_0 : i32, i32
  }
  func.func @transform_6(%arg0: i32) -> (i32, i32) {
    %c0_i32 = arith.constant 0 : i32
    %c0_i32_0 = arith.constant 0 : i32
    %c0_i32_1 = arith.constant 0 : i32
    return %c0_i32, %c0_i32_0 : i32, i32
  }
  func.func @transform_7(%arg0: i32) -> (i32, i32) {
    %c0_i32 = arith.constant 0 : i32
    %c0_i32_0 = arith.constant 0 : i32
    %c0_i32_1 = arith.constant 0 : i32
    return %c0_i32, %c0_i32_0 : i32, i32
  }
  func.func @transform_8(%arg0: i32) -> (i32, i32) {
    %c0_i32 = arith.constant 0 : i32
    %c0_i32_0 = arith.constant 0 : i32
    %c0_i32_1 = arith.constant 0 : i32
    return %c0_i32, %c0_i32_0 : i32, i32
  }
  func.func @transform_9(%arg0: i32) -> (i32, i32) {
    %c0_i32 = arith.constant 0 : i32
    %c0_i32_0 = arith.constant 0 : i32
    %c0_i32_1 = arith.constant 0 : i32
    return %c0_i32, %c0_i32_0 : i32, i32
  }
  func.func @transform_10(%arg0: i32) -> (i32, i32) {
    %c0_i32 = arith.constant 0 : i32
    %c0_i32_0 = arith.constant 0 : i32
    %c0_i32_1 = arith.constant 0 : i32
    return %c0_i32, %c0_i32_0 : i32, i32
  }
  func.func @transform_11(%arg0: i32) -> (i32, i32) {
    %c0_i32 = arith.constant 0 : i32
    %c0_i32_0 = arith.constant 0 : i32
    %c0_i32_1 = arith.constant 0 : i32
    return %c0_i32, %c0_i32_0 : i32, i32
  }
  func.func @transform_12(%arg0: i32) -> (i32, i32) {
    %c0_i32 = arith.constant 0 : i32
    %c0_i32_0 = arith.constant 0 : i32
    %c0_i32_1 = arith.constant 0 : i32
    return %c0_i32, %c0_i32_0 : i32, i32
  }
  func.func @transform_13(%arg0: i32) -> (i32, i32) {
    %c0_i32 = arith.constant 0 : i32
    %c0_i32_0 = arith.constant 0 : i32
    return %arg0, %c0_i32 : i32, i32
  }
  func.func @transform_14(%arg0: i32) -> (i32, i32) {
    %c0_i32 = arith.constant 0 : i32
    %c0_i32_0 = arith.constant 0 : i32
    return %arg0, %c0_i32 : i32, i32
  }
}

module attributes {stable_mosaic.version = 11 : i64} {
  func.func @multvae_kernel(%arg0: i32, %arg1: memref<128x256xf32, #tpu.memory_space<vmem>>, %arg2: memref<256x128xbf16, #tpu.memory_space<vmem>>, %arg3: memref<1x128xf32, #tpu.memory_space<vmem>>, %arg4: memref<128x128xbf16, #tpu.memory_space<vmem>>, %arg5: memref<1x128xf32, #tpu.memory_space<vmem>>, %arg6: memref<128x128xbf16, #tpu.memory_space<vmem>>, %arg7: memref<1x128xf32, #tpu.memory_space<vmem>>, %arg8: memref<128x128xbf16, #tpu.memory_space<vmem>>, %arg9: memref<1x128xf32, #tpu.memory_space<vmem>>, %arg10: memref<128x128xbf16, #tpu.memory_space<vmem>>, %arg11: memref<1x128xf32, #tpu.memory_space<vmem>>, %arg12: memref<128x256xbf16, #tpu.memory_space<vmem>>, %arg13: memref<1x256xf32, #tpu.memory_space<vmem>>, %arg14: memref<128x256xf32, #tpu.memory_space<vmem>>, %arg15: memref<128x128xf32, #tpu.memory_space<vmem>>) attributes {dimension_semantics = [#tpu.dimension_semantics<parallel>], iteration_bounds = array<i64: 2>, scalar_prefetch = 0 : i64, scratch_operands = 0 : i64, tpu.core_type = #tpu.core_type<tc>, window_params = [{transform_indices = @transform_0, window_bounds = array<i64: 128, 256>}, {pipeline_mode = #tpu.pipeline_mode<synchronous>, transform_indices = @transform_1, window_bounds = array<i64: 256, 128>}, {pipeline_mode = #tpu.pipeline_mode<synchronous>, transform_indices = @transform_2, window_bounds = array<i64: 1, 128>}, {pipeline_mode = #tpu.pipeline_mode<synchronous>, transform_indices = @transform_3, window_bounds = array<i64: 128, 128>}, {pipeline_mode = #tpu.pipeline_mode<synchronous>, transform_indices = @transform_4, window_bounds = array<i64: 1, 128>}, {pipeline_mode = #tpu.pipeline_mode<synchronous>, transform_indices = @transform_5, window_bounds = array<i64: 128, 128>}, {pipeline_mode = #tpu.pipeline_mode<synchronous>, transform_indices = @transform_6, window_bounds = array<i64: 1, 128>}, {pipeline_mode = #tpu.pipeline_mode<synchronous>, transform_indices = @transform_7, window_bounds = array<i64: 128, 128>}, {pipeline_mode = #tpu.pipeline_mode<synchronous>, transform_indices = @transform_8, window_bounds = array<i64: 1, 128>}, {pipeline_mode = #tpu.pipeline_mode<synchronous>, transform_indices = @transform_9, window_bounds = array<i64: 128, 128>}, {pipeline_mode = #tpu.pipeline_mode<synchronous>, transform_indices = @transform_10, window_bounds = array<i64: 1, 128>}, {pipeline_mode = #tpu.pipeline_mode<synchronous>, transform_indices = @transform_11, window_bounds = array<i64: 128, 256>}, {pipeline_mode = #tpu.pipeline_mode<synchronous>, transform_indices = @transform_12, window_bounds = array<i64: 1, 256>}, {transform_indices = @transform_13, window_bounds = array<i64: 128, 256>}, {transform_indices = @transform_14, window_bounds = array<i64: 128, 128>}]} {
    %c0 = arith.constant 0 : index
    %c0_0 = arith.constant 0 : index
    %0 = vector.load %arg1[%c0, %c0_0] : memref<128x256xf32, #tpu.memory_space<vmem>>, vector<128x256xf32>
    %1 = arith.truncf %0 : vector<128x256xf32> to vector<128x256xbf16>
    %c0_1 = arith.constant 0 : index
    %c0_2 = arith.constant 0 : index
    %2 = vector.load %arg2[%c0_1, %c0_2] : memref<256x128xbf16, #tpu.memory_space<vmem>>, vector<256x128xbf16>
    %cst = arith.constant dense<0.000000e+00> : vector<128x128xf32>
    %3 = tpu.matmul %1, %2, %cst {dimension_numbers = #tpu.dot_dimension_numbers<[1], [0], [0], [1], [0, 0, 1, 1], [], []>} : vector<128x256xbf16>, vector<256x128xbf16>, vector<128x128xf32> -> vector<128x128xf32>
    %c0_3 = arith.constant 0 : index
    %c0_4 = arith.constant 0 : index
    %4 = vector.load %arg3[%c0_3, %c0_4] : memref<1x128xf32, #tpu.memory_space<vmem>>, vector<1x128xf32>
    %5 = vector.broadcast %4 : vector<1x128xf32> to vector<128x128xf32>
    %6 = arith.addf %3, %5 : vector<128x128xf32>
    %7 = math.tanh %6 : vector<128x128xf32>
    %8 = arith.truncf %7 : vector<128x128xf32> to vector<128x128xbf16>
    %c0_5 = arith.constant 0 : index
    %c0_6 = arith.constant 0 : index
    %9 = vector.load %arg4[%c0_5, %c0_6] : memref<128x128xbf16, #tpu.memory_space<vmem>>, vector<128x128xbf16>
    %cst_7 = arith.constant dense<0.000000e+00> : vector<128x128xf32>
    %10 = tpu.matmul %8, %9, %cst_7 {dimension_numbers = #tpu.dot_dimension_numbers<[1], [0], [0], [1], [0, 0, 1, 1], [], []>} : vector<128x128xbf16>, vector<128x128xbf16>, vector<128x128xf32> -> vector<128x128xf32>
    %c0_8 = arith.constant 0 : index
    %c0_9 = arith.constant 0 : index
    %11 = vector.load %arg5[%c0_8, %c0_9] : memref<1x128xf32, #tpu.memory_space<vmem>>, vector<1x128xf32>
    %12 = vector.broadcast %11 : vector<1x128xf32> to vector<128x128xf32>
    %13 = arith.addf %10, %12 : vector<128x128xf32>
    %14 = math.tanh %13 : vector<128x128xf32>
    %15 = arith.truncf %14 : vector<128x128xf32> to vector<128x128xbf16>
    %c0_10 = arith.constant 0 : index
    %c0_11 = arith.constant 0 : index
    %16 = vector.load %arg6[%c0_10, %c0_11] : memref<128x128xbf16, #tpu.memory_space<vmem>>, vector<128x128xbf16>
    %cst_12 = arith.constant dense<0.000000e+00> : vector<128x128xf32>
    %17 = tpu.matmul %15, %16, %cst_12 {dimension_numbers = #tpu.dot_dimension_numbers<[1], [0], [0], [1], [0, 0, 1, 1], [], []>} : vector<128x128xbf16>, vector<128x128xbf16>, vector<128x128xf32> -> vector<128x128xf32>
    %c0_13 = arith.constant 0 : index
    %c0_14 = arith.constant 0 : index
    %18 = vector.load %arg7[%c0_13, %c0_14] : memref<1x128xf32, #tpu.memory_space<vmem>>, vector<1x128xf32>
    %19 = vector.broadcast %18 : vector<1x128xf32> to vector<128x128xf32>
    %20 = arith.addf %17, %19 : vector<128x128xf32>
    %c0_15 = arith.constant 0 : index
    %c0_16 = arith.constant 0 : index
    %21 = vector.load %arg15[%c0_15, %c0_16] : memref<128x128xf32, #tpu.memory_space<vmem>>, vector<128x128xf32>
    tpu.vector_store %arg15[%c0_15, %c0_16], %20 {strides = array<i32>} : memref<128x128xf32, #tpu.memory_space<vmem>>, vector<128x128xf32>,
    %22 = arith.truncf %20 : vector<128x128xf32> to vector<128x128xbf16>
    %c0_17 = arith.constant 0 : index
    %c0_18 = arith.constant 0 : index
    %23 = vector.load %arg8[%c0_17, %c0_18] : memref<128x128xbf16, #tpu.memory_space<vmem>>, vector<128x128xbf16>
    %cst_19 = arith.constant dense<0.000000e+00> : vector<128x128xf32>
    %24 = tpu.matmul %22, %23, %cst_19 {dimension_numbers = #tpu.dot_dimension_numbers<[1], [0], [0], [1], [0, 0, 1, 1], [], []>} : vector<128x128xbf16>, vector<128x128xbf16>, vector<128x128xf32> -> vector<128x128xf32>
    %c0_20 = arith.constant 0 : index
    %c0_21 = arith.constant 0 : index
    %25 = vector.load %arg9[%c0_20, %c0_21] : memref<1x128xf32, #tpu.memory_space<vmem>>, vector<1x128xf32>
    %26 = vector.broadcast %25 : vector<1x128xf32> to vector<128x128xf32>
    %27 = arith.addf %24, %26 : vector<128x128xf32>
    %28 = math.tanh %27 : vector<128x128xf32>
    %29 = arith.truncf %28 : vector<128x128xf32> to vector<128x128xbf16>
    %c0_22 = arith.constant 0 : index
    %c0_23 = arith.constant 0 : index
    %30 = vector.load %arg10[%c0_22, %c0_23] : memref<128x128xbf16, #tpu.memory_space<vmem>>, vector<128x128xbf16>
    %cst_24 = arith.constant dense<0.000000e+00> : vector<128x128xf32>
    %31 = tpu.matmul %29, %30, %cst_24 {dimension_numbers = #tpu.dot_dimension_numbers<[1], [0], [0], [1], [0, 0, 1, 1], [], []>} : vector<128x128xbf16>, vector<128x128xbf16>, vector<128x128xf32> -> vector<128x128xf32>
    %c0_25 = arith.constant 0 : index
    %c0_26 = arith.constant 0 : index
    %32 = vector.load %arg11[%c0_25, %c0_26] : memref<1x128xf32, #tpu.memory_space<vmem>>, vector<1x128xf32>
    %33 = vector.broadcast %32 : vector<1x128xf32> to vector<128x128xf32>
    %34 = arith.addf %31, %33 : vector<128x128xf32>
    %35 = math.tanh %34 : vector<128x128xf32>
    %36 = arith.truncf %35 : vector<128x128xf32> to vector<128x128xbf16>
    %c0_27 = arith.constant 0 : index
    %c0_28 = arith.constant 0 : index
    %37 = vector.load %arg12[%c0_27, %c0_28] : memref<128x256xbf16, #tpu.memory_space<vmem>>, vector<128x256xbf16>
    %cst_29 = arith.constant dense<0.000000e+00> : vector<128x256xf32>
    %38 = tpu.matmul %36, %37, %cst_29 {dimension_numbers = #tpu.dot_dimension_numbers<[1], [0], [0], [1], [0, 0, 1, 1], [], []>} : vector<128x128xbf16>, vector<128x256xbf16>, vector<128x256xf32> -> vector<128x256xf32>
    %c0_30 = arith.constant 0 : index
    %c0_31 = arith.constant 0 : index
    %39 = vector.load %arg13[%c0_30, %c0_31] : memref<1x256xf32, #tpu.memory_space<vmem>>, vector<1x256xf32>
    %40 = vector.broadcast %39 : vector<1x256xf32> to vector<128x256xf32>
    %41 = arith.addf %38, %40 : vector<128x256xf32>
    %42 = math.tanh %41 : vector<128x256xf32>
    %43 = math.exp %42 : vector<128x256xf32>
    %cst_32 = arith.constant dense<0.000000e+00> : vector<128xf32>
    %44 = vector.multi_reduction <add>, %43, %cst_32 [1] : vector<128x256xf32> to vector<128xf32>
    %45 = vector.shape_cast %44 : vector<128xf32> to vector<128x1xf32>
    %cst_33 = arith.constant 0.000000e+00 : f32
    %46 = vector.broadcast %cst_33 : f32 to vector<128x256xf32>
    %47 = arith.cmpf one, %0, %46 : vector<128x256xf32>
    %48 = arith.extui %47 : vector<128x256xi1> to vector<128x256xi32>
    %49 = arith.sitofp %48 : vector<128x256xi32> to vector<128x256xf32>
    %cst_34 = arith.constant dense<0.000000e+00> : vector<128xf32>
    %50 = vector.multi_reduction <add>, %49, %cst_34 [1] : vector<128x256xf32> to vector<128xf32>
    %51 = vector.shape_cast %50 : vector<128xf32> to vector<128x1xf32>
    %52 = tpu.reciprocal %45 {approx = true} : vector<128x1xf32> -> vector<128x1xf32>
    %53 = arith.mulf %51, %52 : vector<128x1xf32>
    %54 = vector.broadcast %53 : vector<128x1xf32> to vector<128x256xf32>
    %55 = arith.mulf %43, %54 : vector<128x256xf32>
    %c0_35 = arith.constant 0 : index
    %c0_36 = arith.constant 0 : index
    %56 = vector.load %arg14[%c0_35, %c0_36] : memref<128x256xf32, #tpu.memory_space<vmem>>, vector<128x256xf32>
    tpu.vector_store %arg14[%c0_35, %c0_36], %55 {strides = array<i32>} : memref<128x256xf32, #tpu.memory_space<vmem>>, vector<128x256xf32>,
    return
  }
  func.func @transform_0(%arg0: i32) -> (i32, i32) {
    %c0_i32 = arith.constant 0 : i32
    %c0_i32_0 = arith.constant 0 : i32
    return %arg0, %c0_i32 : i32, i32
  }
  func.func @transform_1(%arg0: i32) -> (i32, i32) {
    %c0_i32 = arith.constant 0 : i32
    %c0_i32_0 = arith.constant 0 : i32
    %c0_i32_1 = arith.constant 0 : i32
    return %c0_i32, %c0_i32_0 : i32, i32
  }
  func.func @transform_2(%arg0: i32) -> (i32, i32) {
    %c0_i32 = arith.constant 0 : i32
    %c0_i32_0 = arith.constant 0 : i32
    %c0_i32_1 = arith.constant 0 : i32
    return %c0_i32, %c0_i32_0 : i32, i32
  }
  func.func @transform_3(%arg0: i32) -> (i32, i32) {
    %c0_i32 = arith.constant 0 : i32
    %c0_i32_0 = arith.constant 0 : i32
    %c0_i32_1 = arith.constant 0 : i32
    return %c0_i32, %c0_i32_0 : i32, i32
  }
  func.func @transform_4(%arg0: i32) -> (i32, i32) {
    %c0_i32 = arith.constant 0 : i32
    %c0_i32_0 = arith.constant 0 : i32
    %c0_i32_1 = arith.constant 0 : i32
    return %c0_i32, %c0_i32_0 : i32, i32
  }
  func.func @transform_5(%arg0: i32) -> (i32, i32) {
    %c0_i32 = arith.constant 0 : i32
    %c0_i32_0 = arith.constant 0 : i32
    %c0_i32_1 = arith.constant 0 : i32
    return %c0_i32, %c0_i32_0 : i32, i32
  }
  func.func @transform_6(%arg0: i32) -> (i32, i32) {
    %c0_i32 = arith.constant 0 : i32
    %c0_i32_0 = arith.constant 0 : i32
    %c0_i32_1 = arith.constant 0 : i32
    return %c0_i32, %c0_i32_0 : i32, i32
  }
  func.func @transform_7(%arg0: i32) -> (i32, i32) {
    %c0_i32 = arith.constant 0 : i32
    %c0_i32_0 = arith.constant 0 : i32
    %c0_i32_1 = arith.constant 0 : i32
    return %c0_i32, %c0_i32_0 : i32, i32
  }
  func.func @transform_8(%arg0: i32) -> (i32, i32) {
    %c0_i32 = arith.constant 0 : i32
    %c0_i32_0 = arith.constant 0 : i32
    %c0_i32_1 = arith.constant 0 : i32
    return %c0_i32, %c0_i32_0 : i32, i32
  }
  func.func @transform_9(%arg0: i32) -> (i32, i32) {
    %c0_i32 = arith.constant 0 : i32
    %c0_i32_0 = arith.constant 0 : i32
    %c0_i32_1 = arith.constant 0 : i32
    return %c0_i32, %c0_i32_0 : i32, i32
  }
  func.func @transform_10(%arg0: i32) -> (i32, i32) {
    %c0_i32 = arith.constant 0 : i32
    %c0_i32_0 = arith.constant 0 : i32
    %c0_i32_1 = arith.constant 0 : i32
    return %c0_i32, %c0_i32_0 : i32, i32
  }
  func.func @transform_11(%arg0: i32) -> (i32, i32) {
    %c0_i32 = arith.constant 0 : i32
    %c0_i32_0 = arith.constant 0 : i32
    %c0_i32_1 = arith.constant 0 : i32
    return %c0_i32, %c0_i32_0 : i32, i32
  }
  func.func @transform_12(%arg0: i32) -> (i32, i32) {
    %c0_i32 = arith.constant 0 : i32
    %c0_i32_0 = arith.constant 0 : i32
    %c0_i32_1 = arith.constant 0 : i32
    return %c0_i32, %c0_i32_0 : i32, i32
  }
  func.func @transform_13(%arg0: i32) -> (i32, i32) {
    %c0_i32 = arith.constant 0 : i32
    %c0_i32_0 = arith.constant 0 : i32
    return %arg0, %c0_i32 : i32, i32
  }
  func.func @transform_14(%arg0: i32) -> (i32, i32) {
    %c0_i32 = arith.constant 0 : i32
    %c0_i32_0 = arith.constant 0 : i32
    return %arg0, %c0_i32 : i32, i32
  }
}

</mosaic_0001>

<llo_original>
// kernel: tpu_custom_call.1
$region0: #{tpu_custom_call.1}
  #allocation0 [shape = 'u32[]', space=smem, size = 0x4, offset = 0x4, fixed_abs, tag = 'smem constant byte address 0x4 - core index']
  #allocation1 [shape = 'u32[144,128]{1,0:T(1,128)}', space=vmem, size = 0x12000, scoped, tag = 'internal scratch']
  %s0 = inlined_call_operand.hbm [shape: f32[256,256], index: 0, kind: input, shape index: {}]
  %s1 = inlined_call_operand.hbm [shape: bf16[256,128], index: 1, kind: input, shape index: {}]
  %s2 = inlined_call_operand.vmem [shape: f32[1,128], index: 2, kind: input, shape index: {}]
  %s3 = inlined_call_operand.hbm [shape: bf16[128,128], index: 3, kind: input, shape index: {}]
  %s4 = inlined_call_operand.vmem [shape: f32[1,128], index: 4, kind: input, shape index: {}]
  %s5 = inlined_call_operand.hbm [shape: bf16[128,128], index: 5, kind: input, shape index: {}]
  %s6 = inlined_call_operand.vmem [shape: f32[1,128], index: 6, kind: input, shape index: {}]
  %s7 = inlined_call_operand.hbm [shape: bf16[128,128], index: 7, kind: input, shape index: {}]
  %s8 = inlined_call_operand.vmem [shape: f32[1,128], index: 8, kind: input, shape index: {}]
  %s9 = inlined_call_operand.hbm [shape: bf16[128,128], index: 9, kind: input, shape index: {}]
  %s10 = inlined_call_operand.vmem [shape: f32[1,128], index: 10, kind: input, shape index: {}]
  %s11 = inlined_call_operand.hbm [shape: bf16[128,256], index: 11, kind: input, shape index: {}]
  %s12 = inlined_call_operand.vmem [shape: f32[1,256], index: 12, kind: input, shape index: {}]
  %s13 = inlined_call_operand.hbm [shape: f32[256,256], index: 13, kind: output, shape index: {0}]
  %s14 = inlined_call_operand.hbm [shape: f32[256,128], index: 14, kind: output, shape index: {1}]
  %15 = xla_tuple %s13, %s14
  %s16 = sld [smem:[#allocation0]]
  $region121: #{tpu_custom_call.1} parent=0
    _
  %s18 = ssub.s32 1, %s16
  %s19 = scalar_select 0, %s18, %s16
  $region1: #{tpu_custom_call.1} parent=0
    #allocation2 [shape = 'u8[262144]{0}', space=vmem, size = 0x40000, scoped, tag = 'input window, operand 0']
    #allocation3 [shape = 's32[2]{0}', space=sflag, size = 0x8, scoped, tag = 'scoped memory for tpu_custom_call.1']
    #allocation4 [shape = 's32[2]{0}', space=sflag, size = 0x8, scoped, tag = 'scoped memory for tpu_custom_call.1']
    #allocation5 [shape = 'u8[65536]{0}', space=vmem, size = 0x10000, scoped, tag = 'input window, operand 1, single buffered']
    #allocation6 [shape = 's32[1]{0}', space=sflag, size = 0x4, scoped, tag = 'scoped memory for tpu_custom_call.1']
    #allocation7 [shape = 'u8[32768]{0}', space=vmem, size = 0x8000, scoped, tag = 'input window, operand 3, single buffered']
    #allocation8 [shape = 'u8[32768]{0}', space=vmem, size = 0x8000, scoped, tag = 'input window, operand 5, single buffered']
    #allocation9 [shape = 's32[1]{0}', space=sflag, size = 0x4, scoped, tag = 'scoped memory for tpu_custom_call.1']
    #allocation10 [shape = 'u8[32768]{0}', space=vmem, size = 0x8000, scoped, tag = 'input window, operand 7, single buffered']
    #allocation11 [shape = 'u8[32768]{0}', space=vmem, size = 0x8000, scoped, tag = 'input window, operand 9, single buffered']
    #allocation12 [shape = 's32[1]{0}', space=sflag, size = 0x4, scoped, tag = 'scoped memory for tpu_custom_call.1']
    #allocation13 [shape = 'u8[65536]{0}', space=vmem, size = 0x10000, scoped, tag = 'input window, operand 11, single buffered']
    #allocation14 [shape = 'u8[262144]{0}', space=vmem, size = 0x40000, scoped, tag = 'output window, operand 0']
    #allocation15 [shape = 'u8[131072]{0}', space=vmem, size = 0x20000, scoped, tag = 'output window, operand 1']
    #allocation16 [shape = 's32[2]{0}', space=sflag, size = 0x8, scoped, tag = 'scoped memory for tpu_custom_call.1']
    %20 = vsyncpa [#allocation3], 0
    %s21 = scalar_lea.sflag [#allocation3], 1
    %22 = vsyncpa %s21, 0
    %23 = vsyncpa [#allocation6], 0
    %24 = vsyncpa [#allocation9], 0
    %25 = vsyncpa [#allocation12], 0
    %26 = vsyncpa [#allocation4], 0
    %s27 = scalar_lea.sflag [#allocation4], 1
    %28 = vsyncpa %s27, 0
    %29 = vsyncpa [#allocation16], 0
    %s30 = scalar_lea.sflag [#allocation16], 1
    %31 = vsyncpa %s30, 0
    loop: start=0, step=1, limit=4
    $region2: #{tpu_custom_call.1} parent=1 // loop_pre_header
      _
    $region3: #{tpu_custom_call.1} parent=1 // loop_header
      %s33 = sphi 0, %s37
      %p34 = scmp.ge.s32.totalorder %s33, 4
      %s43 = sphi 0, %s45
      %s46 = sphi 0, %s43
      %s47 = sphi 0, %s46
      %s63 = sphi 0, %s47
      %s67 = sphi 0, %s67
      %s69 = sphi 0, %s67
      %s70 = sphi 0, %s69
      %s84 = sphi 0, %s70
      %s88 = sphi 0, %s88
      %s90 = sphi 0, %s88
      %s91 = sphi 0, %s90
      %s105 = sphi 0, %s91
      %s109 = sphi 0, %s109
      %s111 = sphi 0, %s109
      %s112 = sphi 0, %s111
      %s126 = sphi 0, %s112
      %s130 = sphi 0, %s130
      %s132 = sphi 0, %s130
      %s133 = sphi 0, %s132
      %s147 = sphi 0, %s133
      %s151 = sphi 0, %s151
      %s153 = sphi 0, %s151
      %s154 = sphi 0, %s153
      %s168 = sphi 0, %s154
      %s172 = sphi 0, %s172
      %s174 = sphi 0, %s172
      %s175 = sphi 0, %s174
      %s189 = sphi 0, %s175
      %s193 = sphi 0, %s193
      %s195 = sphi 0, %s193
      %s196 = sphi 0, %s195
      %s210 = sphi 0, %s196
      %s214 = sphi 0, %s214
      %s216 = sphi 0, %s214
      %s217 = sphi 0, %s216
      %s231 = sphi 0, %s217
      %s235 = sphi 0, %s235
      %s237 = sphi 0, %s235
      %s238 = sphi 0, %s237
      %s252 = sphi 0, %s238
      %s256 = sphi 0, %s256
      %s258 = sphi 0, %s256
      %s259 = sphi 0, %s258
      %s273 = sphi 0, %s259
      %s277 = sphi 0, %s277
      %s279 = sphi 0, %s277
      %s280 = sphi 0, %s279
      %s294 = sphi 0, %s280
      %s298 = sphi 0, %s298
      %s300 = sphi 0, %s298
      %s301 = sphi 0, %s300
      %s315 = sphi 0, %s301
      %s321 = sphi 0, %s323
      %s324 = sphi 0, %s321
      %s325 = sphi 0, %s324
      %s341 = sphi 0, %s325
      %s347 = sphi 0, %s349
      %s350 = sphi 0, %s347
      %s351 = sphi 0, %s350
      %s367 = sphi 0, %s351
    $region4: #{tpu_custom_call.1} parent=1 // loop_header_branch
      %36 = sbr.rel (%p34) target = $region8
    $region5: #{tpu_custom_call.1} parent=1 // loop_body
      %s38 = ssub.s32 %s33, 1
      %s39 = ssub.s32 %s33, 2
      %s40 = sadd.s32 %s33, 1
      %s41 = ssub.s32 %s33, %s40
      %p42 = scmp.eq.s32.totalorder %s41, 0
      %s44 = sadd.s32 %s43, 1
      %s45 = scalar_select %p42, %s43, %s44
      %p48 = pneg %p42
      %p49 = scmp.eq.s32.totalorder %s33, 1
      %p50 = por %p48, %p49
      %p51 = scmp.ne.s32.totalorder %s43, %s46
      %p52 = scmp.eq.s32.totalorder %s33, 0
      %p53 = por %p51, %p52
      %p54 = scmp.ne.s32.totalorder %s43, %s46
      %p55 = scmp.eq.s32.totalorder %s38, 1
      %p56 = por %p54, %p55
      %p57 = scmp.ne.s32.totalorder %s46, %s47
      %p58 = scmp.eq.s32.totalorder %s38, 0
      %p59 = por %p57, %p58
      %p60 = scmp.ne.s32.totalorder %s46, %s47
      %p61 = scmp.eq.s32.totalorder %s39, 1
      %p62 = por %p60, %p61
      %p64 = scmp.ne.s32.totalorder %s47, %s63
      %p65 = scmp.eq.s32.totalorder %s39, 0
      %p66 = por %p64, %p65
      %s68 = sadd.s32 %s67, 1
      %p71 = scmp.eq.s32.totalorder %s33, 1
      %p72 = scmp.ne.s32.totalorder %s67, %s69
      %p73 = scmp.eq.s32.totalorder %s33, 0
      %p74 = por %p72, %p73
      %p75 = scmp.ne.s32.totalorder %s67, %s69
      %p76 = scmp.eq.s32.totalorder %s38, 1
      %p77 = por %p75, %p76
      %p78 = scmp.ne.s32.totalorder %s69, %s70
      %p79 = scmp.eq.s32.totalorder %s38, 0
      %p80 = por %p78, %p79
      %p81 = scmp.ne.s32.totalorder %s69, %s70
      %p82 = scmp.eq.s32.totalorder %s39, 1
      %p83 = por %p81, %p82
      %p85 = scmp.ne.s32.totalorder %s70, %s84
      %p86 = scmp.eq.s32.totalorder %s39, 0
      %p87 = por %p85, %p86
      %s89 = sadd.s32 %s88, 1
      %p92 = scmp.eq.s32.totalorder %s33, 1
      %p93 = scmp.ne.s32.totalorder %s88, %s90
      %p94 = scmp.eq.s32.totalorder %s33, 0
      %p95 = por %p93, %p94
      %p96 = scmp.ne.s32.totalorder %s88, %s90
      %p97 = scmp.eq.s32.totalorder %s38, 1
      %p98 = por %p96, %p97
      %p99 = scmp.ne.s32.totalorder %s90, %s91
      %p100 = scmp.eq.s32.totalorder %s38, 0
      %p101 = por %p99, %p100
      %p102 = scmp.ne.s32.totalorder %s90, %s91
      %p103 = scmp.eq.s32.totalorder %s39, 1
      %p104 = por %p102, %p103
      %p106 = scmp.ne.s32.totalorder %s91, %s105
      %p107 = scmp.eq.s32.totalorder %s39, 0
      %p108 = por %p106, %p107
      %s110 = sadd.s32 %s109, 1
      %p113 = scmp.eq.s32.totalorder %s33, 1
      %p114 = scmp.ne.s32.totalorder %s109, %s111
      %p115 = scmp.eq.s32.totalorder %s33, 0
      %p116 = por %p114, %p115
      %p117 = scmp.ne.s32.totalorder %s109, %s111
      %p118 = scmp.eq.s32.totalorder %s38, 1
      %p119 = por %p117, %p118
      %p120 = scmp.ne.s32.totalorder %s111, %s112
      %p121 = scmp.eq.s32.totalorder %s38, 0
      %p122 = por %p120, %p121
      %p123 = scmp.ne.s32.totalorder %s111, %s112
      %p124 = scmp.eq.s32.totalorder %s39, 1
      %p125 = por %p123, %p124
      %p127 = scmp.ne.s32.totalorder %s112, %s126
      %p128 = scmp.eq.s32.totalorder %s39, 0
      %p129 = por %p127, %p128
      %s131 = sadd.s32 %s130, 1
      %p134 = scmp.eq.s32.totalorder %s33, 1
      %p135 = scmp.ne.s32.totalorder %s130, %s132
      %p136 = scmp.eq.s32.totalorder %s33, 0
      %p137 = por %p135, %p136
      %p138 = scmp.ne.s32.totalorder %s130, %s132
      %p139 = scmp.eq.s32.totalorder %s38, 1
      %p140 = por %p138, %p139
      %p141 = scmp.ne.s32.totalorder %s132, %s133
      %p142 = scmp.eq.s32.totalorder %s38, 0
      %p143 = por %p141, %p142
      %p144 = scmp.ne.s32.totalorder %s132, %s133
      %p145 = scmp.eq.s32.totalorder %s39, 1
      %p146 = por %p144, %p145
      %p148 = scmp.ne.s32.totalorder %s133, %s147
      %p149 = scmp.eq.s32.totalorder %s39, 0
      %p150 = por %p148, %p149
      %s152 = sadd.s32 %s151, 1
      %p155 = scmp.eq.s32.totalorder %s33, 1
      %p156 = scmp.ne.s32.totalorder %s151, %s153
      %p157 = scmp.eq.s32.totalorder %s33, 0
      %p158 = por %p156, %p157
      %p159 = scmp.ne.s32.totalorder %s151, %s153
      %p160 = scmp.eq.s32.totalorder %s38, 1
      %p161 = por %p159, %p160
      %p162 = scmp.ne.s32.totalorder %s153, %s154
      %p163 = scmp.eq.s32.totalorder %s38, 0
      %p164 = por %p162, %p163
      %p165 = scmp.ne.s32.totalorder %s153, %s154
      %p166 = scmp.eq.s32.totalorder %s39, 1
      %p167 = por %p165, %p166
      %p169 = scmp.ne.s32.totalorder %s154, %s168
      %p170 = scmp.eq.s32.totalorder %s39, 0
      %p171 = por %p169, %p170
      %s173 = sadd.s32 %s172, 1
      %p176 = scmp.eq.s32.totalorder %s33, 1
      %p177 = scmp.ne.s32.totalorder %s172, %s174
      %p178 = scmp.eq.s32.totalorder %s33, 0
      %p179 = por %p177, %p178
      %p180 = scmp.ne.s32.totalorder %s172, %s174
      %p181 = scmp.eq.s32.totalorder %s38, 1
      %p182 = por %p180, %p181
      %p183 = scmp.ne.s32.totalorder %s174, %s175
      %p184 = scmp.eq.s32.totalorder %s38, 0
      %p185 = por %p183, %p184
      %p186 = scmp.ne.s32.totalorder %s174, %s175
      %p187 = scmp.eq.s32.totalorder %s39, 1
      %p188 = por %p186, %p187
      %p190 = scmp.ne.s32.totalorder %s175, %s189
      %p191 = scmp.eq.s32.totalorder %s39, 0
      %p192 = por %p190, %p191
      %s194 = sadd.s32 %s193, 1
      %p197 = scmp.eq.s32.totalorder %s33, 1
      %p198 = scmp.ne.s32.totalorder %s193, %s195
      %p199 = scmp.eq.s32.totalorder %s33, 0
      %p200 = por %p198, %p199
      %p201 = scmp.ne.s32.totalorder %s193, %s195
      %p202 = scmp.eq.s32.totalorder %s38, 1
      %p203 = por %p201, %p202
      %p204 = scmp.ne.s32.totalorder %s195, %s196
      %p205 = scmp.eq.s32.totalorder %s38, 0
      %p206 = por %p204, %p205
      %p207 = scmp.ne.s32.totalorder %s195, %s196
      %p208 = scmp.eq.s32.totalorder %s39, 1
      %p209 = por %p207, %p208
      %p211 = scmp.ne.s32.totalorder %s196, %s210
      %p212 = scmp.eq.s32.totalorder %s39, 0
      %p213 = por %p211, %p212
      %s215 = sadd.s32 %s214, 1
      %p218 = scmp.eq.s32.totalorder %s33, 1
      %p219 = scmp.ne.s32.totalorder %s214, %s216
      %p220 = scmp.eq.s32.totalorder %s33, 0
      %p221 = por %p219, %p220
      %p222 = scmp.ne.s32.totalorder %s214, %s216
      %p223 = scmp.eq.s32.totalorder %s38, 1
      %p224 = por %p222, %p223
      %p225 = scmp.ne.s32.totalorder %s216, %s217
      %p226 = scmp.eq.s32.totalorder %s38, 0
      %p227 = por %p225, %p226
      %p228 = scmp.ne.s32.totalorder %s216, %s217
      %p229 = scmp.eq.s32.totalorder %s39, 1
      %p230 = por %p228, %p229
      %p232 = scmp.ne.s32.totalorder %s217, %s231
      %p233 = scmp.eq.s32.totalorder %s39, 0
      %p234 = por %p232, %p233
      %s236 = sadd.s32 %s235, 1
      %p239 = scmp.eq.s32.totalorder %s33, 1
      %p240 = scmp.ne.s32.totalorder %s235, %s237
      %p241 = scmp.eq.s32.totalorder %s33, 0
      %p242 = por %p240, %p241
      %p243 = scmp.ne.s32.totalorder %s235, %s237
      %p244 = scmp.eq.s32.totalorder %s38, 1
      %p245 = por %p243, %p244
      %p246 = scmp.ne.s32.totalorder %s237, %s238
      %p247 = scmp.eq.s32.totalorder %s38, 0
      %p248 = por %p246, %p247
      %p249 = scmp.ne.s32.totalorder %s237, %s238
      %p250 = scmp.eq.s32.totalorder %s39, 1
      %p251 = por %p249, %p250
      %p253 = scmp.ne.s32.totalorder %s238, %s252
      %p254 = scmp.eq.s32.totalorder %s39, 0
      %p255 = por %p253, %p254
      %s257 = sadd.s32 %s256, 1
      %p260 = scmp.eq.s32.totalorder %s33, 1
      %p261 = scmp.ne.s32.totalorder %s256, %s258
      %p262 = scmp.eq.s32.totalorder %s33, 0
      %p263 = por %p261, %p262
      %p264 = scmp.ne.s32.totalorder %s256, %s258
      %p265 = scmp.eq.s32.totalorder %s38, 1
      %p266 = por %p264, %p265
      %p267 = scmp.ne.s32.totalorder %s258, %s259
      %p268 = scmp.eq.s32.totalorder %s38, 0
      %p269 = por %p267, %p268
      %p270 = scmp.ne.s32.totalorder %s258, %s259
      %p271 = scmp.eq.s32.totalorder %s39, 1
      %p272 = por %p270, %p271
      %p274 = scmp.ne.s32.totalorder %s259, %s273
      %p275 = scmp.eq.s32.totalorder %s39, 0
      %p276 = por %p274, %p275
      %s278 = sadd.s32 %s277, 1
      %p281 = scmp.eq.s32.totalorder %s33, 1
      %p282 = scmp.ne.s32.totalorder %s277, %s279
      %p283 = scmp.eq.s32.totalorder %s33, 0
      %p284 = por %p282, %p283
      %p285 = scmp.ne.s32.totalorder %s277, %s279
      %p286 = scmp.eq.s32.totalorder %s38, 1
      %p287 = por %p285, %p286
      %p288 = scmp.ne.s32.totalorder %s279, %s280
      %p289 = scmp.eq.s32.totalorder %s38, 0
      %p290 = por %p288, %p289
      %p291 = scmp.ne.s32.totalorder %s279, %s280
      %p292 = scmp.eq.s32.totalorder %s39, 1
      %p293 = por %p291, %p292
      %p295 = scmp.ne.s32.totalorder %s280, %s294
      %p296 = scmp.eq.s32.totalorder %s39, 0
      %p297 = por %p295, %p296
      %s299 = sadd.s32 %s298, 1
      %p302 = scmp.eq.s32.totalorder %s33, 1
      %p303 = scmp.ne.s32.totalorder %s298, %s300
      %p304 = scmp.eq.s32.totalorder %s33, 0
      %p305 = por %p303, %p304
      %p306 = scmp.ne.s32.totalorder %s298, %s300
      %p307 = scmp.eq.s32.totalorder %s38, 1
      %p308 = por %p306, %p307
      %p309 = scmp.ne.s32.totalorder %s300, %s301
      %p310 = scmp.eq.s32.totalorder %s38, 0
      %p311 = por %p309, %p310
      %p312 = scmp.ne.s32.totalorder %s300, %s301
      %p313 = scmp.eq.s32.totalorder %s39, 1
      %p314 = por %p312, %p313
      %p316 = scmp.ne.s32.totalorder %s301, %s315
      %p317 = scmp.eq.s32.totalorder %s39, 0
      %p318 = por %p316, %p317
      %s319 = ssub.s32 %s33, %s40
      %p320 = scmp.eq.s32.totalorder %s319, 0
      %s322 = sadd.s32 %s321, 1
      %s323 = scalar_select %p320, %s321, %s322
      %p326 = pneg %p320
      %p327 = scmp.eq.s32.totalorder %s33, 1
      %p328 = por %p326, %p327
      %p329 = scmp.ne.s32.totalorder %s321, %s324
      %p330 = scmp.eq.s32.totalorder %s33, 0
      %p331 = por %p329, %p330
      %p332 = scmp.ne.s32.totalorder %s321, %s324
      %p333 = scmp.eq.s32.totalorder %s38, 1
      %p334 = por %p332, %p333
      %p335 = scmp.ne.s32.totalorder %s324, %s325
      %p336 = scmp.eq.s32.totalorder %s38, 0
      %p337 = por %p335, %p336
      %p338 = scmp.ne.s32.totalorder %s324, %s325
      %p339 = scmp.eq.s32.totalorder %s39, 1
      %p340 = por %p338, %p339
      %p342 = scmp.ne.s32.totalorder %s325, %s341
      %p343 = scmp.eq.s32.totalorder %s39, 0
      %p344 = por %p342, %p343
      %s345 = ssub.s32 %s33, %s40
      %p346 = scmp.eq.s32.totalorder %s345, 0
      %s348 = sadd.s32 %s347, 1
      %s349 = scalar_select %p346, %s347, %s348
      %p352 = pneg %p346
      %p353 = scmp.eq.s32.totalorder %s33, 1
      %p354 = por %p352, %p353
      %p355 = scmp.ne.s32.totalorder %s347, %s350
      %p356 = scmp.eq.s32.totalorder %s33, 0
      %p357 = por %p355, %p356
      %p358 = scmp.ne.s32.totalorder %s347, %s350
      %p359 = scmp.eq.s32.totalorder %s38, 1
      %p360 = por %p358, %p359
      %p361 = scmp.ne.s32.totalorder %s350, %s351
      %p362 = scmp.eq.s32.totalorder %s38, 0
      %p363 = por %p361, %p362
      %p364 = scmp.ne.s32.totalorder %s350, %s351
      %p365 = scmp.eq.s32.totalorder %s39, 1
      %p366 = por %p364, %p365
      %p368 = scmp.ne.s32.totalorder %s351, %s367
      %p369 = scmp.eq.s32.totalorder %s39, 0
      %p370 = por %p368, %p369
      %p371 = scmp.le.s32.totalorder 1, %s33
      %p372 = scmp.lt.s32.totalorder %s33, 3
      %p373 = pnand %p371, %p372
      %p374 = pneg %p373
      // Predicated region
      $region9: #{tpu_custom_call.1} parent=5 // pred_check
        _
      $region10: #{tpu_custom_call.1} parent=5 // pred_check_branch
        %376 = sbr.rel (%p373) target = $region12
      $region11: #{tpu_custom_call.1} parent=5 // pred_region
        %s377 = ssub.s32 %s33, 1
        // Predicated region
        $region13: #{tpu_custom_call.1} parent=11 // pred_check
          %p378 = pneg %p80
        $region14: #{tpu_custom_call.1} parent=11 // pred_check_branch
          %380 = sbr.rel (%p378) target = $region16
        $region15: #{tpu_custom_call.1} parent=11 // pred_region
          %s382 = ssub.s32 2048, 2048
          %383 = vsyncadd [#allocation6], %s382
          %s384 = sshll.u32 [#allocation5], 4
          %s385 = int_to_ptr.vmem [resolvable:$true] %s384
          %390 = dma.hbm_to_vmem [thread:$0]  %s1, 2048, %s385, [#allocation6], 64, 64, 4
        $region16: #{tpu_custom_call.1} parent=11 // pred_fallthru
          _
        // Predicated region
        $region17: #{tpu_custom_call.1} parent=11 // pred_check
          %p391 = pneg %p101
        $region18: #{tpu_custom_call.1} parent=11 // pred_check_branch
          %393 = sbr.rel (%p391) target = $region20
        $region19: #{tpu_custom_call.1} parent=11 // pred_region
          _
        $region20: #{tpu_custom_call.1} parent=11 // pred_fallthru
          _
        // Predicated region
        $region21: #{tpu_custom_call.1} parent=11 // pred_check
          %p394 = pneg %p122
        $region22: #{tpu_custom_call.1} parent=11 // pred_check_branch
          %396 = sbr.rel (%p394) target = $region24
        $region23: #{tpu_custom_call.1} parent=11 // pred_region
          %s398 = ssub.s32 1024, 1024
          %399 = vsyncadd [#allocation6], %s398
          %s400 = sshll.u32 [#allocation7], 4
          %s401 = int_to_ptr.vmem [resolvable:$true] %s400
          %406 = dma.hbm_to_vmem [thread:$0]  %s3, 1024, %s401, [#allocation6], 64, 64, 4
        $region24: #{tpu_custom_call.1} parent=11 // pred_fallthru
          _
        // Predicated region
        $region25: #{tpu_custom_call.1} parent=11 // pred_check
          %p407 = pneg %p143
        $region26: #{tpu_custom_call.1} parent=11 // pred_check_branch
          %409 = sbr.rel (%p407) target = $region28
        $region27: #{tpu_custom_call.1} parent=11 // pred_region
          _
        $region28: #{tpu_custom_call.1} parent=11 // pred_fallthru
          _
        // Predicated region
        $region29: #{tpu_custom_call.1} parent=11 // pred_check
          %p410 = pneg %p164
        $region30: #{tpu_custom_call.1} parent=11 // pred_check_branch
          %412 = sbr.rel (%p410) target = $region32
        $region31: #{tpu_custom_call.1} parent=11 // pred_region
          %s414 = ssub.s32 1024, 1024
          %415 = vsyncadd [#allocation9], %s414
          %s416 = sshll.u32 [#allocation8], 4
          %s417 = int_to_ptr.vmem [resolvable:$true] %s416
          %422 = dma.hbm_to_vmem [thread:$0]  %s5, 1024, %s417, [#allocation9], 64, 64, 4
        $region32: #{tpu_custom_call.1} parent=11 // pred_fallthru
          _
        // Predicated region
        $region33: #{tpu_custom_call.1} parent=11 // pred_check
          %p423 = pneg %p185
        $region34: #{tpu_custom_call.1} parent=11 // pred_check_branch
          %425 = sbr.rel (%p423) target = $region36
        $region35: #{tpu_custom_call.1} parent=11 // pred_region
          _
        $region36: #{tpu_custom_call.1} parent=11 // pred_fallthru
          _
        // Predicated region
        $region37: #{tpu_custom_call.1} parent=11 // pred_check
          %p426 = pneg %p206
        $region38: #{tpu_custom_call.1} parent=11 // pred_check_branch
          %428 = sbr.rel (%p426) target = $region40
        $region39: #{tpu_custom_call.1} parent=11 // pred_region
          %s430 = ssub.s32 1024, 1024
          %431 = vsyncadd [#allocation9], %s430
          %s432 = sshll.u32 [#allocation10], 4
          %s433 = int_to_ptr.vmem [resolvable:$true] %s432
          %438 = dma.hbm_to_vmem [thread:$0]  %s7, 1024, %s433, [#allocation9], 64, 64, 4
        $region40: #{tpu_custom_call.1} parent=11 // pred_fallthru
          _
        // Predicated region
        $region41: #{tpu_custom_call.1} parent=11 // pred_check
          %p439 = pneg %p227
        $region42: #{tpu_custom_call.1} parent=11 // pred_check_branch
          %441 = sbr.rel (%p439) target = $region44
        $region43: #{tpu_custom_call.1} parent=11 // pred_region
          _
        $region44: #{tpu_custom_call.1} parent=11 // pred_fallthru
          _
        // Predicated region
        $region45: #{tpu_custom_call.1} parent=11 // pred_check
          %p442 = pneg %p248
        $region46: #{tpu_custom_call.1} parent=11 // pred_check_branch
          %444 = sbr.rel (%p442) target = $region48
        $region47: #{tpu_custom_call.1} parent=11 // pred_region
          %s446 = ssub.s32 1024, 1024
          %447 = vsyncadd [#allocation12], %s446
          %s448 = sshll.u32 [#allocation11], 4
          %s449 = int_to_ptr.vmem [resolvable:$true] %s448
          %454 = dma.hbm_to_vmem [thread:$0]  %s9, 1024, %s449, [#allocation12], 64, 64, 4
        $region48: #{tpu_custom_call.1} parent=11 // pred_fallthru
          _
        // Predicated region
        $region49: #{tpu_custom_call.1} parent=11 // pred_check
          %p455 = pneg %p269
        $region50: #{tpu_custom_call.1} parent=11 // pred_check_branch
          %457 = sbr.rel (%p455) target = $region52
        $region51: #{tpu_custom_call.1} parent=11 // pred_region
          _
        $region52: #{tpu_custom_call.1} parent=11 // pred_fallthru
          _
        // Predicated region
        $region53: #{tpu_custom_call.1} parent=11 // pred_check
          %p458 = pneg %p290
        $region54: #{tpu_custom_call.1} parent=11 // pred_check_branch
          %460 = sbr.rel (%p458) target = $region56
        $region55: #{tpu_custom_call.1} parent=11 // pred_region
          %s462 = ssub.s32 2048, 2048
          %463 = vsyncadd [#allocation12], %s462
          %s464 = sshll.u32 [#allocation13], 4
          %s465 = int_to_ptr.vmem [resolvable:$true] %s464
          %470 = dma.hbm_to_vmem [thread:$0]  %s11, 2048, %s465, [#allocation12], 128, 128, 8
        $region56: #{tpu_custom_call.1} parent=11 // pred_fallthru
          _
        // Predicated region
        $region57: #{tpu_custom_call.1} parent=11 // pred_check
          %p471 = pneg %p311
        $region58: #{tpu_custom_call.1} parent=11 // pred_check_branch
          %473 = sbr.rel (%p471) target = $region60
        $region59: #{tpu_custom_call.1} parent=11 // pred_region
          _
        $region60: #{tpu_custom_call.1} parent=11 // pred_fallthru
          _
      $region12: #{tpu_custom_call.1} parent=5 // pred_fallthru
        _
      %p474 = scmp.lt.s32.totalorder %s33, 2
      // Predicated region
      $region61: #{tpu_custom_call.1} parent=5 // pred_check
        %p475 = pneg %p474
      $region62: #{tpu_custom_call.1} parent=5 // pred_check_branch
        %477 = sbr.rel (%p475) target = $region64
      $region63: #{tpu_custom_call.1} parent=5 // pred_region
        // Predicated region
        $region65: #{tpu_custom_call.1} parent=63 // pred_check
          %p478 = pneg %p53
        $region66: #{tpu_custom_call.1} parent=63 // pred_check_branch
          %480 = sbr.rel (%p478) target = $region68
        $region67: #{tpu_custom_call.1} parent=63 // pred_region
          %s481 = sand.u32 %s43, 1
          %s482 = scalar_lea.sflag [#allocation3], %s481
          %s483 = sand.u32 %s43, 1
          %s484 = smul.addr %s483, 256
          %s485 = scalar_lea.vmem [#allocation2], %s484
          %s486 = smul.u32 16, %s33
          %s488 = ssub.s32 4096, 4096
          %489 = vsyncadd %s482, %s488
          %s490 = smul.addr %s486, 2
          %s491 = smul.addr %s490, 128
          %s492 = scalar_lea.hbm %s0, %s491
          %s493 = sshll.u32 %s485, 4
          %s494 = int_to_ptr.vmem [resolvable:$true] %s493
          %499 = dma.hbm_to_vmem [thread:$0]  %s492, 4096, %s494, %s482, 256, 256, 16
        $region68: #{tpu_custom_call.1} parent=63 // pred_fallthru
          _
      $region64: #{tpu_custom_call.1} parent=5 // pred_fallthru
        _
      %p500 = scmp.le.s32.totalorder 1, %s33
      %p501 = scmp.lt.s32.totalorder %s33, 3
      %p502 = pnand %p500, %p501
      %p503 = pneg %p502
      // Predicated region
      $region69: #{tpu_custom_call.1} parent=5 // pred_check
        _
      $region70: #{tpu_custom_call.1} parent=5 // pred_check_branch
        %505 = sbr.rel (%p502) target = $region72
      $region71: #{tpu_custom_call.1} parent=5 // pred_region
        %s506 = ssub.s32 %s33, 1
        %s507 = sand.u32 %s46, 1
        %s508 = scalar_lea.sflag [#allocation3], %s507
        %s509 = sand.u32 %s46, 1
        %s510 = smul.addr %s509, 256
        %s511 = scalar_lea.vmem [#allocation2], %s510
        // Predicated region
        $region73: #{tpu_custom_call.1} parent=71 // pred_check
          %p512 = pneg %p59
        $region74: #{tpu_custom_call.1} parent=71 // pred_check_branch
          %514 = sbr.rel (%p512) target = $region76
        $region75: #{tpu_custom_call.1} parent=71 // pred_region
          %515 = dma.done %s508, 4096
        $region76: #{tpu_custom_call.1} parent=71 // pred_fallthru
          _
        // Predicated region
        $region77: #{tpu_custom_call.1} parent=71 // pred_check
          %p516 = pneg %p80
        $region78: #{tpu_custom_call.1} parent=71 // pred_check_branch
          %518 = sbr.rel (%p516) target = $region80
        $region79: #{tpu_custom_call.1} parent=71 // pred_region
          %519 = dma.done [#allocation6], 2048
        $region80: #{tpu_custom_call.1} parent=71 // pred_fallthru
          _
        // Predicated region
        $region81: #{tpu_custom_call.1} parent=71 // pred_check
          %p520 = pneg %p122
        $region82: #{tpu_custom_call.1} parent=71 // pred_check_branch
          %522 = sbr.rel (%p520) target = $region84
        $region83: #{tpu_custom_call.1} parent=71 // pred_region
          %523 = dma.done [#allocation6], 1024
        $region84: #{tpu_custom_call.1} parent=71 // pred_fallthru
          _
        // Predicated region
        $region85: #{tpu_custom_call.1} parent=71 // pred_check
          %p524 = pneg %p164
        $region86: #{tpu_custom_call.1} parent=71 // pred_check_branch
          %526 = sbr.rel (%p524) target = $region88
        $region87: #{tpu_custom_call.1} parent=71 // pred_region
          %527 = dma.done [#allocation9], 1024
        $region88: #{tpu_custom_call.1} parent=71 // pred_fallthru
          _
        // Predicated region
        $region89: #{tpu_custom_call.1} parent=71 // pred_check
          %p528 = pneg %p206
        $region90: #{tpu_custom_call.1} parent=71 // pred_check_branch
          %530 = sbr.rel (%p528) target = $region92
        $region91: #{tpu_custom_call.1} parent=71 // pred_region
          %531 = dma.done [#allocation9], 1024
        $region92: #{tpu_custom_call.1} parent=71 // pred_fallthru
          _
        // Predicated region
        $region93: #{tpu_custom_call.1} parent=71 // pred_check
          %p532 = pneg %p248
        $region94: #{tpu_custom_call.1} parent=71 // pred_check_branch
          %534 = sbr.rel (%p532) target = $region96
        $region95: #{tpu_custom_call.1} parent=71 // pred_region
          %535 = dma.done [#allocation12], 1024
        $region96: #{tpu_custom_call.1} parent=71 // pred_fallthru
          _
        // Predicated region
        $region97: #{tpu_custom_call.1} parent=71 // pred_check
          %p536 = pneg %p290
        $region98: #{tpu_custom_call.1} parent=71 // pred_check_branch
          %538 = sbr.rel (%p536) target = $region100
        $region99: #{tpu_custom_call.1} parent=71 // pred_region
          %539 = dma.done [#allocation12], 2048
        $region100: #{tpu_custom_call.1} parent=71 // pred_fallthru
          _
        %s540 = sand.u32 %s46, 1
        %s541 = scalar_lea.sflag [#allocation3], %s540
        %s542 = sand.u32 %s46, 1
        %s543 = smul.addr %s542, 256
        %s544 = scalar_lea.vmem [#allocation2], %s543
        %p545 = pneg %p59
        %p546 = pneg %p56
        %p547 = pneg %p80
        %p548 = pneg %p77
        %p549 = pneg %p101
        %p550 = pneg %p98
        %p551 = pneg %p122
        %p552 = pneg %p119
        %p553 = pneg %p143
        %p554 = pneg %p140
        %p555 = pneg %p164
        %p556 = pneg %p161
        %p557 = pneg %p185
        %p558 = pneg %p182
        %p559 = pneg %p206
        %p560 = pneg %p203
        %p561 = pneg %p227
        %p562 = pneg %p224
        %p563 = pneg %p248
        %p564 = pneg %p245
        %p565 = pneg %p269
        %p566 = pneg %p266
        %p567 = pneg %p290
        %p568 = pneg %p287
        %p569 = pneg %p311
        %p570 = pneg %p308
        %p571 = pneg %p337
        %p572 = pneg %p334
        %s573 = sand.u32 %s324, 1
        %s574 = scalar_lea.sflag [#allocation4], %s573
        %s575 = sand.u32 %s324, 1
        %s576 = smul.addr %s575, 256
        %s577 = scalar_lea.vmem [#allocation14], %s576
        %p578 = pneg %p363
        %p579 = pneg %p360
        %s580 = sand.u32 %s350, 1
        %s581 = scalar_lea.sflag [#allocation16], %s580
        %s582 = sand.u32 %s350, 1
        %s583 = smul.addr %s582, 128
        %s584 = scalar_lea.vmem [#allocation15], %s583
        %s585 = smul.u32 16, %s38
        %s586 = smul.u32 16, %s38
        %s587 = smul.u32 16, %s38
        %v589 = vld [vmem:[%s511] sm:$0xff]
        %v590 = vld [vmem:[%s511 + $0x8] sm:$0xff]
        %v591 = vld [vmem:[%s511 + $0x10] sm:$0xff]
        %v592 = vld [vmem:[%s511 + $0x18] sm:$0xff]
        %v593 = vld [vmem:[%s511 + $0x20] sm:$0xff]
        %v594 = vld [vmem:[%s511 + $0x28] sm:$0xff]
        %v595 = vld [vmem:[%s511 + $0x30] sm:$0xff]
        %v596 = vld [vmem:[%s511 + $0x38] sm:$0xff]
        %v597 = vld [vmem:[%s511 + $0x40] sm:$0xff]
        %v598 = vld [vmem:[%s511 + $0x48] sm:$0xff]
        %v599 = vld [vmem:[%s511 + $0x50] sm:$0xff]
        %v600 = vld [vmem:[%s511 + $0x58] sm:$0xff]
        %v601 = vld [vmem:[%s511 + $0x60] sm:$0xff]
        %v602 = vld [vmem:[%s511 + $0x68] sm:$0xff]
        %v603 = vld [vmem:[%s511 + $0x70] sm:$0xff]
        %v604 = vld [vmem:[%s511 + $0x78] sm:$0xff]
        %v605 = vld [vmem:[%s511 + $0x80] sm:$0xff]
        %v606 = vld [vmem:[%s511 + $0x88] sm:$0xff]
        %v607 = vld [vmem:[%s511 + $0x90] sm:$0xff]
        %v608 = vld [vmem:[%s511 + $0x98] sm:$0xff]
        %v609 = vld [vmem:[%s511 + $0xa0] sm:$0xff]
        %v610 = vld [vmem:[%s511 + $0xa8] sm:$0xff]
        %v611 = vld [vmem:[%s511 + $0xb0] sm:$0xff]
        %v612 = vld [vmem:[%s511 + $0xb8] sm:$0xff]
        %v613 = vld [vmem:[%s511 + $0xc0] sm:$0xff]
        %v614 = vld [vmem:[%s511 + $0xc8] sm:$0xff]
        %v615 = vld [vmem:[%s511 + $0xd0] sm:$0xff]
        %v616 = vld [vmem:[%s511 + $0xd8] sm:$0xff]
        %v617 = vld [vmem:[%s511 + $0xe0] sm:$0xff]
        %v618 = vld [vmem:[%s511 + $0xe8] sm:$0xff]
        %v619 = vld [vmem:[%s511 + $0xf0] sm:$0xff]
        %v620 = vld [vmem:[%s511 + $0xf8] sm:$0xff]
        %v621 = vpack.c.bf16 %v591, %v589
        %v622 = vpack.c.bf16 %v592, %v590
        %v623 = vpack.c.bf16 %v595, %v593
        %v624 = vpack.c.bf16 %v596, %v594
        %v625 = vpack.c.bf16 %v599, %v597
        %v626 = vpack.c.bf16 %v600, %v598
        %v627 = vpack.c.bf16 %v603, %v601
        %v628 = vpack.c.bf16 %v604, %v602
        %v629 = vpack.c.bf16 %v607, %v605
        %v630 = vpack.c.bf16 %v608, %v606
        %v631 = vpack.c.bf16 %v611, %v609
        %v632 = vpack.c.bf16 %v612, %v610
        %v633 = vpack.c.bf16 %v615, %v613
        %v634 = vpack.c.bf16 %v616, %v614
        %v635 = vpack.c.bf16 %v619, %v617
        %v636 = vpack.c.bf16 %v620, %v618
        %v637 = vld [vmem:[#allocation5] sm:$0xf]
        %v638 = vld [vmem:[#allocation5 + $0x4] sm:$0xf]
        %v639 = vld [vmem:[#allocation5 + $0x8] sm:$0xf]
        %v640 = vld [vmem:[#allocation5 + $0xc] sm:$0xf]
        %v641 = vld [vmem:[#allocation5 + $0x10] sm:$0xf]
        %v642 = vld [vmem:[#allocation5 + $0x14] sm:$0xf]
        %v643 = vld [vmem:[#allocation5 + $0x18] sm:$0xf]
        %v644 = vld [vmem:[#allocation5 + $0x1c] sm:$0xf]
        %v645 = vld [vmem:[#allocation5 + $0x20] sm:$0xf]
        %v646 = vld [vmem:[#allocation5 + $0x24] sm:$0xf]
        %v647 = vld [vmem:[#allocation5 + $0x28] sm:$0xf]
        %v648 = vld [vmem:[#allocation5 + $0x2c] sm:$0xf]
        %v649 = vld [vmem:[#allocation5 + $0x30] sm:$0xf]
        %v650 = vld [vmem:[#allocation5 + $0x34] sm:$0xf]
        %v651 = vld [vmem:[#allocation5 + $0x38] sm:$0xf]
        %v652 = vld [vmem:[#allocation5 + $0x3c] sm:$0xf]
        %v653 = vld [vmem:[#allocation5 + $0x40] sm:$0xf]
        %v654 = vld [vmem:[#allocation5 + $0x44] sm:$0xf]
        %v655 = vld [vmem:[#allocation5 + $0x48] sm:$0xf]
        %v656 = vld [vmem:[#allocation5 + $0x4c] sm:$0xf]
        %v657 = vld [vmem:[#allocation5 + $0x50] sm:$0xf]
        %v658 = vld [vmem:[#allocation5 + $0x54] sm:$0xf]
        %v659 = vld [vmem:[#allocation5 + $0x58] sm:$0xf]
        %v660 = vld [vmem:[#allocation5 + $0x5c] sm:$0xf]
        %v661 = vld [vmem:[#allocation5 + $0x60] sm:$0xf]
        %v662 = vld [vmem:[#allocation5 + $0x64] sm:$0xf]
        %v663 = vld [vmem:[#allocation5 + $0x68] sm:$0xf]
        %v664 = vld [vmem:[#allocation5 + $0x6c] sm:$0xf]
        %v665 = vld [vmem:[#allocation5 + $0x70] sm:$0xf]
        %v666 = vld [vmem:[#allocation5 + $0x74] sm:$0xf]
        %v667 = vld [vmem:[#allocation5 + $0x78] sm:$0xf]
        %v668 = vld [vmem:[#allocation5 + $0x7c] sm:$0xf]
        %v669 = vld [vmem:[%s2] sm:$0x1]
        %v671 = vlaneseq
        %v672 = vshrl.u32 %v671, 7
        %v673 = vsub.s32 0, %v672
        %v674 = vrot.slane %v669, %v673
        %v708 = vunpack.c.l.b16 %v637
        %v709 = vunpack.c.l.b16 %v638
        %v710 = vunpack.c.l.b16 %v639
        %v711 = vunpack.c.l.b16 %v640
        %v712 = vunpack.c.l.b16 %v641
        %v713 = vunpack.c.l.b16 %v642
        %v714 = vunpack.c.l.b16 %v643
        %v715 = vunpack.c.l.b16 %v644
        %v716 = vunpack.c.l.b16 %v645
        %v717 = vunpack.c.l.b16 %v646
        %v718 = vunpack.c.l.b16 %v647
        %v719 = vunpack.c.l.b16 %v648
        %v720 = vunpack.c.l.b16 %v649
        %v721 = vunpack.c.l.b16 %v650
        %v722 = vunpack.c.l.b16 %v651
        %v723 = vunpack.c.l.b16 %v652
        %v724 = vunpack.c.l.b16 %v653
        %v725 = vunpack.c.l.b16 %v654
        %v726 = vunpack.c.l.b16 %v655
        %v727 = vunpack.c.l.b16 %v656
        %v728 = vunpack.c.l.b16 %v657
        %v729 = vunpack.c.l.b16 %v658
        %v730 = vunpack.c.l.b16 %v659
        %v731 = vunpack.c.l.b16 %v660
        %v732 = vunpack.c.l.b16 %v661
        %v733 = vunpack.c.l.b16 %v662
        %v734 = vunpack.c.l.b16 %v663
        %v735 = vunpack.c.l.b16 %v664
        %v736 = vunpack.c.l.b16 %v665
        %v737 = vunpack.c.l.b16 %v666
        %v738 = vunpack.c.l.b16 %v667
        %v739 = vunpack.c.l.b16 %v668
        %v740 = vpack.c.b16 %v709, %v708
        %v741 = vpack.c.b16 %v711, %v710
        %v742 = vpack.c.b16 %v713, %v712
        %v743 = vpack.c.b16 %v715, %v714
        %v744 = vpack.c.b16 %v717, %v716
        %v745 = vpack.c.b16 %v719, %v718
        %v746 = vpack.c.b16 %v721, %v720
        %v747 = vpack.c.b16 %v723, %v722
        %v748 = vpack.c.b16 %v725, %v724
        %v749 = vpack.c.b16 %v727, %v726
        %v750 = vpack.c.b16 %v729, %v728
        %v751 = vpack.c.b16 %v731, %v730
        %v752 = vpack.c.b16 %v733, %v732
        %v753 = vpack.c.b16 %v735, %v734
        %v754 = vpack.c.b16 %v737, %v736
        %v755 = vpack.c.b16 %v739, %v738
        %772 = vmatprep.subr.bf16.mxu0 0
        %773 = vmatpush1.bf16.msra.mxu0 %v740
        %774 = vmatprep.subr.bf16.mxu0 0
        %775 = vmatpush1.bf16.msra.mxu0 %v741
        %776 = vmatprep.subr.bf16.mxu0 0
        %777 = vmatpush1.bf16.msra.mxu0 %v742
        %778 = vmatprep.subr.bf16.mxu0 0
        %779 = vmatpush1.bf16.msra.mxu0 %v743
        %780 = vmatprep.subr.bf16.mxu0 0
        %781 = vmatpush1.bf16.msra.mxu0 %v744
        %782 = vmatprep.subr.bf16.mxu0 0
        %783 = vmatpush1.bf16.msra.mxu0 %v745
        %784 = vmatprep.subr.bf16.mxu0 0
        %785 = vmatpush1.bf16.msra.mxu0 %v746
        %786 = vmatprep.subr.bf16.mxu0 0
        %787 = vmatpush1.bf16.msra.mxu0 %v747
        %788 = vmatprep.subr.bf16.mxu0 0
        %789 = vmatpush1.bf16.msra.mxu0 %v748
        %790 = vmatprep.subr.bf16.mxu0 0
        %791 = vmatpush1.bf16.msra.mxu0 %v749
        %792 = vmatprep.subr.bf16.mxu0 0
        %793 = vmatpush1.bf16.msra.mxu0 %v750
        %794 = vmatprep.subr.bf16.mxu0 0
        %795 = vmatpush1.bf16.msra.mxu0 %v751
        %796 = vmatprep.subr.bf16.mxu0 0
        %797 = vmatpush1.bf16.msra.mxu0 %v752
        %798 = vmatprep.subr.bf16.mxu0 0
        %799 = vmatpush1.bf16.msra.mxu0 %v753
        %800 = vmatprep.subr.bf16.mxu0 0
        %801 = vmatpush1.bf16.msra.mxu0 %v754
        %802 = vmatprep.subr.bf16.mxu0 0
        %803 = vmatpush1.bf16.msra.mxu0 %v755
        %804 = vmatprep.mubr.bf16.mxu0 %v622
        %805 = vmatmul.mubr.bf16.gmra.mrb[0].mxu0 %v621
        %v806 = vpop.f32.mrb[0].mxu0
        %v807 = vadd.f32 %v674, %v806
        %v808 = vpop.f32.mrb[0].mxu0
        %v809 = vpop.f32.mrb[0].mxu0
        %v810 = vadd.f32 %v674, %v809
        %v811 = vpop.f32.mrb[0].mxu0
        %812 = vmatprep.mubr.bf16.mxu0 %v624
        %813 = vmatmul.mubr.bf16.gmra.mrb[0].mxu0 %v623
        %v814 = vpop.f32.mrb[0].mxu0
        %v815 = vadd.f32 %v674, %v814
        %v816 = vpop.f32.mrb[0].mxu0
        %v817 = vpop.f32.mrb[0].mxu0
        %v818 = vadd.f32 %v674, %v817
        %v819 = vpop.f32.mrb[0].mxu0
        %820 = vmatprep.mubr.bf16.mxu0 %v626
        %821 = vmatmul.mubr.bf16.gmra.mrb[0].mxu0 %v625
        %v822 = vpop.f32.mrb[0].mxu0
        %v823 = vadd.f32 %v674, %v822
        %v824 = vpop.f32.mrb[0].mxu0
        %v825 = vpop.f32.mrb[0].mxu0
        %v826 = vadd.f32 %v674, %v825
        %v827 = vpop.f32.mrb[0].mxu0
        %828 = vmatprep.mubr.bf16.mxu0 %v628
        %829 = vmatmul.mubr.bf16.gmra.mrb[0].mxu0 %v627
        %v830 = vpop.f32.mrb[0].mxu0
        %v831 = vadd.f32 %v674, %v830
        %v832 = vpop.f32.mrb[0].mxu0
        %v833 = vpop.f32.mrb[0].mxu0
        %v834 = vadd.f32 %v674, %v833
        %v835 = vpop.f32.mrb[0].mxu0
        %836 = vmatprep.mubr.bf16.mxu0 %v630
        %837 = vmatmul.mubr.bf16.gmra.mrb[0].mxu0 %v629
        %v838 = vpop.f32.mrb[0].mxu0
        %v839 = vadd.f32 %v674, %v838
        %v840 = vpop.f32.mrb[0].mxu0
        %v841 = vpop.f32.mrb[0].mxu0
        %v842 = vadd.f32 %v674, %v841
        %v843 = vpop.f32.mrb[0].mxu0
        %844 = vmatprep.mubr.bf16.mxu0 %v632
        %845 = vmatmul.mubr.bf16.gmra.mrb[0].mxu0 %v631
        %v846 = vpop.f32.mrb[0].mxu0
        %v847 = vadd.f32 %v674, %v846
        %v848 = vpop.f32.mrb[0].mxu0
        %v849 = vpop.f32.mrb[0].mxu0
        %v850 = vadd.f32 %v674, %v849
        %v851 = vpop.f32.mrb[0].mxu0
        %852 = vmatprep.mubr.bf16.mxu0 %v634
        %853 = vmatmul.mubr.bf16.gmra.mrb[0].mxu0 %v633
        %v854 = vpop.f32.mrb[0].mxu0
        %v855 = vadd.f32 %v674, %v854
        %v856 = vpop.f32.mrb[0].mxu0
        %v857 = vpop.f32.mrb[0].mxu0
        %v858 = vadd.f32 %v674, %v857
        %v859 = vpop.f32.mrb[0].mxu0
        %860 = vmatprep.mubr.bf16.mxu0 %v636
        %861 = vmatmul.mubr.bf16.gmra.mrb[0].mxu0 %v635
        %v862 = vpop.f32.mrb[0].mxu0
        %v863 = vadd.f32 %v674, %v862
        %v864 = vpop.f32.mrb[0].mxu0
        %v865 = vpop.f32.mrb[0].mxu0
        %v866 = vadd.f32 %v674, %v865
        %v867 = vpop.f32.mrb[0].mxu0
        %868 = vdwg.mxu0
        %v869 = vtanh.pop %v807
        %v870 = vtanh.pop %v810
        %v871 = vtanh.pop %v815
        %v872 = vtanh.pop %v818
        %v873 = vtanh.pop %v823
        %v874 = vtanh.pop %v826
        %v875 = vtanh.pop %v831
        %v876 = vtanh.pop %v834
        %v877 = vtanh.pop %v839
        %v878 = vtanh.pop %v842
        %v879 = vtanh.pop %v847
        %v880 = vtanh.pop %v850
        %v881 = vtanh.pop %v855
        %v882 = vtanh.pop %v858
        %v883 = vtanh.pop %v863
        %v884 = vtanh.pop %v866
        %v885 = vpack.c.bf16 %v870, %v869
        %v886 = vpack.c.bf16 %v872, %v871
        %v887 = vpack.c.bf16 %v874, %v873
        %v888 = vpack.c.bf16 %v876, %v875
        %v889 = vpack.c.bf16 %v878, %v877
        %v890 = vpack.c.bf16 %v880, %v879
        %v891 = vpack.c.bf16 %v882, %v881
        %v892 = vpack.c.bf16 %v884, %v883
        %v893 = vld [vmem:[#allocation7] sm:$0xf]
        %v894 = vld [vmem:[#allocation7 + $0x4] sm:$0xf]
        %v895 = vld [vmem:[#allocation7 + $0x8] sm:$0xf]
        %v896 = vld [vmem:[#allocation7 + $0xc] sm:$0xf]
        %v897 = vld [vmem:[#allocation7 + $0x10] sm:$0xf]
        %v898 = vld [vmem:[#allocation7 + $0x14] sm:$0xf]
        %v899 = vld [vmem:[#allocation7 + $0x18] sm:$0xf]
        %v900 = vld [vmem:[#allocation7 + $0x1c] sm:$0xf]
        %v901 = vld [vmem:[#allocation7 + $0x20] sm:$0xf]
        %v902 = vld [vmem:[#allocation7 + $0x24] sm:$0xf]
        %v903 = vld [vmem:[#allocation7 + $0x28] sm:$0xf]
        %v904 = vld [vmem:[#allocation7 + $0x2c] sm:$0xf]
        %v905 = vld [vmem:[#allocation7 + $0x30] sm:$0xf]
        %v906 = vld [vmem:[#allocation7 + $0x34] sm:$0xf]
        %v907 = vld [vmem:[#allocation7 + $0x38] sm:$0xf]
        %v908 = vld [vmem:[#allocation7 + $0x3c] sm:$0xf]
        %v909 = vld [vmem:[%s4] sm:$0x1]
        %v911 = vlaneseq
        %v912 = vshrl.u32 %v911, 7
        %v913 = vsub.s32 0, %v912
        %v914 = vrot.slane %v909, %v913
        %v932 = vunpack.c.l.b16 %v893
        %v933 = vunpack.c.l.b16 %v894
        %v934 = vunpack.c.l.b16 %v895
        %v935 = vunpack.c.l.b16 %v896
        %v936 = vunpack.c.l.b16 %v897
        %v937 = vunpack.c.l.b16 %v898
        %v938 = vunpack.c.l.b16 %v899
        %v939 = vunpack.c.l.b16 %v900
        %v940 = vunpack.c.l.b16 %v901
        %v941 = vunpack.c.l.b16 %v902
        %v942 = vunpack.c.l.b16 %v903
        %v943 = vunpack.c.l.b16 %v904
        %v944 = vunpack.c.l.b16 %v905
        %v945 = vunpack.c.l.b16 %v906
        %v946 = vunpack.c.l.b16 %v907
        %v947 = vunpack.c.l.b16 %v908
        %v948 = vpack.c.b16 %v933, %v932
        %v949 = vpack.c.b16 %v935, %v934
        %v950 = vpack.c.b16 %v937, %v936
        %v951 = vpack.c.b16 %v939, %v938
        %v952 = vpack.c.b16 %v941, %v940
        %v953 = vpack.c.b16 %v943, %v942
        %v954 = vpack.c.b16 %v945, %v944
        %v955 = vpack.c.b16 %v947, %v946
        %964 = vmatprep.subr.bf16.mxu0 0
        %965 = vmatpush1.bf16.msra.mxu0 %v948
        %966 = vmatprep.subr.bf16.mxu0 0
        %967 = vmatpush1.bf16.msra.mxu0 %v949
        %968 = vmatprep.subr.bf16.mxu0 0
        %969 = vmatpush1.bf16.msra.mxu0 %v950
        %970 = vmatprep.subr.bf16.mxu0 0
        %971 = vmatpush1.bf16.msra.mxu0 %v951
        %972 = vmatprep.subr.bf16.mxu0 0
        %973 = vmatpush1.bf16.msra.mxu0 %v952
        %974 = vmatprep.subr.bf16.mxu0 0
        %975 = vmatpush1.bf16.msra.mxu0 %v953
        %976 = vmatprep.subr.bf16.mxu0 0
        %977 = vmatpush1.bf16.msra.mxu0 %v954
        %978 = vmatprep.subr.bf16.mxu0 0
        %979 = vmatpush1.bf16.msra.mxu0 %v955
        %980 = vmatprep.subr.bf16.mxu0 0
        %981 = vmatpush1.bf16.msra.mxu0 0
        %982 = vmatprep.subr.bf16.mxu0 0
        %983 = vmatpush1.bf16.msra.mxu0 0
        %984 = vmatprep.subr.bf16.mxu0 0
        %985 = vmatpush1.bf16.msra.mxu0 0
        %986 = vmatprep.subr.bf16.mxu0 0
        %987 = vmatpush1.bf16.msra.mxu0 0
        %988 = vmatprep.subr.bf16.mxu0 0
        %989 = vmatpush1.bf16.msra.mxu0 0
        %990 = vmatprep.subr.bf16.mxu0 0
        %991 = vmatpush1.bf16.msra.mxu0 0
        %992 = vmatprep.subr.bf16.mxu0 0
        %993 = vmatpush1.bf16.msra.mxu0 0
        %994 = vmatprep.subr.bf16.mxu0 0
        %995 = vmatpush1.bf16.msra.mxu0 0
        %996 = vmatprep.mubr.bf16.mxu0 0
        %997 = vmatmul.mubr.bf16.gmra.mrb[0].mxu0 %v885
        %v998 = vpop.f32.mrb[0].mxu0
        %v999 = vadd.f32 %v914, %v998
        %v1000 = vpop.f32.mrb[0].mxu0
        %v1001 = vpop.f32.mrb[0].mxu0
        %v1002 = vadd.f32 %v914, %v1001
        %v1003 = vpop.f32.mrb[0].mxu0
        %1004 = vmatprep.mubr.bf16.mxu0 0
        %1005 = vmatmul.mubr.bf16.gmra.mrb[0].mxu0 %v886
        %v1006 = vpop.f32.mrb[0].mxu0
        %v1007 = vadd.f32 %v914, %v1006
        %v1008 = vpop.f32.mrb[0].mxu0
        %v1009 = vpop.f32.mrb[0].mxu0
        %v1010 = vadd.f32 %v914, %v1009
        %v1011 = vpop.f32.mrb[0].mxu0
        %1012 = vmatprep.mubr.bf16.mxu0 0
        %1013 = vmatmul.mubr.bf16.gmra.mrb[0].mxu0 %v887
        %v1014 = vpop.f32.mrb[0].mxu0
        %v1015 = vadd.f32 %v914, %v1014
        %v1016 = vpop.f32.mrb[0].mxu0
        %v1017 = vpop.f32.mrb[0].mxu0
        %v1018 = vadd.f32 %v914, %v1017
        %v1019 = vpop.f32.mrb[0].mxu0
        %1020 = vmatprep.mubr.bf16.mxu0 0
        %1021 = vmatmul.mubr.bf16.gmra.mrb[0].mxu0 %v888
        %v1022 = vpop.f32.mrb[0].mxu0
        %v1023 = vadd.f32 %v914, %v1022
        %v1024 = vpop.f32.mrb[0].mxu0
        %v1025 = vpop.f32.mrb[0].mxu0
        %v1026 = vadd.f32 %v914, %v1025
        %v1027 = vpop.f32.mrb[0].mxu0
        %1028 = vmatprep.mubr.bf16.mxu0 0
        %1029 = vmatmul.mubr.bf16.gmra.mrb[0].mxu0 %v889
        %v1030 = vpop.f32.mrb[0].mxu0
        %v1031 = vadd.f32 %v914, %v1030
        %v1032 = vpop.f32.mrb[0].mxu0
        %v1033 = vpop.f32.mrb[0].mxu0
        %v1034 = vadd.f32 %v914, %v1033
        %v1035 = vpop.f32.mrb[0].mxu0
        %1036 = vmatprep.mubr.bf16.mxu0 0
        %1037 = vmatmul.mubr.bf16.gmra.mrb[0].mxu0 %v890
        %v1038 = vpop.f32.mrb[0].mxu0
        %v1039 = vadd.f32 %v914, %v1038
        %v1040 = vpop.f32.mrb[0].mxu0
        %v1041 = vpop.f32.mrb[0].mxu0
        %v1042 = vadd.f32 %v914, %v1041
        %v1043 = vpop.f32.mrb[0].mxu0
        %1044 = vmatprep.mubr.bf16.mxu0 0
        %1045 = vmatmul.mubr.bf16.gmra.mrb[0].mxu0 %v891
        %v1046 = vpop.f32.mrb[0].mxu0
        %v1047 = vadd.f32 %v914, %v1046
        %v1048 = vpop.f32.mrb[0].mxu0
        %v1049 = vpop.f32.mrb[0].mxu0
        %v1050 = vadd.f32 %v914, %v1049
        %v1051 = vpop.f32.mrb[0].mxu0
        %1052 = vmatprep.mubr.bf16.mxu0 0
        %1053 = vmatmul.mubr.bf16.gmra.mrb[0].mxu0 %v892
        %v1054 = vpop.f32.mrb[0].mxu0
        %v1055 = vadd.f32 %v914, %v1054
        %v1056 = vpop.f32.mrb[0].mxu0
        %v1057 = vpop.f32.mrb[0].mxu0
        %v1058 = vadd.f32 %v914, %v1057
        %v1059 = vpop.f32.mrb[0].mxu0
        %1060 = vdwg.mxu0
        %v1061 = vtanh.pop %v999
        %v1062 = vtanh.pop %v1002
        %v1063 = vtanh.pop %v1007
        %v1064 = vtanh.pop %v1010
        %v1065 = vtanh.pop %v1015
        %v1066 = vtanh.pop %v1018
        %v1067 = vtanh.pop %v1023
        %v1068 = vtanh.pop %v1026
        %v1069 = vtanh.pop %v1031
        %v1070 = vtanh.pop %v1034
        %v1071 = vtanh.pop %v1039
        %v1072 = vtanh.pop %v1042
        %v1073 = vtanh.pop %v1047
        %v1074 = vtanh.pop %v1050
        %v1075 = vtanh.pop %v1055
        %v1076 = vtanh.pop %v1058
        %v1077 = vpack.c.bf16 %v1062, %v1061
        %v1078 = vpack.c.bf16 %v1064, %v1063
        %v1079 = vpack.c.bf16 %v1066, %v1065
        %v1080 = vpack.c.bf16 %v1068, %v1067
        %v1081 = vpack.c.bf16 %v1070, %v1069
        %v1082 = vpack.c.bf16 %v1072, %v1071
        %v1083 = vpack.c.bf16 %v1074, %v1073
        %v1084 = vpack.c.bf16 %v1076, %v1075
        %v1085 = vld [vmem:[#allocation8] sm:$0xf]
        %v1086 = vld [vmem:[#allocation8 + $0x4] sm:$0xf]
        %v1087 = vld [vmem:[#allocation8 + $0x8] sm:$0xf]
        %v1088 = vld [vmem:[#allocation8 + $0xc] sm:$0xf]
        %v1089 = vld [vmem:[#allocation8 + $0x10] sm:$0xf]
        %v1090 = vld [vmem:[#allocation8 + $0x14] sm:$0xf]
        %v1091 = vld [vmem:[#allocation8 + $0x18] sm:$0xf]
        %v1092 = vld [vmem:[#allocation8 + $0x1c] sm:$0xf]
        %v1093 = vld [vmem:[#allocation8 + $0x20] sm:$0xf]
        %v1094 = vld [vmem:[#allocation8 + $0x24] sm:$0xf]
        %v1095 = vld [vmem:[#allocation8 + $0x28] sm:$0xf]
        %v1096 = vld [vmem:[#allocation8 + $0x2c] sm:$0xf]
        %v1097 = vld [vmem:[#allocation8 + $0x30] sm:$0xf]
        %v1098 = vld [vmem:[#allocation8 + $0x34] sm:$0xf]
        %v1099 = vld [vmem:[#allocation8 + $0x38] sm:$0xf]
        %v1100 = vld [vmem:[#allocation8 + $0x3c] sm:$0xf]
        %v1101 = vld [vmem:[%s6] sm:$0x1]
        %v1103 = vlaneseq
        %v1104 = vshrl.u32 %v1103, 7
        %v1105 = vsub.s32 0, %v1104
        %v1106 = vrot.slane %v1101, %v1105
        %v1124 = vunpack.c.l.b16 %v1085
        %v1125 = vunpack.c.l.b16 %v1086
        %v1126 = vunpack.c.l.b16 %v1087
        %v1127 = vunpack.c.l.b16 %v1088
        %v1128 = vunpack.c.l.b16 %v1089
        %v1129 = vunpack.c.l.b16 %v1090
        %v1130 = vunpack.c.l.b16 %v1091
        %v1131 = vunpack.c.l.b16 %v1092
        %v1132 = vunpack.c.l.b16 %v1093
        %v1133 = vunpack.c.l.b16 %v1094
        %v1134 = vunpack.c.l.b16 %v1095
        %v1135 = vunpack.c.l.b16 %v1096
        %v1136 = vunpack.c.l.b16 %v1097
        %v1137 = vunpack.c.l.b16 %v1098
        %v1138 = vunpack.c.l.b16 %v1099
        %v1139 = vunpack.c.l.b16 %v1100
        %v1140 = vpack.c.b16 %v1125, %v1124
        %v1141 = vpack.c.b16 %v1127, %v1126
        %v1142 = vpack.c.b16 %v1129, %v1128
        %v1143 = vpack.c.b16 %v1131, %v1130
        %v1144 = vpack.c.b16 %v1133, %v1132
        %v1145 = vpack.c.b16 %v1135, %v1134
        %v1146 = vpack.c.b16 %v1137, %v1136
        %v1147 = vpack.c.b16 %v1139, %v1138
        %1156 = vmatprep.subr.bf16.mxu0 0
        %1157 = vmatpush1.bf16.msra.mxu0 %v1140
        %1158 = vmatprep.subr.bf16.mxu0 0
        %1159 = vmatpush1.bf16.msra.mxu0 %v1141
        %1160 = vmatprep.subr.bf16.mxu0 0
        %1161 = vmatpush1.bf16.msra.mxu0 %v1142
        %1162 = vmatprep.subr.bf16.mxu0 0
        %1163 = vmatpush1.bf16.msra.mxu0 %v1143
        %1164 = vmatprep.subr.bf16.mxu0 0
        %1165 = vmatpush1.bf16.msra.mxu0 %v1144
        %1166 = vmatprep.subr.bf16.mxu0 0
        %1167 = vmatpush1.bf16.msra.mxu0 %v1145
        %1168 = vmatprep.subr.bf16.mxu0 0
        %1169 = vmatpush1.bf16.msra.mxu0 %v1146
        %1170 = vmatprep.subr.bf16.mxu0 0
        %1171 = vmatpush1.bf16.msra.mxu0 %v1147
        %1172 = vmatprep.subr.bf16.mxu0 0
        %1173 = vmatpush1.bf16.msra.mxu0 0
        %1174 = vmatprep.subr.bf16.mxu0 0
        %1175 = vmatpush1.bf16.msra.mxu0 0
        %1176 = vmatprep.subr.bf16.mxu0 0
        %1177 = vmatpush1.bf16.msra.mxu0 0
        %1178 = vmatprep.subr.bf16.mxu0 0
        %1179 = vmatpush1.bf16.msra.mxu0 0
        %1180 = vmatprep.subr.bf16.mxu0 0
        %1181 = vmatpush1.bf16.msra.mxu0 0
        %1182 = vmatprep.subr.bf16.mxu0 0
        %1183 = vmatpush1.bf16.msra.mxu0 0
        %1184 = vmatprep.subr.bf16.mxu0 0
        %1185 = vmatpush1.bf16.msra.mxu0 0
        %1186 = vmatprep.subr.bf16.mxu0 0
        %1187 = vmatpush1.bf16.msra.mxu0 0
        %1188 = vmatprep.mubr.bf16.mxu0 0
        %1189 = vmatmul.mubr.bf16.gmra.mrb[0].mxu0 %v1077
        %v1190 = vpop.f32.mrb[0].mxu0
        %v1191 = vadd.f32 %v1106, %v1190
        %v1192 = vpop.f32.mrb[0].mxu0
        %v1193 = vpop.f32.mrb[0].mxu0
        %v1194 = vadd.f32 %v1106, %v1193
        %v1195 = vpop.f32.mrb[0].mxu0
        %1196 = vmatprep.mubr.bf16.mxu0 0
        %1197 = vmatmul.mubr.bf16.gmra.mrb[0].mxu0 %v1078
        %v1198 = vpop.f32.mrb[0].mxu0
        %v1199 = vadd.f32 %v1106, %v1198
        %v1200 = vpop.f32.mrb[0].mxu0
        %v1201 = vpop.f32.mrb[0].mxu0
        %v1202 = vadd.f32 %v1106, %v1201
        %v1203 = vpop.f32.mrb[0].mxu0
        %1204 = vmatprep.mubr.bf16.mxu0 0
        %1205 = vmatmul.mubr.bf16.gmra.mrb[0].mxu0 %v1079
        %v1206 = vpop.f32.mrb[0].mxu0
        %v1207 = vadd.f32 %v1106, %v1206
        %v1208 = vpop.f32.mrb[0].mxu0
        %v1209 = vpop.f32.mrb[0].mxu0
        %v1210 = vadd.f32 %v1106, %v1209
        %v1211 = vpop.f32.mrb[0].mxu0
        %1212 = vmatprep.mubr.bf16.mxu0 0
        %1213 = vmatmul.mubr.bf16.gmra.mrb[0].mxu0 %v1080
        %v1214 = vpop.f32.mrb[0].mxu0
        %v1215 = vadd.f32 %v1106, %v1214
        %v1216 = vpop.f32.mrb[0].mxu0
        %v1217 = vpop.f32.mrb[0].mxu0
        %v1218 = vadd.f32 %v1106, %v1217
        %v1219 = vpop.f32.mrb[0].mxu0
        %1220 = vmatprep.mubr.bf16.mxu0 0
        %1221 = vmatmul.mubr.bf16.gmra.mrb[0].mxu0 %v1081
        %v1222 = vpop.f32.mrb[0].mxu0
        %v1223 = vadd.f32 %v1106, %v1222
        %v1224 = vpop.f32.mrb[0].mxu0
        %v1225 = vpop.f32.mrb[0].mxu0
        %v1226 = vadd.f32 %v1106, %v1225
        %v1227 = vpop.f32.mrb[0].mxu0
        %1228 = vmatprep.mubr.bf16.mxu0 0
        %1229 = vmatmul.mubr.bf16.gmra.mrb[0].mxu0 %v1082
        %v1230 = vpop.f32.mrb[0].mxu0
        %v1231 = vadd.f32 %v1106, %v1230
        %v1232 = vpop.f32.mrb[0].mxu0
        %v1233 = vpop.f32.mrb[0].mxu0
        %v1234 = vadd.f32 %v1106, %v1233
        %v1235 = vpop.f32.mrb[0].mxu0
        %1236 = vmatprep.mubr.bf16.mxu0 0
        %1237 = vmatmul.mubr.bf16.gmra.mrb[0].mxu0 %v1083
        %v1238 = vpop.f32.mrb[0].mxu0
        %v1239 = vadd.f32 %v1106, %v1238
        %v1240 = vpop.f32.mrb[0].mxu0
        %v1241 = vpop.f32.mrb[0].mxu0
        %v1242 = vadd.f32 %v1106, %v1241
        %v1243 = vpop.f32.mrb[0].mxu0
        %1244 = vmatprep.mubr.bf16.mxu0 0
        %1245 = vmatmul.mubr.bf16.gmra.mrb[0].mxu0 %v1084
        %v1246 = vpop.f32.mrb[0].mxu0
        %v1247 = vadd.f32 %v1106, %v1246
        %v1248 = vpop.f32.mrb[0].mxu0
        %v1249 = vpop.f32.mrb[0].mxu0
        %v1250 = vadd.f32 %v1106, %v1249
        %v1251 = vpop.f32.mrb[0].mxu0
        %1252 = vdwg.mxu0
        %1253 = vst [vmem:[%s584] sm:$0xff] %v1191
        %1254 = vst [vmem:[%s584 + $0x8] sm:$0xff] %v1194
        %1255 = vst [vmem:[%s584 + $0x10] sm:$0xff] %v1199
        %1256 = vst [vmem:[%s584 + $0x18] sm:$0xff] %v1202
        %1257 = vst [vmem:[%s584 + $0x20] sm:$0xff] %v1207
        %1258 = vst [vmem:[%s584 + $0x28] sm:$0xff] %v1210
        %1259 = vst [vmem:[%s584 + $0x30] sm:$0xff] %v1215
        %1260 = vst [vmem:[%s584 + $0x38] sm:$0xff] %v1218
        %1261 = vst [vmem:[%s584 + $0x40] sm:$0xff] %v1223
        %1262 = vst [vmem:[%s584 + $0x48] sm:$0xff] %v1226
        %1263 = vst [vmem:[%s584 + $0x50] sm:$0xff] %v1231
        %1264 = vst [vmem:[%s584 + $0x58] sm:$0xff] %v1234
        %1265 = vst [vmem:[%s584 + $0x60] sm:$0xff] %v1239
        %1266 = vst [vmem:[%s584 + $0x68] sm:$0xff] %v1242
        %1267 = vst [vmem:[%s584 + $0x70] sm:$0xff] %v1247
        %1268 = vst [vmem:[%s584 + $0x78] sm:$0xff] %v1250
        %v1269 = vpack.c.bf16 %v1194, %v1191
        %v1270 = vpack.c.bf16 %v1202, %v1199
        %v1271 = vpack.c.bf16 %v1210, %v1207
        %v1272 = vpack.c.bf16 %v1218, %v1215
        %v1273 = vpack.c.bf16 %v1226, %v1223
        %v1274 = vpack.c.bf16 %v1234, %v1231
        %v1275 = vpack.c.bf16 %v1242, %v1239
        %v1276 = vpack.c.bf16 %v1250, %v1247
        %v1277 = vld [vmem:[#allocation10] sm:$0xf]
        %v1278 = vld [vmem:[#allocation10 + $0x4] sm:$0xf]
        %v1279 = vld [vmem:[#allocation10 + $0x8] sm:$0xf]
        %v1280 = vld [vmem:[#allocation10 + $0xc] sm:$0xf]
        %v1281 = vld [vmem:[#allocation10 + $0x10] sm:$0xf]
        %v1282 = vld [vmem:[#allocation10 + $0x14] sm:$0xf]
        %v1283 = vld [vmem:[#allocation10 + $0x18] sm:$0xf]
        %v1284 = vld [vmem:[#allocation10 + $0x1c] sm:$0xf]
        %v1285 = vld [vmem:[#allocation10 + $0x20] sm:$0xf]
        %v1286 = vld [vmem:[#allocation10 + $0x24] sm:$0xf]
        %v1287 = vld [vmem:[#allocation10 + $0x28] sm:$0xf]
        %v1288 = vld [vmem:[#allocation10 + $0x2c] sm:$0xf]
        %v1289 = vld [vmem:[#allocation10 + $0x30] sm:$0xf]
        %v1290 = vld [vmem:[#allocation10 + $0x34] sm:$0xf]
        %v1291 = vld [vmem:[#allocation10 + $0x38] sm:$0xf]
        %v1292 = vld [vmem:[#allocation10 + $0x3c] sm:$0xf]
        %v1293 = vld [vmem:[%s8] sm:$0x1]
        %v1295 = vlaneseq
        %v1296 = vshrl.u32 %v1295, 7
        %v1297 = vsub.s32 0, %v1296
        %v1298 = vrot.slane %v1293, %v1297
        %v1316 = vunpack.c.l.b16 %v1277
        %v1317 = vunpack.c.l.b16 %v1278
        %v1318 = vunpack.c.l.b16 %v1279
        %v1319 = vunpack.c.l.b16 %v1280
        %v1320 = vunpack.c.l.b16 %v1281
        %v1321 = vunpack.c.l.b16 %v1282
        %v1322 = vunpack.c.l.b16 %v1283
        %v1323 = vunpack.c.l.b16 %v1284
        %v1324 = vunpack.c.l.b16 %v1285
        %v1325 = vunpack.c.l.b16 %v1286
        %v1326 = vunpack.c.l.b16 %v1287
        %v1327 = vunpack.c.l.b16 %v1288
        %v1328 = vunpack.c.l.b16 %v1289
        %v1329 = vunpack.c.l.b16 %v1290
        %v1330 = vunpack.c.l.b16 %v1291
        %v1331 = vunpack.c.l.b16 %v1292
        %v1332 = vpack.c.b16 %v1317, %v1316
        %v1333 = vpack.c.b16 %v1319, %v1318
        %v1334 = vpack.c.b16 %v1321, %v1320
        %v1335 = vpack.c.b16 %v1323, %v1322
        %v1336 = vpack.c.b16 %v1325, %v1324
        %v1337 = vpack.c.b16 %v1327, %v1326
        %v1338 = vpack.c.b16 %v1329, %v1328
        %v1339 = vpack.c.b16 %v1331, %v1330
        %1348 = vmatprep.subr.bf16.mxu0 0
        %1349 = vmatpush1.bf16.msra.mxu0 %v1332
        %1350 = vmatprep.subr.bf16.mxu0 0
        %1351 = vmatpush1.bf16.msra.mxu0 %v1333
        %1352 = vmatprep.subr.bf16.mxu0 0
        %1353 = vmatpush1.bf16.msra.mxu0 %v1334
        %1354 = vmatprep.subr.bf16.mxu0 0
        %1355 = vmatpush1.bf16.msra.mxu0 %v1335
        %1356 = vmatprep.subr.bf16.mxu0 0
        %1357 = vmatpush1.bf16.msra.mxu0 %v1336
        %1358 = vmatprep.subr.bf16.mxu0 0
        %1359 = vmatpush1.bf16.msra.mxu0 %v1337
        %1360 = vmatprep.subr.bf16.mxu0 0
        %1361 = vmatpush1.bf16.msra.mxu0 %v1338
        %1362 = vmatprep.subr.bf16.mxu0 0
        %1363 = vmatpush1.bf16.msra.mxu0 %v1339
        %1364 = vmatprep.subr.bf16.mxu0 0
        %1365 = vmatpush1.bf16.msra.mxu0 0
        %1366 = vmatprep.subr.bf16.mxu0 0
        %1367 = vmatpush1.bf16.msra.mxu0 0
        %1368 = vmatprep.subr.bf16.mxu0 0
        %1369 = vmatpush1.bf16.msra.mxu0 0
        %1370 = vmatprep.subr.bf16.mxu0 0
        %1371 = vmatpush1.bf16.msra.mxu0 0
        %1372 = vmatprep.subr.bf16.mxu0 0
        %1373 = vmatpush1.bf16.msra.mxu0 0
        %1374 = vmatprep.subr.bf16.mxu0 0
        %1375 = vmatpush1.bf16.msra.mxu0 0
        %1376 = vmatprep.subr.bf16.mxu0 0
        %1377 = vmatpush1.bf16.msra.mxu0 0
        %1378 = vmatprep.subr.bf16.mxu0 0
        %1379 = vmatpush1.bf16.msra.mxu0 0
        %1380 = vmatprep.mubr.bf16.mxu0 0
        %1381 = vmatmul.mubr.bf16.gmra.mrb[0].mxu0 %v1269
        %v1382 = vpop.f32.mrb[0].mxu0
        %v1383 = vadd.f32 %v1298, %v1382
        %v1384 = vpop.f32.mrb[0].mxu0
        %v1385 = vpop.f32.mrb[0].mxu0
        %v1386 = vadd.f32 %v1298, %v1385
        %v1387 = vpop.f32.mrb[0].mxu0
        %1388 = vmatprep.mubr.bf16.mxu0 0
        %1389 = vmatmul.mubr.bf16.gmra.mrb[0].mxu0 %v1270
        %v1390 = vpop.f32.mrb[0].mxu0
        %v1391 = vadd.f32 %v1298, %v1390
        %v1392 = vpop.f32.mrb[0].mxu0
        %v1393 = vpop.f32.mrb[0].mxu0
        %v1394 = vadd.f32 %v1298, %v1393
        %v1395 = vpop.f32.mrb[0].mxu0
        %1396 = vmatprep.mubr.bf16.mxu0 0
        %1397 = vmatmul.mubr.bf16.gmra.mrb[0].mxu0 %v1271
        %v1398 = vpop.f32.mrb[0].mxu0
        %v1399 = vadd.f32 %v1298, %v1398
        %v1400 = vpop.f32.mrb[0].mxu0
        %v1401 = vpop.f32.mrb[0].mxu0
        %v1402 = vadd.f32 %v1298, %v1401
        %v1403 = vpop.f32.mrb[0].mxu0
        %1404 = vmatprep.mubr.bf16.mxu0 0
        %1405 = vmatmul.mubr.bf16.gmra.mrb[0].mxu0 %v1272
        %v1406 = vpop.f32.mrb[0].mxu0
        %v1407 = vadd.f32 %v1298, %v1406
        %v1408 = vpop.f32.mrb[0].mxu0
        %v1409 = vpop.f32.mrb[0].mxu0
        %v1410 = vadd.f32 %v1298, %v1409
        %v1411 = vpop.f32.mrb[0].mxu0
        %1412 = vmatprep.mubr.bf16.mxu0 0
        %1413 = vmatmul.mubr.bf16.gmra.mrb[0].mxu0 %v1273
        %v1414 = vpop.f32.mrb[0].mxu0
        %v1415 = vadd.f32 %v1298, %v1414
        %v1416 = vpop.f32.mrb[0].mxu0
        %v1417 = vpop.f32.mrb[0].mxu0
        %v1418 = vadd.f32 %v1298, %v1417
        %v1419 = vpop.f32.mrb[0].mxu0
        %1420 = vmatprep.mubr.bf16.mxu0 0
        %1421 = vmatmul.mubr.bf16.gmra.mrb[0].mxu0 %v1274
        %v1422 = vpop.f32.mrb[0].mxu0
        %v1423 = vadd.f32 %v1298, %v1422
        %v1424 = vpop.f32.mrb[0].mxu0
        %v1425 = vpop.f32.mrb[0].mxu0
        %v1426 = vadd.f32 %v1298, %v1425
        %v1427 = vpop.f32.mrb[0].mxu0
        %1428 = vmatprep.mubr.bf16.mxu0 0
        %1429 = vmatmul.mubr.bf16.gmra.mrb[0].mxu0 %v1275
        %v1430 = vpop.f32.mrb[0].mxu0
        %v1431 = vadd.f32 %v1298, %v1430
        %v1432 = vpop.f32.mrb[0].mxu0
        %v1433 = vpop.f32.mrb[0].mxu0
        %v1434 = vadd.f32 %v1298, %v1433
        %v1435 = vpop.f32.mrb[0].mxu0
        %1436 = vmatprep.mubr.bf16.mxu0 0
        %1437 = vmatmul.mubr.bf16.gmra.mrb[0].mxu0 %v1276
        %v1438 = vpop.f32.mrb[0].mxu0
        %v1439 = vadd.f32 %v1298, %v1438
        %v1440 = vpop.f32.mrb[0].mxu0
        %v1441 = vpop.f32.mrb[0].mxu0
        %v1442 = vadd.f32 %v1298, %v1441
        %v1443 = vpop.f32.mrb[0].mxu0
        %1444 = vdwg.mxu0
        %v1445 = vtanh.pop %v1383
        %v1446 = vtanh.pop %v1386
        %v1447 = vtanh.pop %v1391
        %v1448 = vtanh.pop %v1394
        %v1449 = vtanh.pop %v1399
        %v1450 = vtanh.pop %v1402
        %v1451 = vtanh.pop %v1407
        %v1452 = vtanh.pop %v1410
        %v1453 = vtanh.pop %v1415
        %v1454 = vtanh.pop %v1418
        %v1455 = vtanh.pop %v1423
        %v1456 = vtanh.pop %v1426
        %v1457 = vtanh.pop %v1431
        %v1458 = vtanh.pop %v1434
        %v1459 = vtanh.pop %v1439
        %v1460 = vtanh.pop %v1442
        %v1461 = vpack.c.bf16 %v1446, %v1445
        %v1462 = vpack.c.bf16 %v1448, %v1447
        %v1463 = vpack.c.bf16 %v1450, %v1449
        %v1464 = vpack.c.bf16 %v1452, %v1451
        %v1465 = vpack.c.bf16 %v1454, %v1453
        %v1466 = vpack.c.bf16 %v1456, %v1455
        %v1467 = vpack.c.bf16 %v1458, %v1457
        %v1468 = vpack.c.bf16 %v1460, %v1459
        %v1469 = vld [vmem:[#allocation11] sm:$0xf]
        %v1470 = vld [vmem:[#allocation11 + $0x4] sm:$0xf]
        %v1471 = vld [vmem:[#allocation11 + $0x8] sm:$0xf]
        %v1472 = vld [vmem:[#allocation11 + $0xc] sm:$0xf]
        %v1473 = vld [vmem:[#allocation11 + $0x10] sm:$0xf]
        %v1474 = vld [vmem:[#allocation11 + $0x14] sm:$0xf]
        %v1475 = vld [vmem:[#allocation11 + $0x18] sm:$0xf]
        %v1476 = vld [vmem:[#allocation11 + $0x1c] sm:$0xf]
        %v1477 = vld [vmem:[#allocation11 + $0x20] sm:$0xf]
        %v1478 = vld [vmem:[#allocation11 + $0x24] sm:$0xf]
        %v1479 = vld [vmem:[#allocation11 + $0x28] sm:$0xf]
        %v1480 = vld [vmem:[#allocation11 + $0x2c] sm:$0xf]
        %v1481 = vld [vmem:[#allocation11 + $0x30] sm:$0xf]
        %v1482 = vld [vmem:[#allocation11 + $0x34] sm:$0xf]
        %v1483 = vld [vmem:[#allocation11 + $0x38] sm:$0xf]
        %v1484 = vld [vmem:[#allocation11 + $0x3c] sm:$0xf]
        %v1485 = vld [vmem:[%s10] sm:$0x1]
        %v1487 = vlaneseq
        %v1488 = vshrl.u32 %v1487, 7
        %v1489 = vsub.s32 0, %v1488
        %v1490 = vrot.slane %v1485, %v1489
        %v1508 = vunpack.c.l.b16 %v1469
        %v1509 = vunpack.c.l.b16 %v1470
        %v1510 = vunpack.c.l.b16 %v1471
        %v1511 = vunpack.c.l.b16 %v1472
        %v1512 = vunpack.c.l.b16 %v1473
        %v1513 = vunpack.c.l.b16 %v1474
        %v1514 = vunpack.c.l.b16 %v1475
        %v1515 = vunpack.c.l.b16 %v1476
        %v1516 = vunpack.c.l.b16 %v1477
        %v1517 = vunpack.c.l.b16 %v1478
        %v1518 = vunpack.c.l.b16 %v1479
        %v1519 = vunpack.c.l.b16 %v1480
        %v1520 = vunpack.c.l.b16 %v1481
        %v1521 = vunpack.c.l.b16 %v1482
        %v1522 = vunpack.c.l.b16 %v1483
        %v1523 = vunpack.c.l.b16 %v1484
        %v1524 = vpack.c.b16 %v1509, %v1508
        %v1525 = vpack.c.b16 %v1511, %v1510
        %v1526 = vpack.c.b16 %v1513, %v1512
        %v1527 = vpack.c.b16 %v1515, %v1514
        %v1528 = vpack.c.b16 %v1517, %v1516
        %v1529 = vpack.c.b16 %v1519, %v1518
        %v1530 = vpack.c.b16 %v1521, %v1520
        %v1531 = vpack.c.b16 %v1523, %v1522
        %1540 = vmatprep.subr.bf16.mxu0 0
        %1541 = vmatpush1.bf16.msra.mxu0 %v1524
        %1542 = vmatprep.subr.bf16.mxu0 0
        %1543 = vmatpush1.bf16.msra.mxu0 %v1525
        %1544 = vmatprep.subr.bf16.mxu0 0
        %1545 = vmatpush1.bf16.msra.mxu0 %v1526
        %1546 = vmatprep.subr.bf16.mxu0 0
        %1547 = vmatpush1.bf16.msra.mxu0 %v1527
        %1548 = vmatprep.subr.bf16.mxu0 0
        %1549 = vmatpush1.bf16.msra.mxu0 %v1528
        %1550 = vmatprep.subr.bf16.mxu0 0
        %1551 = vmatpush1.bf16.msra.mxu0 %v1529
        %1552 = vmatprep.subr.bf16.mxu0 0
        %1553 = vmatpush1.bf16.msra.mxu0 %v1530
        %1554 = vmatprep.subr.bf16.mxu0 0
        %1555 = vmatpush1.bf16.msra.mxu0 %v1531
        %1556 = vmatprep.subr.bf16.mxu0 0
        %1557 = vmatpush1.bf16.msra.mxu0 0
        %1558 = vmatprep.subr.bf16.mxu0 0
        %1559 = vmatpush1.bf16.msra.mxu0 0
        %1560 = vmatprep.subr.bf16.mxu0 0
        %1561 = vmatpush1.bf16.msra.mxu0 0
        %1562 = vmatprep.subr.bf16.mxu0 0
        %1563 = vmatpush1.bf16.msra.mxu0 0
        %1564 = vmatprep.subr.bf16.mxu0 0
        %1565 = vmatpush1.bf16.msra.mxu0 0
        %1566 = vmatprep.subr.bf16.mxu0 0
        %1567 = vmatpush1.bf16.msra.mxu0 0
        %1568 = vmatprep.subr.bf16.mxu0 0
        %1569 = vmatpush1.bf16.msra.mxu0 0
        %1570 = vmatprep.subr.bf16.mxu0 0
        %1571 = vmatpush1.bf16.msra.mxu0 0
        %1572 = vmatprep.mubr.bf16.mxu0 0
        %1573 = vmatmul.mubr.bf16.gmra.mrb[0].mxu0 %v1461
        %v1574 = vpop.f32.mrb[0].mxu0
        %v1575 = vadd.f32 %v1490, %v1574
        %v1576 = vpop.f32.mrb[0].mxu0
        %v1577 = vpop.f32.mrb[0].mxu0
        %v1578 = vadd.f32 %v1490, %v1577
        %v1579 = vpop.f32.mrb[0].mxu0
        %1580 = vmatprep.mubr.bf16.mxu0 0
        %1581 = vmatmul.mubr.bf16.gmra.mrb[0].mxu0 %v1462
        %v1582 = vpop.f32.mrb[0].mxu0
        %v1583 = vadd.f32 %v1490, %v1582
        %v1584 = vpop.f32.mrb[0].mxu0
        %v1585 = vpop.f32.mrb[0].mxu0
        %v1586 = vadd.f32 %v1490, %v1585
        %v1587 = vpop.f32.mrb[0].mxu0
        %1588 = vmatprep.mubr.bf16.mxu0 0
        %1589 = vmatmul.mubr.bf16.gmra.mrb[0].mxu0 %v1463
        %v1590 = vpop.f32.mrb[0].mxu0
        %v1591 = vadd.f32 %v1490, %v1590
        %v1592 = vpop.f32.mrb[0].mxu0
        %v1593 = vpop.f32.mrb[0].mxu0
        %v1594 = vadd.f32 %v1490, %v1593
        %v1595 = vpop.f32.mrb[0].mxu0
        %1596 = vmatprep.mubr.bf16.mxu0 0
        %1597 = vmatmul.mubr.bf16.gmra.mrb[0].mxu0 %v1464
        %v1598 = vpop.f32.mrb[0].mxu0
        %v1599 = vadd.f32 %v1490, %v1598
        %v1600 = vpop.f32.mrb[0].mxu0
        %v1601 = vpop.f32.mrb[0].mxu0
        %v1602 = vadd.f32 %v1490, %v1601
        %v1603 = vpop.f32.mrb[0].mxu0
        %1604 = vmatprep.mubr.bf16.mxu0 0
        %1605 = vmatmul.mubr.bf16.gmra.mrb[0].mxu0 %v1465
        %v1606 = vpop.f32.mrb[0].mxu0
        %v1607 = vadd.f32 %v1490, %v1606
        %v1608 = vpop.f32.mrb[0].mxu0
        %v1609 = vpop.f32.mrb[0].mxu0
        %v1610 = vadd.f32 %v1490, %v1609
        %v1611 = vpop.f32.mrb[0].mxu0
        %1612 = vmatprep.mubr.bf16.mxu0 0
        %1613 = vmatmul.mubr.bf16.gmra.mrb[0].mxu0 %v1466
        %v1614 = vpop.f32.mrb[0].mxu0
        %v1615 = vadd.f32 %v1490, %v1614
        %v1616 = vpop.f32.mrb[0].mxu0
        %v1617 = vpop.f32.mrb[0].mxu0
        %v1618 = vadd.f32 %v1490, %v1617
        %v1619 = vpop.f32.mrb[0].mxu0
        %1620 = vmatprep.mubr.bf16.mxu0 0
        %1621 = vmatmul.mubr.bf16.gmra.mrb[0].mxu0 %v1467
        %v1622 = vpop.f32.mrb[0].mxu0
        %v1623 = vadd.f32 %v1490, %v1622
        %v1624 = vpop.f32.mrb[0].mxu0
        %v1625 = vpop.f32.mrb[0].mxu0
        %v1626 = vadd.f32 %v1490, %v1625
        %v1627 = vpop.f32.mrb[0].mxu0
        %1628 = vmatprep.mubr.bf16.mxu0 0
        %1629 = vmatmul.mubr.bf16.gmra.mrb[0].mxu0 %v1468
        %v1630 = vpop.f32.mrb[0].mxu0
        %v1631 = vadd.f32 %v1490, %v1630
        %v1632 = vpop.f32.mrb[0].mxu0
        %v1633 = vpop.f32.mrb[0].mxu0
        %v1634 = vadd.f32 %v1490, %v1633
        %v1635 = vpop.f32.mrb[0].mxu0
        %1636 = vdwg.mxu0
        %v1637 = vtanh.pop %v1575
        %v1638 = vtanh.pop %v1578
        %v1639 = vtanh.pop %v1583
        %v1640 = vtanh.pop %v1586
        %v1641 = vtanh.pop %v1591
        %v1642 = vtanh.pop %v1594
        %v1643 = vtanh.pop %v1599
        %v1644 = vtanh.pop %v1602
        %v1645 = vtanh.pop %v1607
        %v1646 = vtanh.pop %v1610
        %v1647 = vtanh.pop %v1615
        %v1648 = vtanh.pop %v1618
        %v1649 = vtanh.pop %v1623
        %v1650 = vtanh.pop %v1626
        %v1651 = vtanh.pop %v1631
        %v1652 = vtanh.pop %v1634
        %v1653 = vpack.c.bf16 %v1638, %v1637
        %v1654 = vpack.c.bf16 %v1640, %v1639
        %v1655 = vpack.c.bf16 %v1642, %v1641
        %v1656 = vpack.c.bf16 %v1644, %v1643
        %v1657 = vpack.c.bf16 %v1646, %v1645
        %v1658 = vpack.c.bf16 %v1648, %v1647
        %v1659 = vpack.c.bf16 %v1650, %v1649
        %v1660 = vpack.c.bf16 %v1652, %v1651
        %v1661 = vld [vmem:[#allocation13] sm:$0xff]
        %v1662 = vld [vmem:[#allocation13 + $0x8] sm:$0xff]
        %v1663 = vld [vmem:[#allocation13 + $0x10] sm:$0xff]
        %v1664 = vld [vmem:[#allocation13 + $0x18] sm:$0xff]
        %v1665 = vld [vmem:[#allocation13 + $0x20] sm:$0xff]
        %v1666 = vld [vmem:[#allocation13 + $0x28] sm:$0xff]
        %v1667 = vld [vmem:[#allocation13 + $0x30] sm:$0xff]
        %v1668 = vld [vmem:[#allocation13 + $0x38] sm:$0xff]
        %v1669 = vld [vmem:[#allocation13 + $0x40] sm:$0xff]
        %v1670 = vld [vmem:[#allocation13 + $0x48] sm:$0xff]
        %v1671 = vld [vmem:[#allocation13 + $0x50] sm:$0xff]
        %v1672 = vld [vmem:[#allocation13 + $0x58] sm:$0xff]
        %v1673 = vld [vmem:[#allocation13 + $0x60] sm:$0xff]
        %v1674 = vld [vmem:[#allocation13 + $0x68] sm:$0xff]
        %v1675 = vld [vmem:[#allocation13 + $0x70] sm:$0xff]
        %v1676 = vld [vmem:[#allocation13 + $0x78] sm:$0xff]
        %v1677 = vld [vmem:[%s12] sm:$0x3]
        %v1679 = vlaneseq
        %v1680 = vshrl.u32 %v1679, 7
        %v1681 = vsub.s32 0, %v1680
        %v1682 = vrot.slane %v1677, %v1681
        %v1683 = vlaneseq
        %v1684 = vshrl.u32 %v1683, 7
        %v1685 = vsub.s32 1, %v1684
        %v1686 = vrot.slane %v1677, %v1685
        %v1705 = vunpack.c.l.b16 %v1661
        %v1706 = vunpack.c.h.b16 %v1661
        %v1707 = vunpack.c.l.b16 %v1662
        %v1708 = vunpack.c.h.b16 %v1662
        %v1709 = vunpack.c.l.b16 %v1663
        %v1710 = vunpack.c.h.b16 %v1663
        %v1711 = vunpack.c.l.b16 %v1664
        %v1712 = vunpack.c.h.b16 %v1664
        %v1713 = vunpack.c.l.b16 %v1665
        %v1714 = vunpack.c.h.b16 %v1665
        %v1715 = vunpack.c.l.b16 %v1666
        %v1716 = vunpack.c.h.b16 %v1666
        %v1717 = vunpack.c.l.b16 %v1667
        %v1718 = vunpack.c.h.b16 %v1667
        %v1719 = vunpack.c.l.b16 %v1668
        %v1720 = vunpack.c.h.b16 %v1668
        %v1721 = vunpack.c.l.b16 %v1669
        %v1722 = vunpack.c.h.b16 %v1669
        %v1723 = vunpack.c.l.b16 %v1670
        %v1724 = vunpack.c.h.b16 %v1670
        %v1725 = vunpack.c.l.b16 %v1671
        %v1726 = vunpack.c.h.b16 %v1671
        %v1727 = vunpack.c.l.b16 %v1672
        %v1728 = vunpack.c.h.b16 %v1672
        %v1729 = vunpack.c.l.b16 %v1673
        %v1730 = vunpack.c.h.b16 %v1673
        %v1731 = vunpack.c.l.b16 %v1674
        %v1732 = vunpack.c.h.b16 %v1674
        %v1733 = vunpack.c.l.b16 %v1675
        %v1734 = vunpack.c.h.b16 %v1675
        %v1735 = vunpack.c.l.b16 %v1676
        %v1736 = vunpack.c.h.b16 %v1676
        %v1737 = vpack.c.b16 %v1707, %v1705
        %v1738 = vpack.c.b16 %v1708, %v1706
        %v1739 = vpack.c.b16 %v1711, %v1709
        %v1740 = vpack.c.b16 %v1712, %v1710
        %v1741 = vpack.c.b16 %v1715, %v1713
        %v1742 = vpack.c.b16 %v1716, %v1714
        %v1743 = vpack.c.b16 %v1719, %v1717
        %v1744 = vpack.c.b16 %v1720, %v1718
        %v1745 = vpack.c.b16 %v1723, %v1721
        %v1746 = vpack.c.b16 %v1724, %v1722
        %v1747 = vpack.c.b16 %v1727, %v1725
        %v1748 = vpack.c.b16 %v1728, %v1726
        %v1749 = vpack.c.b16 %v1731, %v1729
        %v1750 = vpack.c.b16 %v1732, %v1730
        %v1751 = vpack.c.b16 %v1735, %v1733
        %v1752 = vpack.c.b16 %v1736, %v1734
        %1769 = vmatprep.subr.bf16.mxu0 %v1738
        %1770 = vmatpush1.bf16.msra.mxu0 %v1737
        %1771 = vmatprep.subr.bf16.mxu0 %v1740
        %1772 = vmatpush1.bf16.msra.mxu0 %v1739
        %1773 = vmatprep.subr.bf16.mxu0 %v1742
        %1774 = vmatpush1.bf16.msra.mxu0 %v1741
        %1775 = vmatprep.subr.bf16.mxu0 %v1744
        %1776 = vmatpush1.bf16.msra.mxu0 %v1743
        %1777 = vmatprep.subr.bf16.mxu0 %v1746
        %1778 = vmatpush1.bf16.msra.mxu0 %v1745
        %1779 = vmatprep.subr.bf16.mxu0 %v1748
        %1780 = vmatpush1.bf16.msra.mxu0 %v1747
        %1781 = vmatprep.subr.bf16.mxu0 %v1750
        %1782 = vmatpush1.bf16.msra.mxu0 %v1749
        %1783 = vmatprep.subr.bf16.mxu0 %v1752
        %1784 = vmatpush1.bf16.msra.mxu0 %v1751
        %1785 = vmatprep.subr.bf16.mxu0 0
        %1786 = vmatpush1.bf16.msra.mxu0 0
        %1787 = vmatprep.subr.bf16.mxu0 0
        %1788 = vmatpush1.bf16.msra.mxu0 0
        %1789 = vmatprep.subr.bf16.mxu0 0
        %1790 = vmatpush1.bf16.msra.mxu0 0
        %1791 = vmatprep.subr.bf16.mxu0 0
        %1792 = vmatpush1.bf16.msra.mxu0 0
        %1793 = vmatprep.subr.bf16.mxu0 0
        %1794 = vmatpush1.bf16.msra.mxu0 0
        %1795 = vmatprep.subr.bf16.mxu0 0
        %1796 = vmatpush1.bf16.msra.mxu0 0
        %1797 = vmatprep.subr.bf16.mxu0 0
        %1798 = vmatpush1.bf16.msra.mxu0 0
        %1799 = vmatprep.subr.bf16.mxu0 0
        %1800 = vmatpush1.bf16.msra.mxu0 0
        %1801 = vmatprep.mubr.bf16.mxu0 0
        %1802 = vmatmul.mubr.bf16.gmra.mrb[0].mxu0 %v1653
        %v1803 = vpop.f32.mrb[0].mxu0
        %v1804 = vadd.f32 %v1682, %v1803
        %v1805 = vpop.f32.mrb[0].mxu0
        %v1806 = vadd.f32 %v1686, %v1805
        %v1807 = vpop.f32.mrb[0].mxu0
        %v1808 = vadd.f32 %v1682, %v1807
        %v1809 = vpop.f32.mrb[0].mxu0
        %v1810 = vadd.f32 %v1686, %v1809
        %1811 = vmatprep.mubr.bf16.mxu0 0
        %1812 = vmatmul.mubr.bf16.gmra.mrb[0].mxu0 %v1654
        %v1813 = vpop.f32.mrb[0].mxu0
        %v1814 = vadd.f32 %v1682, %v1813
        %v1815 = vpop.f32.mrb[0].mxu0
        %v1816 = vadd.f32 %v1686, %v1815
        %v1817 = vpop.f32.mrb[0].mxu0
        %v1818 = vadd.f32 %v1682, %v1817
        %v1819 = vpop.f32.mrb[0].mxu0
        %v1820 = vadd.f32 %v1686, %v1819
        %1821 = vmatprep.mubr.bf16.mxu0 0
        %1822 = vmatmul.mubr.bf16.gmra.mrb[0].mxu0 %v1655
        %v1823 = vpop.f32.mrb[0].mxu0
        %v1824 = vadd.f32 %v1682, %v1823
        %v1825 = vpop.f32.mrb[0].mxu0
        %v1826 = vadd.f32 %v1686, %v1825
        %v1827 = vpop.f32.mrb[0].mxu0
        %v1828 = vadd.f32 %v1682, %v1827
        %v1829 = vpop.f32.mrb[0].mxu0
        %v1830 = vadd.f32 %v1686, %v1829
        %1831 = vmatprep.mubr.bf16.mxu0 0
        %1832 = vmatmul.mubr.bf16.gmra.mrb[0].mxu0 %v1656
        %v1833 = vpop.f32.mrb[0].mxu0
        %v1834 = vadd.f32 %v1682, %v1833
        %v1835 = vpop.f32.mrb[0].mxu0
        %v1836 = vadd.f32 %v1686, %v1835
        %v1837 = vpop.f32.mrb[0].mxu0
        %v1838 = vadd.f32 %v1682, %v1837
        %v1839 = vpop.f32.mrb[0].mxu0
        %v1840 = vadd.f32 %v1686, %v1839
        %1841 = vmatprep.mubr.bf16.mxu0 0
        %1842 = vmatmul.mubr.bf16.gmra.mrb[0].mxu0 %v1657
        %v1843 = vpop.f32.mrb[0].mxu0
        %v1844 = vadd.f32 %v1682, %v1843
        %v1845 = vpop.f32.mrb[0].mxu0
        %v1846 = vadd.f32 %v1686, %v1845
        %v1847 = vpop.f32.mrb[0].mxu0
        %v1848 = vadd.f32 %v1682, %v1847
        %v1849 = vpop.f32.mrb[0].mxu0
        %v1850 = vadd.f32 %v1686, %v1849
        %1851 = vmatprep.mubr.bf16.mxu0 0
        %1852 = vmatmul.mubr.bf16.gmra.mrb[0].mxu0 %v1658
        %v1853 = vpop.f32.mrb[0].mxu0
        %v1854 = vadd.f32 %v1682, %v1853
        %v1855 = vpop.f32.mrb[0].mxu0
        %v1856 = vadd.f32 %v1686, %v1855
        %v1857 = vpop.f32.mrb[0].mxu0
        %v1858 = vadd.f32 %v1682, %v1857
        %v1859 = vpop.f32.mrb[0].mxu0
        %v1860 = vadd.f32 %v1686, %v1859
        %1861 = vmatprep.mubr.bf16.mxu0 0
        %1862 = vmatmul.mubr.bf16.gmra.mrb[0].mxu0 %v1659
        %v1863 = vpop.f32.mrb[0].mxu0
        %v1864 = vadd.f32 %v1682, %v1863
        %v1865 = vpop.f32.mrb[0].mxu0
        %v1866 = vadd.f32 %v1686, %v1865
        %v1867 = vpop.f32.mrb[0].mxu0
        %v1868 = vadd.f32 %v1682, %v1867
        %v1869 = vpop.f32.mrb[0].mxu0
        %v1870 = vadd.f32 %v1686, %v1869
        %1871 = vmatprep.mubr.bf16.mxu0 0
        %1872 = vmatmul.mubr.bf16.gmra.mrb[0].mxu0 %v1660
        %v1873 = vpop.f32.mrb[0].mxu0
        %v1874 = vadd.f32 %v1682, %v1873
        %v1875 = vpop.f32.mrb[0].mxu0
        %v1876 = vadd.f32 %v1686, %v1875
        %v1877 = vpop.f32.mrb[0].mxu0
        %v1878 = vadd.f32 %v1682, %v1877
        %v1879 = vpop.f32.mrb[0].mxu0
        %v1880 = vadd.f32 %v1686, %v1879
        %1881 = vdwg.mxu0
        %v1882 = vtanh.pop %v1804
        %v1883 = vtanh.pop %v1806
        %v1884 = vtanh.pop %v1808
        %v1885 = vtanh.pop %v1810
        %v1886 = vtanh.pop %v1814
        %v1887 = vtanh.pop %v1816
        %v1888 = vtanh.pop %v1818
        %v1889 = vtanh.pop %v1820
        %v1890 = vtanh.pop %v1824
        %v1891 = vtanh.pop %v1826
        %v1892 = vtanh.pop %v1828
        %v1893 = vtanh.pop %v1830
        %v1894 = vtanh.pop %v1834
        %v1895 = vtanh.pop %v1836
        %v1896 = vtanh.pop %v1838
        %v1897 = vtanh.pop %v1840
        %v1898 = vtanh.pop %v1844
        %v1899 = vtanh.pop %v1846
        %v1900 = vtanh.pop %v1848
        %v1901 = vtanh.pop %v1850
        %v1902 = vtanh.pop %v1854
        %v1903 = vtanh.pop %v1856
        %v1904 = vtanh.pop %v1858
        %v1905 = vtanh.pop %v1860
        %v1906 = vtanh.pop %v1864
        %v1907 = vtanh.pop %v1866
        %v1908 = vtanh.pop %v1868
        %v1909 = vtanh.pop %v1870
        %v1910 = vtanh.pop %v1874
        %v1911 = vtanh.pop %v1876
        %v1912 = vtanh.pop %v1878
        %v1913 = vtanh.pop %v1880
        %v1914 = vmul.f32 %v1882, 1.442695
        %v1915 = vpow.pop %v1914
        %v1916 = vmul.f32 %v1883, 1.442695
        %v1917 = vpow.pop %v1916
        %v1918 = vmul.f32 %v1884, 1.442695
        %v1919 = vpow.pop %v1918
        %v1920 = vmul.f32 %v1885, 1.442695
        %v1921 = vpow.pop %v1920
        %v1922 = vmul.f32 %v1886, 1.442695
        %v1923 = vpow.pop %v1922
        %v1924 = vmul.f32 %v1887, 1.442695
        %v1925 = vpow.pop %v1924
        %v1926 = vmul.f32 %v1888, 1.442695
        %v1927 = vpow.pop %v1926
        %v1928 = vmul.f32 %v1889, 1.442695
        %v1929 = vpow.pop %v1928
        %v1930 = vmul.f32 %v1890, 1.442695
        %v1931 = vpow.pop %v1930
        %v1932 = vmul.f32 %v1891, 1.442695
        %v1933 = vpow.pop %v1932
        %v1934 = vmul.f32 %v1892, 1.442695
        %v1935 = vpow.pop %v1934
        %v1936 = vmul.f32 %v1893, 1.442695
        %v1937 = vpow.pop %v1936
        %v1938 = vmul.f32 %v1894, 1.442695
        %v1939 = vpow.pop %v1938
        %v1940 = vmul.f32 %v1895, 1.442695
        %v1941 = vpow.pop %v1940
        %v1942 = vmul.f32 %v1896, 1.442695
        %v1943 = vpow.pop %v1942
        %v1944 = vmul.f32 %v1897, 1.442695
        %v1945 = vpow.pop %v1944
        %v1946 = vmul.f32 %v1898, 1.442695
        %v1947 = vpow.pop %v1946
        %v1948 = vmul.f32 %v1899, 1.442695
        %v1949 = vpow.pop %v1948
        %v1950 = vmul.f32 %v1900, 1.442695
        %v1951 = vpow.pop %v1950
        %v1952 = vmul.f32 %v1901, 1.442695
        %v1953 = vpow.pop %v1952
        %v1954 = vmul.f32 %v1902, 1.442695
        %v1955 = vpow.pop %v1954
        %v1956 = vmul.f32 %v1903, 1.442695
        %v1957 = vpow.pop %v1956
        %v1958 = vmul.f32 %v1904, 1.442695
        %v1959 = vpow.pop %v1958
        %v1960 = vmul.f32 %v1905, 1.442695
        %v1961 = vpow.pop %v1960
        %v1962 = vmul.f32 %v1906, 1.442695
        %v1963 = vpow.pop %v1962
        %v1964 = vmul.f32 %v1907, 1.442695
        %v1965 = vpow.pop %v1964
        %v1966 = vmul.f32 %v1908, 1.442695
        %v1967 = vpow.pop %v1966
        %v1968 = vmul.f32 %v1909, 1.442695
        %v1969 = vpow.pop %v1968
        %v1970 = vmul.f32 %v1910, 1.442695
        %v1971 = vpow.pop %v1970
        %v1972 = vmul.f32 %v1911, 1.442695
        %v1973 = vpow.pop %v1972
        %v1974 = vmul.f32 %v1912, 1.442695
        %v1975 = vpow.pop %v1974
        %v1976 = vmul.f32 %v1913, 1.442695
        %v1977 = vpow.pop %v1976
        %v1978 = vadd.f32 %v1915, %v1917
        %1979 = vadd.xlane.f32.xlu0 %v1978
        %v1980 = vpop.xlane.xlu0 %1979
        %v1981 = vadd.f32 %v1919, %v1921
        %1982 = vadd.xlane.f32.xlu0 %v1981
        %v1983 = vpop.xlane.xlu0 %1982
        %v1984 = vadd.f32 %v1923, %v1925
        %1985 = vadd.xlane.f32.xlu0 %v1984
        %v1986 = vpop.xlane.xlu0 %1985
        %v1987 = vadd.f32 %v1927, %v1929
        %1988 = vadd.xlane.f32.xlu0 %v1987
        %v1989 = vpop.xlane.xlu0 %1988
        %v1990 = vadd.f32 %v1931, %v1933
        %1991 = vadd.xlane.f32.xlu0 %v1990
        %v1992 = vpop.xlane.xlu0 %1991
        %v1993 = vadd.f32 %v1935, %v1937
        %1994 = vadd.xlane.f32.xlu0 %v1993
        %v1995 = vpop.xlane.xlu0 %1994
        %v1996 = vadd.f32 %v1939, %v1941
        %1997 = vadd.xlane.f32.xlu0 %v1996
        %v1998 = vpop.xlane.xlu0 %1997
        %v1999 = vadd.f32 %v1943, %v1945
        %2000 = vadd.xlane.f32.xlu0 %v1999
        %v2001 = vpop.xlane.xlu0 %2000
        %v2002 = vadd.f32 %v1947, %v1949
        %2003 = vadd.xlane.f32.xlu0 %v2002
        %v2004 = vpop.xlane.xlu0 %2003
        %v2005 = vadd.f32 %v1951, %v1953
        %2006 = vadd.xlane.f32.xlu0 %v2005
        %v2007 = vpop.xlane.xlu0 %2006
        %v2008 = vadd.f32 %v1955, %v1957
        %2009 = vadd.xlane.f32.xlu0 %v2008
        %v2010 = vpop.xlane.xlu0 %2009
        %v2011 = vadd.f32 %v1959, %v1961
        %2012 = vadd.xlane.f32.xlu0 %v2011
        %v2013 = vpop.xlane.xlu0 %2012
        %v2014 = vadd.f32 %v1963, %v1965
        %2015 = vadd.xlane.f32.xlu0 %v2014
        %v2016 = vpop.xlane.xlu0 %2015
        %v2017 = vadd.f32 %v1967, %v1969
        %2018 = vadd.xlane.f32.xlu0 %v2017
        %v2019 = vpop.xlane.xlu0 %2018
        %v2020 = vadd.f32 %v1971, %v1973
        %2021 = vadd.xlane.f32.xlu0 %v2020
        %v2022 = vpop.xlane.xlu0 %2021
        %v2023 = vadd.f32 %v1975, %v1977
        %2024 = vadd.xlane.f32.xlu0 %v2023
        %v2025 = vpop.xlane.xlu0 %2024
        %vm2026 = vcmp.ne.f32.partialorder %v589, 0.0
        %vm2027 = vcmp.ne.f32.partialorder %v590, 0.0
        %vm2028 = vcmp.ne.f32.partialorder %v591, 0.0
        %vm2029 = vcmp.ne.f32.partialorder %v592, 0.0
        %vm2030 = vcmp.ne.f32.partialorder %v593, 0.0
        %vm2031 = vcmp.ne.f32.partialorder %v594, 0.0
        %vm2032 = vcmp.ne.f32.partialorder %v595, 0.0
        %vm2033 = vcmp.ne.f32.partialorder %v596, 0.0
        %vm2034 = vcmp.ne.f32.partialorder %v597, 0.0
        %vm2035 = vcmp.ne.f32.partialorder %v598, 0.0
        %vm2036 = vcmp.ne.f32.partialorder %v599, 0.0
        %vm2037 = vcmp.ne.f32.partialorder %v600, 0.0
        %vm2038 = vcmp.ne.f32.partialorder %v601, 0.0
        %vm2039 = vcmp.ne.f32.partialorder %v602, 0.0
        %vm2040 = vcmp.ne.f32.partialorder %v603, 0.0
        %vm2041 = vcmp.ne.f32.partialorder %v604, 0.0
        %vm2042 = vcmp.ne.f32.partialorder %v605, 0.0
        %vm2043 = vcmp.ne.f32.partialorder %v606, 0.0
        %vm2044 = vcmp.ne.f32.partialorder %v607, 0.0
        %vm2045 = vcmp.ne.f32.partialorder %v608, 0.0
        %vm2046 = vcmp.ne.f32.partialorder %v609, 0.0
        %vm2047 = vcmp.ne.f32.partialorder %v610, 0.0
        %vm2048 = vcmp.ne.f32.partialorder %v611, 0.0
        %vm2049 = vcmp.ne.f32.partialorder %v612, 0.0
        %vm2050 = vcmp.ne.f32.partialorder %v613, 0.0
        %vm2051 = vcmp.ne.f32.partialorder %v614, 0.0
        %vm2052 = vcmp.ne.f32.partialorder %v615, 0.0
        %vm2053 = vcmp.ne.f32.partialorder %v616, 0.0
        %vm2054 = vcmp.ne.f32.partialorder %v617, 0.0
        %vm2055 = vcmp.ne.f32.partialorder %v618, 0.0
        %vm2056 = vcmp.ne.f32.partialorder %v619, 0.0
        %vm2057 = vcmp.ne.f32.partialorder %v620, 0.0
        %v2058 = vsel %vm2026, 1, 0
        %v2059 = vsel %vm2027, 1, 0
        %v2060 = vsel %vm2028, 1, 0
        %v2061 = vsel %vm2029, 1, 0
        %v2062 = vsel %vm2030, 1, 0
        %v2063 = vsel %vm2031, 1, 0
        %v2064 = vsel %vm2032, 1, 0
        %v2065 = vsel %vm2033, 1, 0
        %v2066 = vsel %vm2034, 1, 0
        %v2067 = vsel %vm2035, 1, 0
        %v2068 = vsel %vm2036, 1, 0
        %v2069 = vsel %vm2037, 1, 0
        %v2070 = vsel %vm2038, 1, 0
        %v2071 = vsel %vm2039, 1, 0
        %v2072 = vsel %vm2040, 1, 0
        %v2073 = vsel %vm2041, 1, 0
        %v2074 = vsel %vm2042, 1, 0
        %v2075 = vsel %vm2043, 1, 0
        %v2076 = vsel %vm2044, 1, 0
        %v2077 = vsel %vm2045, 1, 0
        %v2078 = vsel %vm2046, 1, 0
        %v2079 = vsel %vm2047, 1, 0
        %v2080 = vsel %vm2048, 1, 0
        %v2081 = vsel %vm2049, 1, 0
        %v2082 = vsel %vm2050, 1, 0
        %v2083 = vsel %vm2051, 1, 0
        %v2084 = vsel %vm2052, 1, 0
        %v2085 = vsel %vm2053, 1, 0
        %v2086 = vsel %vm2054, 1, 0
        %v2087 = vsel %vm2055, 1, 0
        %v2088 = vsel %vm2056, 1, 0
        %v2089 = vsel %vm2057, 1, 0
        %v2090 = vcvt.s32.f32 %v2058
        %v2091 = vcvt.s32.f32 %v2059
        %v2092 = vcvt.s32.f32 %v2060
        %v2093 = vcvt.s32.f32 %v2061
        %v2094 = vcvt.s32.f32 %v2062
        %v2095 = vcvt.s32.f32 %v2063
        %v2096 = vcvt.s32.f32 %v2064
        %v2097 = vcvt.s32.f32 %v2065
        %v2098 = vcvt.s32.f32 %v2066
        %v2099 = vcvt.s32.f32 %v2067
        %v2100 = vcvt.s32.f32 %v2068
        %v2101 = vcvt.s32.f32 %v2069
        %v2102 = vcvt.s32.f32 %v2070
        %v2103 = vcvt.s32.f32 %v2071
        %v2104 = vcvt.s32.f32 %v2072
        %v2105 = vcvt.s32.f32 %v2073
        %v2106 = vcvt.s32.f32 %v2074
        %v2107 = vcvt.s32.f32 %v2075
        %v2108 = vcvt.s32.f32 %v2076
        %v2109 = vcvt.s32.f32 %v2077
        %v2110 = vcvt.s32.f32 %v2078
        %v2111 = vcvt.s32.f32 %v2079
        %v2112 = vcvt.s32.f32 %v2080
        %v2113 = vcvt.s32.f32 %v2081
        %v2114 = vcvt.s32.f32 %v2082
        %v2115 = vcvt.s32.f32 %v2083
        %v2116 = vcvt.s32.f32 %v2084
        %v2117 = vcvt.s32.f32 %v2085
        %v2118 = vcvt.s32.f32 %v2086
        %v2119 = vcvt.s32.f32 %v2087
        %v2120 = vcvt.s32.f32 %v2088
        %v2121 = vcvt.s32.f32 %v2089
        %v2122 = vadd.f32 %v2090, %v2091
        %2123 = vadd.xlane.f32.xlu0 %v2122
        %v2124 = vpop.xlane.xlu0 %2123
        %v2125 = vadd.f32 %v2092, %v2093
        %2126 = vadd.xlane.f32.xlu0 %v2125
        %v2127 = vpop.xlane.xlu0 %2126
        %v2128 = vadd.f32 %v2094, %v2095
        %2129 = vadd.xlane.f32.xlu0 %v2128
        %v2130 = vpop.xlane.xlu0 %2129
        %v2131 = vadd.f32 %v2096, %v2097
        %2132 = vadd.xlane.f32.xlu0 %v2131
        %v2133 = vpop.xlane.xlu0 %2132
        %v2134 = vadd.f32 %v2098, %v2099
        %2135 = vadd.xlane.f32.xlu0 %v2134
        %v2136 = vpop.xlane.xlu0 %2135
        %v2137 = vadd.f32 %v2100, %v2101
        %2138 = vadd.xlane.f32.xlu0 %v2137
        %v2139 = vpop.xlane.xlu0 %2138
        %v2140 = vadd.f32 %v2102, %v2103
        %2141 = vadd.xlane.f32.xlu0 %v2140
        %v2142 = vpop.xlane.xlu0 %2141
        %v2143 = vadd.f32 %v2104, %v2105
        %2144 = vadd.xlane.f32.xlu0 %v2143
        %v2145 = vpop.xlane.xlu0 %2144
        %v2146 = vadd.f32 %v2106, %v2107
        %2147 = vadd.xlane.f32.xlu0 %v2146
        %v2148 = vpop.xlane.xlu0 %2147
        %v2149 = vadd.f32 %v2108, %v2109
        %2150 = vadd.xlane.f32.xlu0 %v2149
        %v2151 = vpop.xlane.xlu0 %2150
        %v2152 = vadd.f32 %v2110, %v2111
        %2153 = vadd.xlane.f32.xlu0 %v2152
        %v2154 = vpop.xlane.xlu0 %2153
        %v2155 = vadd.f32 %v2112, %v2113
        %2156 = vadd.xlane.f32.xlu0 %v2155
        %v2157 = vpop.xlane.xlu0 %2156
        %v2158 = vadd.f32 %v2114, %v2115
        %2159 = vadd.xlane.f32.xlu0 %v2158
        %v2160 = vpop.xlane.xlu0 %2159
        %v2161 = vadd.f32 %v2116, %v2117
        %2162 = vadd.xlane.f32.xlu0 %v2161
        %v2163 = vpop.xlane.xlu0 %2162
        %v2164 = vadd.f32 %v2118, %v2119
        %2165 = vadd.xlane.f32.xlu0 %v2164
        %v2166 = vpop.xlane.xlu0 %2165
        %v2167 = vadd.f32 %v2120, %v2121
        %2168 = vadd.xlane.f32.xlu0 %v2167
        %v2169 = vpop.xlane.xlu0 %2168
        %v2170 = vrcp.pop %v1980
        %v2171 = vrcp.pop %v1983
        %v2172 = vrcp.pop %v1986
        %v2173 = vrcp.pop %v1989
        %v2174 = vrcp.pop %v1992
        %v2175 = vrcp.pop %v1995
        %v2176 = vrcp.pop %v1998
        %v2177 = vrcp.pop %v2001
        %v2178 = vrcp.pop %v2004
        %v2179 = vrcp.pop %v2007
        %v2180 = vrcp.pop %v2010
        %v2181 = vrcp.pop %v2013
        %v2182 = vrcp.pop %v2016
        %v2183 = vrcp.pop %v2019
        %v2184 = vrcp.pop %v2022
        %v2185 = vrcp.pop %v2025
        %v2186 = vmul.f32 %v2124, %v2170
        %v2187 = vmul.f32 %v2127, %v2171
        %v2188 = vmul.f32 %v2130, %v2172
        %v2189 = vmul.f32 %v2133, %v2173
        %v2190 = vmul.f32 %v2136, %v2174
        %v2191 = vmul.f32 %v2139, %v2175
        %v2192 = vmul.f32 %v2142, %v2176
        %v2193 = vmul.f32 %v2145, %v2177
        %v2194 = vmul.f32 %v2148, %v2178
        %v2195 = vmul.f32 %v2151, %v2179
        %v2196 = vmul.f32 %v2154, %v2180
        %v2197 = vmul.f32 %v2157, %v2181
        %v2198 = vmul.f32 %v2160, %v2182
        %v2199 = vmul.f32 %v2163, %v2183
        %v2200 = vmul.f32 %v2166, %v2184
        %v2201 = vmul.f32 %v2169, %v2185
        %v2202 = vmul.f32 %v1915, %v2186
        %v2203 = vmul.f32 %v1917, %v2186
        %v2204 = vmul.f32 %v1919, %v2187
        %v2205 = vmul.f32 %v1921, %v2187
        %v2206 = vmul.f32 %v1923, %v2188
        %v2207 = vmul.f32 %v1925, %v2188
        %v2208 = vmul.f32 %v1927, %v2189
        %v2209 = vmul.f32 %v1929, %v2189
        %v2210 = vmul.f32 %v1931, %v2190
        %v2211 = vmul.f32 %v1933, %v2190
        %v2212 = vmul.f32 %v1935, %v2191
        %v2213 = vmul.f32 %v1937, %v2191
        %v2214 = vmul.f32 %v1939, %v2192
        %v2215 = vmul.f32 %v1941, %v2192
        %v2216 = vmul.f32 %v1943, %v2193
        %v2217 = vmul.f32 %v1945, %v2193
        %v2218 = vmul.f32 %v1947, %v2194
        %v2219 = vmul.f32 %v1949, %v2194
        %v2220 = vmul.f32 %v1951, %v2195
        %v2221 = vmul.f32 %v1953, %v2195
        %v2222 = vmul.f32 %v1955, %v2196
        %v2223 = vmul.f32 %v1957, %v2196
        %v2224 = vmul.f32 %v1959, %v2197
        %v2225 = vmul.f32 %v1961, %v2197
        %v2226 = vmul.f32 %v1963, %v2198
        %v2227 = vmul.f32 %v1965, %v2198
        %v2228 = vmul.f32 %v1967, %v2199
        %v2229 = vmul.f32 %v1969, %v2199
        %v2230 = vmul.f32 %v1971, %v2200
        %v2231 = vmul.f32 %v1973, %v2200
        %v2232 = vmul.f32 %v1975, %v2201
        %v2233 = vmul.f32 %v1977, %v2201
        %2234 = vst [vmem:[%s577] sm:$0xff] %v2202
        %2235 = vst [vmem:[%s577 + $0x8] sm:$0xff] %v2203
        %2236 = vst [vmem:[%s577 + $0x10] sm:$0xff] %v2204
        %2237 = vst [vmem:[%s577 + $0x18] sm:$0xff] %v2205
        %2238 = vst [vmem:[%s577 + $0x20] sm:$0xff] %v2206
        %2239 = vst [vmem:[%s577 + $0x28] sm:$0xff] %v2207
        %2240 = vst [vmem:[%s577 + $0x30] sm:$0xff] %v2208
        %2241 = vst [vmem:[%s577 + $0x38] sm:$0xff] %v2209
        %2242 = vst [vmem:[%s577 + $0x40] sm:$0xff] %v2210
        %2243 = vst [vmem:[%s577 + $0x48] sm:$0xff] %v2211
        %2244 = vst [vmem:[%s577 + $0x50] sm:$0xff] %v2212
        %2245 = vst [vmem:[%s577 + $0x58] sm:$0xff] %v2213
        %2246 = vst [vmem:[%s577 + $0x60] sm:$0xff] %v2214
        %2247 = vst [vmem:[%s577 + $0x68] sm:$0xff] %v2215
        %2248 = vst [vmem:[%s577 + $0x70] sm:$0xff] %v2216
        %2249 = vst [vmem:[%s577 + $0x78] sm:$0xff] %v2217
        %2250 = vst [vmem:[%s577 + $0x80] sm:$0xff] %v2218
        %2251 = vst [vmem:[%s577 + $0x88] sm:$0xff] %v2219
        %2252 = vst [vmem:[%s577 + $0x90] sm:$0xff] %v2220
        %2253 = vst [vmem:[%s577 + $0x98] sm:$0xff] %v2221
        %2254 = vst [vmem:[%s577 + $0xa0] sm:$0xff] %v2222
        %2255 = vst [vmem:[%s577 + $0xa8] sm:$0xff] %v2223
        %2256 = vst [vmem:[%s577 + $0xb0] sm:$0xff] %v2224
        %2257 = vst [vmem:[%s577 + $0xb8] sm:$0xff] %v2225
        %2258 = vst [vmem:[%s577 + $0xc0] sm:$0xff] %v2226
        %2259 = vst [vmem:[%s577 + $0xc8] sm:$0xff] %v2227
        %2260 = vst [vmem:[%s577 + $0xd0] sm:$0xff] %v2228
        %2261 = vst [vmem:[%s577 + $0xd8] sm:$0xff] %v2229
        %2262 = vst [vmem:[%s577 + $0xe0] sm:$0xff] %v2230
        %2263 = vst [vmem:[%s577 + $0xe8] sm:$0xff] %v2231
        %2264 = vst [vmem:[%s577 + $0xf0] sm:$0xff] %v2232
        %2265 = vst [vmem:[%s577 + $0xf8] sm:$0xff] %v2233
        %s2266 = sand.u32 %s324, 1
        %s2267 = scalar_lea.sflag [#allocation4], %s2266
        %s2268 = sand.u32 %s324, 1
        %s2269 = smul.addr %s2268, 256
        %s2270 = scalar_lea.vmem [#allocation14], %s2269
        %s2271 = sand.u32 %s350, 1
        %s2272 = scalar_lea.sflag [#allocation16], %s2271
        %s2273 = sand.u32 %s350, 1
        %s2274 = smul.addr %s2273, 128
        %s2275 = scalar_lea.vmem [#allocation15], %s2274
        // Predicated region
        $region101: #{tpu_custom_call.1} parent=71 // pred_check
          %p2276 = pneg %p334
        $region102: #{tpu_custom_call.1} parent=71 // pred_check_branch
          %2278 = sbr.rel (%p2276) target = $region104
        $region103: #{tpu_custom_call.1} parent=71 // pred_region
          %s2279 = smul.u32 16, %s38
          %s2281 = ssub.s32 4096, 4096
          %2282 = vsyncadd %s2267, %s2281
          %s2283 = smul.addr %s2279, 2
          %s2284 = smul.addr %s2283, 128
          %s2285 = scalar_lea.hbm %s13, %s2284
          %s2286 = sshll.u32 %s2270, 4
          %s2287 = int_to_ptr.vmem [resolvable:$true] %s2286
          %2292 = dma.vmem_to_hbm [thread:$0]  %s2287, 4096, %s2285, %s2267, 256, 256, 16
        $region104: #{tpu_custom_call.1} parent=71 // pred_fallthru
          _
        // Predicated region
        $region105: #{tpu_custom_call.1} parent=71 // pred_check
          %p2293 = pneg %p360
        $region106: #{tpu_custom_call.1} parent=71 // pred_check_branch
          %2295 = sbr.rel (%p2293) target = $region108
        $region107: #{tpu_custom_call.1} parent=71 // pred_region
          %s2296 = smul.u32 16, %s38
          %s2298 = ssub.s32 2048, 2048
          %2299 = vsyncadd %s2272, %s2298
          %s2300 = smul.addr %s2296, 128
          %s2301 = scalar_lea.hbm %s14, %s2300
          %s2302 = sshll.u32 %s2275, 4
          %s2303 = int_to_ptr.vmem [resolvable:$true] %s2302
          %2308 = dma.vmem_to_hbm [thread:$0]  %s2303, 2048, %s2301, %s2272, 128, 128, 8
        $region108: #{tpu_custom_call.1} parent=71 // pred_fallthru
          _
      $region72: #{tpu_custom_call.1} parent=5 // pred_fallthru
        _
      %p2309 = scmp.le.s32.totalorder 2, %s33
      // Predicated region
      $region109: #{tpu_custom_call.1} parent=5 // pred_check
        %p2310 = pneg %p2309
      $region110: #{tpu_custom_call.1} parent=5 // pred_check_branch
        %2312 = sbr.rel (%p2310) target = $region112
      $region111: #{tpu_custom_call.1} parent=5 // pred_region
        %s2313 = ssub.s32 %s33, 2
        // Predicated region
        $region113: #{tpu_custom_call.1} parent=111 // pred_check
          %p2314 = pneg %p340
        $region114: #{tpu_custom_call.1} parent=111 // pred_check_branch
          %2316 = sbr.rel (%p2314) target = $region116
        $region115: #{tpu_custom_call.1} parent=111 // pred_region
          %s2317 = sand.u32 %s325, 1
          %s2318 = scalar_lea.sflag [#allocation4], %s2317
          %s2319 = sand.u32 %s325, 1
          %s2320 = smul.addr %s2319, 256
          %s2321 = scalar_lea.vmem [#allocation14], %s2320
          %2322 = dma.done %s2318, 4096
        $region116: #{tpu_custom_call.1} parent=111 // pred_fallthru
          _
        // Predicated region
        $region117: #{tpu_custom_call.1} parent=111 // pred_check
          %p2323 = pneg %p366
        $region118: #{tpu_custom_call.1} parent=111 // pred_check_branch
          %2325 = sbr.rel (%p2323) target = $region120
        $region119: #{tpu_custom_call.1} parent=111 // pred_region
          %s2326 = sand.u32 %s351, 1
          %s2327 = scalar_lea.sflag [#allocation16], %s2326
          %s2328 = sand.u32 %s351, 1
          %s2329 = smul.addr %s2328, 128
          %s2330 = scalar_lea.vmem [#allocation15], %s2329
          %2331 = dma.done %s2327, 2048
        $region120: #{tpu_custom_call.1} parent=111 // pred_fallthru
          _
      $region112: #{tpu_custom_call.1} parent=5 // pred_fallthru
        _
    $region6: #{tpu_custom_call.1} parent=1 // loop_footer
      %s37 = sadd.s32 1, %s33
    $region7: #{tpu_custom_call.1} parent=1 // loop_footer_branch
      %32 = sbr.rel target = $region3
    $region8: #{tpu_custom_call.1} parent=1 // loop_exit
      _
    %2332 = vsyncpa [#allocation3], 1
    %s2333 = scalar_lea.sflag [#allocation3], 1
    %2334 = vsyncpa %s2333, 1
    %2335 = vsyncpa [#allocation6], 1
    %2336 = vsyncpa [#allocation9], 1
    %2337 = vsyncpa [#allocation12], 1
    %2338 = vsyncpa [#allocation4], 1
    %s2339 = scalar_lea.sflag [#allocation4], 1
    %2340 = vsyncpa %s2339, 1
    %2341 = vsyncpa [#allocation16], 1
    %s2342 = scalar_lea.sflag [#allocation16], 1
    %2343 = vsyncpa %s2342, 1

// kernel: tpu_custom_call.1
$region0: #{tpu_custom_call.1}
  #allocation0 [shape = 'u32[]', space=smem, size = 0x4, offset = 0x4, fixed_abs, tag = 'smem constant byte address 0x4 - core index']
  #allocation1 [shape = 'u32[144,128]{1,0:T(1,128)}', space=vmem, size = 0x12000, scoped, tag = 'internal scratch']
  %s0 = inlined_call_operand.hbm [shape: f32[256,256], index: 0, kind: input, shape index: {}]
  %s1 = inlined_call_operand.hbm [shape: bf16[256,128], index: 1, kind: input, shape index: {}]
  %s2 = inlined_call_operand.vmem [shape: f32[1,128], index: 2, kind: input, shape index: {}]
  %s3 = inlined_call_operand.hbm [shape: bf16[128,128], index: 3, kind: input, shape index: {}]
  %s4 = inlined_call_operand.vmem [shape: f32[1,128], index: 4, kind: input, shape index: {}]
  %s5 = inlined_call_operand.hbm [shape: bf16[128,128], index: 5, kind: input, shape index: {}]
  %s6 = inlined_call_operand.vmem [shape: f32[1,128], index: 6, kind: input, shape index: {}]
  %s7 = inlined_call_operand.hbm [shape: bf16[128,128], index: 7, kind: input, shape index: {}]
  %s8 = inlined_call_operand.vmem [shape: f32[1,128], index: 8, kind: input, shape index: {}]
  %s9 = inlined_call_operand.hbm [shape: bf16[128,128], index: 9, kind: input, shape index: {}]
  %s10 = inlined_call_operand.vmem [shape: f32[1,128], index: 10, kind: input, shape index: {}]
  %s11 = inlined_call_operand.hbm [shape: bf16[128,256], index: 11, kind: input, shape index: {}]
  %s12 = inlined_call_operand.vmem [shape: f32[1,256], index: 12, kind: input, shape index: {}]
  %s13 = inlined_call_operand.hbm [shape: f32[256,256], index: 13, kind: output, shape index: {0}]
  %s14 = inlined_call_operand.hbm [shape: f32[256,128], index: 14, kind: output, shape index: {1}]
  %15 = xla_tuple %s13, %s14
  %s16 = sld [smem:[#allocation0]]
  $region121: #{tpu_custom_call.1} parent=0
    _
  %s18 = ssub.s32 1, %s16
  %s19 = scalar_select 0, %s18, %s16
  $region1: #{tpu_custom_call.1} parent=0
    #allocation2 [shape = 'u8[262144]{0}', space=vmem, size = 0x40000, scoped, tag = 'input window, operand 0']
    #allocation3 [shape = 's32[2]{0}', space=sflag, size = 0x8, scoped, tag = 'scoped memory for tpu_custom_call.1']
    #allocation4 [shape = 's32[2]{0}', space=sflag, size = 0x8, scoped, tag = 'scoped memory for tpu_custom_call.1']
    #allocation5 [shape = 'u8[65536]{0}', space=vmem, size = 0x10000, scoped, tag = 'input window, operand 1, single buffered']
    #allocation6 [shape = 's32[1]{0}', space=sflag, size = 0x4, scoped, tag = 'scoped memory for tpu_custom_call.1']
    #allocation7 [shape = 'u8[32768]{0}', space=vmem, size = 0x8000, scoped, tag = 'input window, operand 3, single buffered']
    #allocation8 [shape = 'u8[32768]{0}', space=vmem, size = 0x8000, scoped, tag = 'input window, operand 5, single buffered']
    #allocation9 [shape = 's32[1]{0}', space=sflag, size = 0x4, scoped, tag = 'scoped memory for tpu_custom_call.1']
    #allocation10 [shape = 'u8[32768]{0}', space=vmem, size = 0x8000, scoped, tag = 'input window, operand 7, single buffered']
    #allocation11 [shape = 'u8[32768]{0}', space=vmem, size = 0x8000, scoped, tag = 'input window, operand 9, single buffered']
    #allocation12 [shape = 's32[1]{0}', space=sflag, size = 0x4, scoped, tag = 'scoped memory for tpu_custom_call.1']
    #allocation13 [shape = 'u8[65536]{0}', space=vmem, size = 0x10000, scoped, tag = 'input window, operand 11, single buffered']
    #allocation14 [shape = 'u8[262144]{0}', space=vmem, size = 0x40000, scoped, tag = 'output window, operand 0']
    #allocation15 [shape = 'u8[131072]{0}', space=vmem, size = 0x20000, scoped, tag = 'output window, operand 1']
    #allocation16 [shape = 's32[2]{0}', space=sflag, size = 0x8, scoped, tag = 'scoped memory for tpu_custom_call.1']
    %20 = vsyncpa [#allocation3], 0
    %s21 = scalar_lea.sflag [#allocation3], 1
    %22 = vsyncpa %s21, 0
    %23 = vsyncpa [#allocation6], 0
    %24 = vsyncpa [#allocation9], 0
    %25 = vsyncpa [#allocation12], 0
    %26 = vsyncpa [#allocation4], 0
    %s27 = scalar_lea.sflag [#allocation4], 1
    %28 = vsyncpa %s27, 0
    %29 = vsyncpa [#allocation16], 0
    %s30 = scalar_lea.sflag [#allocation16], 1
    %31 = vsyncpa %s30, 0
    loop: start=0, step=1, limit=4
    $region2: #{tpu_custom_call.1} parent=1 // loop_pre_header
      _
    $region3: #{tpu_custom_call.1} parent=1 // loop_header
      %s33 = sphi 0, %s37
      %p34 = scmp.ge.s32.totalorder %s33, 4
      %s43 = sphi 0, %s45
      %s46 = sphi 0, %s43
      %s47 = sphi 0, %s46
      %s63 = sphi 0, %s47
      %s67 = sphi 0, %s67
      %s69 = sphi 0, %s67
      %s70 = sphi 0, %s69
      %s84 = sphi 0, %s70
      %s88 = sphi 0, %s88
      %s90 = sphi 0, %s88
      %s91 = sphi 0, %s90
      %s105 = sphi 0, %s91
      %s109 = sphi 0, %s109
      %s111 = sphi 0, %s109
      %s112 = sphi 0, %s111
      %s126 = sphi 0, %s112
      %s130 = sphi 0, %s130
      %s132 = sphi 0, %s130
      %s133 = sphi 0, %s132
      %s147 = sphi 0, %s133
      %s151 = sphi 0, %s151
      %s153 = sphi 0, %s151
      %s154 = sphi 0, %s153
      %s168 = sphi 0, %s154
      %s172 = sphi 0, %s172
      %s174 = sphi 0, %s172
      %s175 = sphi 0, %s174
      %s189 = sphi 0, %s175
      %s193 = sphi 0, %s193
      %s195 = sphi 0, %s193
      %s196 = sphi 0, %s195
      %s210 = sphi 0, %s196
      %s214 = sphi 0, %s214
      %s216 = sphi 0, %s214
      %s217 = sphi 0, %s216
      %s231 = sphi 0, %s217
      %s235 = sphi 0, %s235
      %s237 = sphi 0, %s235
      %s238 = sphi 0, %s237
      %s252 = sphi 0, %s238
      %s256 = sphi 0, %s256
      %s258 = sphi 0, %s256
      %s259 = sphi 0, %s258
      %s273 = sphi 0, %s259
      %s277 = sphi 0, %s277
      %s279 = sphi 0, %s277
      %s280 = sphi 0, %s279
      %s294 = sphi 0, %s280
      %s298 = sphi 0, %s298
      %s300 = sphi 0, %s298
      %s301 = sphi 0, %s300
      %s315 = sphi 0, %s301
      %s321 = sphi 0, %s323
      %s324 = sphi 0, %s321
      %s325 = sphi 0, %s324
      %s341 = sphi 0, %s325
      %s347 = sphi 0, %s349
      %s350 = sphi 0, %s347
      %s351 = sphi 0, %s350
      %s367 = sphi 0, %s351
    $region4: #{tpu_custom_call.1} parent=1 // loop_header_branch
      %36 = sbr.rel (%p34) target = $region8
    $region5: #{tpu_custom_call.1} parent=1 // loop_body
      %s38 = ssub.s32 %s33, 1
      %s39 = ssub.s32 %s33, 2
      %s40 = sadd.s32 %s33, 1
      %s41 = ssub.s32 %s33, %s40
      %p42 = scmp.eq.s32.totalorder %s41, 0
      %s44 = sadd.s32 %s43, 1
      %s45 = scalar_select %p42, %s43, %s44
      %p48 = pneg %p42
      %p49 = scmp.eq.s32.totalorder %s33, 1
      %p50 = por %p48, %p49
      %p51 = scmp.ne.s32.totalorder %s43, %s46
      %p52 = scmp.eq.s32.totalorder %s33, 0
      %p53 = por %p51, %p52
      %p54 = scmp.ne.s32.totalorder %s43, %s46
      %p55 = scmp.eq.s32.totalorder %s38, 1
      %p56 = por %p54, %p55
      %p57 = scmp.ne.s32.totalorder %s46, %s47
      %p58 = scmp.eq.s32.totalorder %s38, 0
      %p59 = por %p57, %p58
      %p60 = scmp.ne.s32.totalorder %s46, %s47
      %p61 = scmp.eq.s32.totalorder %s39, 1
      %p62 = por %p60, %p61
      %p64 = scmp.ne.s32.totalorder %s47, %s63
      %p65 = scmp.eq.s32.totalorder %s39, 0
      %p66 = por %p64, %p65
      %s68 = sadd.s32 %s67, 1
      %p71 = scmp.eq.s32.totalorder %s33, 1
      %p72 = scmp.ne.s32.totalorder %s67, %s69
      %p73 = scmp.eq.s32.totalorder %s33, 0
      %p74 = por %p72, %p73
      %p75 = scmp.ne.s32.totalorder %s67, %s69
      %p76 = scmp.eq.s32.totalorder %s38, 1
      %p77 = por %p75, %p76
      %p78 = scmp.ne.s32.totalorder %s69, %s70
      %p79 = scmp.eq.s32.totalorder %s38, 0
      %p80 = por %p78, %p79
      %p81 = scmp.ne.s32.totalorder %s69, %s70
      %p82 = scmp.eq.s32.totalorder %s39, 1
      %p83 = por %p81, %p82
      %p85 = scmp.ne.s32.totalorder %s70, %s84
      %p86 = scmp.eq.s32.totalorder %s39, 0
      %p87 = por %p85, %p86
      %s89 = sadd.s32 %s88, 1
      %p92 = scmp.eq.s32.totalorder %s33, 1
      %p93 = scmp.ne.s32.totalorder %s88, %s90
      %p94 = scmp.eq.s32.totalorder %s33, 0
      %p95 = por %p93, %p94
      %p96 = scmp.ne.s32.totalorder %s88, %s90
      %p97 = scmp.eq.s32.totalorder %s38, 1
      %p98 = por %p96, %p97
      %p99 = scmp.ne.s32.totalorder %s90, %s91
      %p100 = scmp.eq.s32.totalorder %s38, 0
      %p101 = por %p99, %p100
      %p102 = scmp.ne.s32.totalorder %s90, %s91
      %p103 = scmp.eq.s32.totalorder %s39, 1
      %p104 = por %p102, %p103
      %p106 = scmp.ne.s32.totalorder %s91, %s105
      %p107 = scmp.eq.s32.totalorder %s39, 0
      %p108 = por %p106, %p107
      %s110 = sadd.s32 %s109, 1
      %p113 = scmp.eq.s32.totalorder %s33, 1
      %p114 = scmp.ne.s32.totalorder %s109, %s111
      %p115 = scmp.eq.s32.totalorder %s33, 0
      %p116 = por %p114, %p115
      %p117 = scmp.ne.s32.totalorder %s109, %s111
      %p118 = scmp.eq.s32.totalorder %s38, 1
      %p119 = por %p117, %p118
      %p120 = scmp.ne.s32.totalorder %s111, %s112
      %p121 = scmp.eq.s32.totalorder %s38, 0
      %p122 = por %p120, %p121
      %p123 = scmp.ne.s32.totalorder %s111, %s112
      %p124 = scmp.eq.s32.totalorder %s39, 1
      %p125 = por %p123, %p124
      %p127 = scmp.ne.s32.totalorder %s112, %s126
      %p128 = scmp.eq.s32.totalorder %s39, 0
      %p129 = por %p127, %p128
      %s131 = sadd.s32 %s130, 1
      %p134 = scmp.eq.s32.totalorder %s33, 1
      %p135 = scmp.ne.s32.totalorder %s130, %s132
      %p136 = scmp.eq.s32.totalorder %s33, 0
      %p137 = por %p135, %p136
      %p138 = scmp.ne.s32.totalorder %s130, %s132
      %p139 = scmp.eq.s32.totalorder %s38, 1
      %p140 = por %p138, %p139
      %p141 = scmp.ne.s32.totalorder %s132, %s133
      %p142 = scmp.eq.s32.totalorder %s38, 0
      %p143 = por %p141, %p142
      %p144 = scmp.ne.s32.totalorder %s132, %s133
      %p145 = scmp.eq.s32.totalorder %s39, 1
      %p146 = por %p144, %p145
      %p148 = scmp.ne.s32.totalorder %s133, %s147
      %p149 = scmp.eq.s32.totalorder %s39, 0
      %p150 = por %p148, %p149
      %s152 = sadd.s32 %s151, 1
      %p155 = scmp.eq.s32.totalorder %s33, 1
      %p156 = scmp.ne.s32.totalorder %s151, %s153
      %p157 = scmp.eq.s32.totalorder %s33, 0
      %p158 = por %p156, %p157
      %p159 = scmp.ne.s32.totalorder %s151, %s153
      %p160 = scmp.eq.s32.totalorder %s38, 1
      %p161 = por %p159, %p160
      %p162 = scmp.ne.s32.totalorder %s153, %s154
      %p163 = scmp.eq.s32.totalorder %s38, 0
      %p164 = por %p162, %p163
      %p165 = scmp.ne.s32.totalorder %s153, %s154
      %p166 = scmp.eq.s32.totalorder %s39, 1
      %p167 = por %p165, %p166
      %p169 = scmp.ne.s32.totalorder %s154, %s168
      %p170 = scmp.eq.s32.totalorder %s39, 0
      %p171 = por %p169, %p170
      %s173 = sadd.s32 %s172, 1
      %p176 = scmp.eq.s32.totalorder %s33, 1
      %p177 = scmp.ne.s32.totalorder %s172, %s174
      %p178 = scmp.eq.s32.totalorder %s33, 0
      %p179 = por %p177, %p178
      %p180 = scmp.ne.s32.totalorder %s172, %s174
      %p181 = scmp.eq.s32.totalorder %s38, 1
      %p182 = por %p180, %p181
      %p183 = scmp.ne.s32.totalorder %s174, %s175
      %p184 = scmp.eq.s32.totalorder %s38, 0
      %p185 = por %p183, %p184
      %p186 = scmp.ne.s32.totalorder %s174, %s175
      %p187 = scmp.eq.s32.totalorder %s39, 1
      %p188 = por %p186, %p187
      %p190 = scmp.ne.s32.totalorder %s175, %s189
      %p191 = scmp.eq.s32.totalorder %s39, 0
      %p192 = por %p190, %p191
      %s194 = sadd.s32 %s193, 1
      %p197 = scmp.eq.s32.totalorder %s33, 1
      %p198 = scmp.ne.s32.totalorder %s193, %s195
      %p199 = scmp.eq.s32.totalorder %s33, 0
      %p200 = por %p198, %p199
      %p201 = scmp.ne.s32.totalorder %s193, %s195
      %p202 = scmp.eq.s32.totalorder %s38, 1
      %p203 = por %p201, %p202
      %p204 = scmp.ne.s32.totalorder %s195, %s196
      %p205 = scmp.eq.s32.totalorder %s38, 0
      %p206 = por %p204, %p205
      %p207 = scmp.ne.s32.totalorder %s195, %s196
      %p208 = scmp.eq.s32.totalorder %s39, 1
      %p209 = por %p207, %p208
      %p211 = scmp.ne.s32.totalorder %s196, %s210
      %p212 = scmp.eq.s32.totalorder %s39, 0
      %p213 = por %p211, %p212
      %s215 = sadd.s32 %s214, 1
      %p218 = scmp.eq.s32.totalorder %s33, 1
      %p219 = scmp.ne.s32.totalorder %s214, %s216
      %p220 = scmp.eq.s32.totalorder %s33, 0
      %p221 = por %p219, %p220
      %p222 = scmp.ne.s32.totalorder %s214, %s216
      %p223 = scmp.eq.s32.totalorder %s38, 1
      %p224 = por %p222, %p223
      %p225 = scmp.ne.s32.totalorder %s216, %s217
      %p226 = scmp.eq.s32.totalorder %s38, 0
      %p227 = por %p225, %p226
      %p228 = scmp.ne.s32.totalorder %s216, %s217
      %p229 = scmp.eq.s32.totalorder %s39, 1
      %p230 = por %p228, %p229
      %p232 = scmp.ne.s32.totalorder %s217, %s231
      %p233 = scmp.eq.s32.totalorder %s39, 0
      %p234 = por %p232, %p233
      %s236 = sadd.s32 %s235, 1
      %p239 = scmp.eq.s32.totalorder %s33, 1
      %p240 = scmp.ne.s32.totalorder %s235, %s237
      %p241 = scmp.eq.s32.totalorder %s33, 0
      %p242 = por %p240, %p241
      %p243 = scmp.ne.s32.totalorder %s235, %s237
      %p244 = scmp.eq.s32.totalorder %s38, 1
      %p245 = por %p243, %p244
      %p246 = scmp.ne.s32.totalorder %s237, %s238
      %p247 = scmp.eq.s32.totalorder %s38, 0
      %p248 = por %p246, %p247
      %p249 = scmp.ne.s32.totalorder %s237, %s238
      %p250 = scmp.eq.s32.totalorder %s39, 1
      %p251 = por %p249, %p250
      %p253 = scmp.ne.s32.totalorder %s238, %s252
      %p254 = scmp.eq.s32.totalorder %s39, 0
      %p255 = por %p253, %p254
      %s257 = sadd.s32 %s256, 1
      %p260 = scmp.eq.s32.totalorder %s33, 1
      %p261 = scmp.ne.s32.totalorder %s256, %s258
      %p262 = scmp.eq.s32.totalorder %s33, 0
      %p263 = por %p261, %p262
      %p264 = scmp.ne.s32.totalorder %s256, %s258
      %p265 = scmp.eq.s32.totalorder %s38, 1
      %p266 = por %p264, %p265
      %p267 = scmp.ne.s32.totalorder %s258, %s259
      %p268 = scmp.eq.s32.totalorder %s38, 0
      %p269 = por %p267, %p268
      %p270 = scmp.ne.s32.totalorder %s258, %s259
      %p271 = scmp.eq.s32.totalorder %s39, 1
      %p272 = por %p270, %p271
      %p274 = scmp.ne.s32.totalorder %s259, %s273
      %p275 = scmp.eq.s32.totalorder %s39, 0
      %p276 = por %p274, %p275
      %s278 = sadd.s32 %s277, 1
      %p281 = scmp.eq.s32.totalorder %s33, 1
      %p282 = scmp.ne.s32.totalorder %s277, %s279
      %p283 = scmp.eq.s32.totalorder %s33, 0
      %p284 = por %p282, %p283
      %p285 = scmp.ne.s32.totalorder %s277, %s279
      %p286 = scmp.eq.s32.totalorder %s38, 1
      %p287 = por %p285, %p286
      %p288 = scmp.ne.s32.totalorder %s279, %s280
      %p289 = scmp.eq.s32.totalorder %s38, 0
      %p290 = por %p288, %p289
      %p291 = scmp.ne.s32.totalorder %s279, %s280
      %p292 = scmp.eq.s32.totalorder %s39, 1
      %p293 = por %p291, %p292
      %p295 = scmp.ne.s32.totalorder %s280, %s294
      %p296 = scmp.eq.s32.totalorder %s39, 0
      %p297 = por %p295, %p296
      %s299 = sadd.s32 %s298, 1
      %p302 = scmp.eq.s32.totalorder %s33, 1
      %p303 = scmp.ne.s32.totalorder %s298, %s300
      %p304 = scmp.eq.s32.totalorder %s33, 0
      %p305 = por %p303, %p304
      %p306 = scmp.ne.s32.totalorder %s298, %s300
      %p307 = scmp.eq.s32.totalorder %s38, 1
      %p308 = por %p306, %p307
      %p309 = scmp.ne.s32.totalorder %s300, %s301
      %p310 = scmp.eq.s32.totalorder %s38, 0
      %p311 = por %p309, %p310
      %p312 = scmp.ne.s32.totalorder %s300, %s301
      %p313 = scmp.eq.s32.totalorder %s39, 1
      %p314 = por %p312, %p313
      %p316 = scmp.ne.s32.totalorder %s301, %s315
      %p317 = scmp.eq.s32.totalorder %s39, 0
      %p318 = por %p316, %p317
      %s319 = ssub.s32 %s33, %s40
      %p320 = scmp.eq.s32.totalorder %s319, 0
      %s322 = sadd.s32 %s321, 1
      %s323 = scalar_select %p320, %s321, %s322
      %p326 = pneg %p320
      %p327 = scmp.eq.s32.totalorder %s33, 1
      %p328 = por %p326, %p327
      %p329 = scmp.ne.s32.totalorder %s321, %s324
      %p330 = scmp.eq.s32.totalorder %s33, 0
      %p331 = por %p329, %p330
      %p332 = scmp.ne.s32.totalorder %s321, %s324
      %p333 = scmp.eq.s32.totalorder %s38, 1
      %p334 = por %p332, %p333
      %p335 = scmp.ne.s32.totalorder %s324, %s325
      %p336 = scmp.eq.s32.totalorder %s38, 0
      %p337 = por %p335, %p336
      %p338 = scmp.ne.s32.totalorder %s324, %s325
      %p339 = scmp.eq.s32.totalorder %s39, 1
      %p340 = por %p338, %p339
      %p342 = scmp.ne.s32.totalorder %s325, %s341
      %p343 = scmp.eq.s32.totalorder %s39, 0
      %p344 = por %p342, %p343
      %s345 = ssub.s32 %s33, %s40
      %p346 = scmp.eq.s32.totalorder %s345, 0
      %s348 = sadd.s32 %s347, 1
      %s349 = scalar_select %p346, %s347, %s348
      %p352 = pneg %p346
      %p353 = scmp.eq.s32.totalorder %s33, 1
      %p354 = por %p352, %p353
      %p355 = scmp.ne.s32.totalorder %s347, %s350
      %p356 = scmp.eq.s32.totalorder %s33, 0
      %p357 = por %p355, %p356
      %p358 = scmp.ne.s32.totalorder %s347, %s350
      %p359 = scmp.eq.s32.totalorder %s38, 1
      %p360 = por %p358, %p359
      %p361 = scmp.ne.s32.totalorder %s350, %s351
      %p362 = scmp.eq.s32.totalorder %s38, 0
      %p363 = por %p361, %p362
      %p364 = scmp.ne.s32.totalorder %s350, %s351
      %p365 = scmp.eq.s32.totalorder %s39, 1
      %p366 = por %p364, %p365
      %p368 = scmp.ne.s32.totalorder %s351, %s367
      %p369 = scmp.eq.s32.totalorder %s39, 0
      %p370 = por %p368, %p369
      %p371 = scmp.le.s32.totalorder 1, %s33
      %p372 = scmp.lt.s32.totalorder %s33, 3
      %p373 = pnand %p371, %p372
      %p374 = pneg %p373
      // Predicated region
      $region9: #{tpu_custom_call.1} parent=5 // pred_check
        _
      $region10: #{tpu_custom_call.1} parent=5 // pred_check_branch
        %376 = sbr.rel (%p373) target = $region12
      $region11: #{tpu_custom_call.1} parent=5 // pred_region
        %s377 = ssub.s32 %s33, 1
        // Predicated region
        $region13: #{tpu_custom_call.1} parent=11 // pred_check
          %p378 = pneg %p80
        $region14: #{tpu_custom_call.1} parent=11 // pred_check_branch
          %380 = sbr.rel (%p378) target = $region16
        $region15: #{tpu_custom_call.1} parent=11 // pred_region
          %s382 = ssub.s32 2048, 2048
          %383 = vsyncadd [#allocation6], %s382
          %s384 = sshll.u32 [#allocation5], 4
          %s385 = int_to_ptr.vmem [resolvable:$true] %s384
          %390 = dma.hbm_to_vmem [thread:$0]  %s1, 2048, %s385, [#allocation6], 64, 64, 4
        $region16: #{tpu_custom_call.1} parent=11 // pred_fallthru
          _
        // Predicated region
        $region17: #{tpu_custom_call.1} parent=11 // pred_check
          %p391 = pneg %p101
        $region18: #{tpu_custom_call.1} parent=11 // pred_check_branch
          %393 = sbr.rel (%p391) target = $region20
        $region19: #{tpu_custom_call.1} parent=11 // pred_region
          _
        $region20: #{tpu_custom_call.1} parent=11 // pred_fallthru
          _
        // Predicated region
        $region21: #{tpu_custom_call.1} parent=11 // pred_check
          %p394 = pneg %p122
        $region22: #{tpu_custom_call.1} parent=11 // pred_check_branch
          %396 = sbr.rel (%p394) target = $region24
        $region23: #{tpu_custom_call.1} parent=11 // pred_region
          %s398 = ssub.s32 1024, 1024
          %399 = vsyncadd [#allocation6], %s398
          %s400 = sshll.u32 [#allocation7], 4
          %s401 = int_to_ptr.vmem [resolvable:$true] %s400
          %406 = dma.hbm_to_vmem [thread:$0]  %s3, 1024, %s401, [#allocation6], 64, 64, 4
        $region24: #{tpu_custom_call.1} parent=11 // pred_fallthru
          _
        // Predicated region
        $region25: #{tpu_custom_call.1} parent=11 // pred_check
          %p407 = pneg %p143
        $region26: #{tpu_custom_call.1} parent=11 // pred_check_branch
          %409 = sbr.rel (%p407) target = $region28
        $region27: #{tpu_custom_call.1} parent=11 // pred_region
          _
        $region28: #{tpu_custom_call.1} parent=11 // pred_fallthru
          _
        // Predicated region
        $region29: #{tpu_custom_call.1} parent=11 // pred_check
          %p410 = pneg %p164
        $region30: #{tpu_custom_call.1} parent=11 // pred_check_branch
          %412 = sbr.rel (%p410) target = $region32
        $region31: #{tpu_custom_call.1} parent=11 // pred_region
          %s414 = ssub.s32 1024, 1024
          %415 = vsyncadd [#allocation9], %s414
          %s416 = sshll.u32 [#allocation8], 4
          %s417 = int_to_ptr.vmem [resolvable:$true] %s416
          %422 = dma.hbm_to_vmem [thread:$0]  %s5, 1024, %s417, [#allocation9], 64, 64, 4
        $region32: #{tpu_custom_call.1} parent=11 // pred_fallthru
          _
        // Predicated region
        $region33: #{tpu_custom_call.1} parent=11 // pred_check
          %p423 = pneg %p185
        $region34: #{tpu_custom_call.1} parent=11 // pred_check_branch
          %425 = sbr.rel (%p423) target = $region36
        $region35: #{tpu_custom_call.1} parent=11 // pred_region
          _
        $region36: #{tpu_custom_call.1} parent=11 // pred_fallthru
          _
        // Predicated region
        $region37: #{tpu_custom_call.1} parent=11 // pred_check
          %p426 = pneg %p206
        $region38: #{tpu_custom_call.1} parent=11 // pred_check_branch
          %428 = sbr.rel (%p426) target = $region40
        $region39: #{tpu_custom_call.1} parent=11 // pred_region
          %s430 = ssub.s32 1024, 1024
          %431 = vsyncadd [#allocation9], %s430
          %s432 = sshll.u32 [#allocation10], 4
          %s433 = int_to_ptr.vmem [resolvable:$true] %s432
          %438 = dma.hbm_to_vmem [thread:$0]  %s7, 1024, %s433, [#allocation9], 64, 64, 4
        $region40: #{tpu_custom_call.1} parent=11 // pred_fallthru
          _
        // Predicated region
        $region41: #{tpu_custom_call.1} parent=11 // pred_check
          %p439 = pneg %p227
        $region42: #{tpu_custom_call.1} parent=11 // pred_check_branch
          %441 = sbr.rel (%p439) target = $region44
        $region43: #{tpu_custom_call.1} parent=11 // pred_region
          _
        $region44: #{tpu_custom_call.1} parent=11 // pred_fallthru
          _
        // Predicated region
        $region45: #{tpu_custom_call.1} parent=11 // pred_check
          %p442 = pneg %p248
        $region46: #{tpu_custom_call.1} parent=11 // pred_check_branch
          %444 = sbr.rel (%p442) target = $region48
        $region47: #{tpu_custom_call.1} parent=11 // pred_region
          %s446 = ssub.s32 1024, 1024
          %447 = vsyncadd [#allocation12], %s446
          %s448 = sshll.u32 [#allocation11], 4
          %s449 = int_to_ptr.vmem [resolvable:$true] %s448
          %454 = dma.hbm_to_vmem [thread:$0]  %s9, 1024, %s449, [#allocation12], 64, 64, 4
        $region48: #{tpu_custom_call.1} parent=11 // pred_fallthru
          _
        // Predicated region
        $region49: #{tpu_custom_call.1} parent=11 // pred_check
          %p455 = pneg %p269
        $region50: #{tpu_custom_call.1} parent=11 // pred_check_branch
          %457 = sbr.rel (%p455) target = $region52
        $region51: #{tpu_custom_call.1} parent=11 // pred_region
          _
        $region52: #{tpu_custom_call.1} parent=11 // pred_fallthru
          _
        // Predicated region
        $region53: #{tpu_custom_call.1} parent=11 // pred_check
          %p458 = pneg %p290
        $region54: #{tpu_custom_call.1} parent=11 // pred_check_branch
          %460 = sbr.rel (%p458) target = $region56
        $region55: #{tpu_custom_call.1} parent=11 // pred_region
          %s462 = ssub.s32 2048, 2048
          %463 = vsyncadd [#allocation12], %s462
          %s464 = sshll.u32 [#allocation13], 4
          %s465 = int_to_ptr.vmem [resolvable:$true] %s464
          %470 = dma.hbm_to_vmem [thread:$0]  %s11, 2048, %s465, [#allocation12], 128, 128, 8
        $region56: #{tpu_custom_call.1} parent=11 // pred_fallthru
          _
        // Predicated region
        $region57: #{tpu_custom_call.1} parent=11 // pred_check
          %p471 = pneg %p311
        $region58: #{tpu_custom_call.1} parent=11 // pred_check_branch
          %473 = sbr.rel (%p471) target = $region60
        $region59: #{tpu_custom_call.1} parent=11 // pred_region
          _
        $region60: #{tpu_custom_call.1} parent=11 // pred_fallthru
          _
      $region12: #{tpu_custom_call.1} parent=5 // pred_fallthru
        _
      %p474 = scmp.lt.s32.totalorder %s33, 2
      // Predicated region
      $region61: #{tpu_custom_call.1} parent=5 // pred_check
        %p475 = pneg %p474
      $region62: #{tpu_custom_call.1} parent=5 // pred_check_branch
        %477 = sbr.rel (%p475) target = $region64
      $region63: #{tpu_custom_call.1} parent=5 // pred_region
        // Predicated region
        $region65: #{tpu_custom_call.1} parent=63 // pred_check
          %p478 = pneg %p53
        $region66: #{tpu_custom_call.1} parent=63 // pred_check_branch
          %480 = sbr.rel (%p478) target = $region68
        $region67: #{tpu_custom_call.1} parent=63 // pred_region
          %s481 = sand.u32 %s43, 1
          %s482 = scalar_lea.sflag [#allocation3], %s481
          %s483 = sand.u32 %s43, 1
          %s484 = smul.addr %s483, 256
          %s485 = scalar_lea.vmem [#allocation2], %s484
          %s486 = smul.u32 16, %s33
          %s488 = ssub.s32 4096, 4096
          %489 = vsyncadd %s482, %s488
          %s490 = smul.addr %s486, 2
          %s491 = smul.addr %s490, 128
          %s492 = scalar_lea.hbm %s0, %s491
          %s493 = sshll.u32 %s485, 4
          %s494 = int_to_ptr.vmem [resolvable:$true] %s493
          %499 = dma.hbm_to_vmem [thread:$0]  %s492, 4096, %s494, %s482, 256, 256, 16
        $region68: #{tpu_custom_call.1} parent=63 // pred_fallthru
          _
      $region64: #{tpu_custom_call.1} parent=5 // pred_fallthru
        _
      %p500 = scmp.le.s32.totalorder 1, %s33
      %p501 = scmp.lt.s32.totalorder %s33, 3
      %p502 = pnand %p500, %p501
      %p503 = pneg %p502
      // Predicated region
      $region69: #{tpu_custom_call.1} parent=5 // pred_check
        _
      $region70: #{tpu_custom_call.1} parent=5 // pred_check_branch
        %505 = sbr.rel (%p502) target = $region72
      $region71: #{tpu_custom_call.1} parent=5 // pred_region
        %s506 = ssub.s32 %s33, 1
        %s507 = sand.u32 %s46, 1
        %s508 = scalar_lea.sflag [#allocation3], %s507
        %s509 = sand.u32 %s46, 1
        %s510 = smul.addr %s509, 256
        %s511 = scalar_lea.vmem [#allocation2], %s510
        // Predicated region
        $region73: #{tpu_custom_call.1} parent=71 // pred_check
          %p512 = pneg %p59
        $region74: #{tpu_custom_call.1} parent=71 // pred_check_branch
          %514 = sbr.rel (%p512) target = $region76
        $region75: #{tpu_custom_call.1} parent=71 // pred_region
          %515 = dma.done %s508, 4096
        $region76: #{tpu_custom_call.1} parent=71 // pred_fallthru
          _
        // Predicated region
        $region77: #{tpu_custom_call.1} parent=71 // pred_check
          %p516 = pneg %p80
        $region78: #{tpu_custom_call.1} parent=71 // pred_check_branch
          %518 = sbr.rel (%p516) target = $region80
        $region79: #{tpu_custom_call.1} parent=71 // pred_region
          %519 = dma.done [#allocation6], 2048
        $region80: #{tpu_custom_call.1} parent=71 // pred_fallthru
          _
        // Predicated region
        $region81: #{tpu_custom_call.1} parent=71 // pred_check
          %p520 = pneg %p122
        $region82: #{tpu_custom_call.1} parent=71 // pred_check_branch
          %522 = sbr.rel (%p520) target = $region84
        $region83: #{tpu_custom_call.1} parent=71 // pred_region
          %523 = dma.done [#allocation6], 1024
        $region84: #{tpu_custom_call.1} parent=71 // pred_fallthru
          _
        // Predicated region
        $region85: #{tpu_custom_call.1} parent=71 // pred_check
          %p524 = pneg %p164
        $region86: #{tpu_custom_call.1} parent=71 // pred_check_branch
          %526 = sbr.rel (%p524) target = $region88
        $region87: #{tpu_custom_call.1} parent=71 // pred_region
          %527 = dma.done [#allocation9], 1024
        $region88: #{tpu_custom_call.1} parent=71 // pred_fallthru
          _
        // Predicated region
        $region89: #{tpu_custom_call.1} parent=71 // pred_check
          %p528 = pneg %p206
        $region90: #{tpu_custom_call.1} parent=71 // pred_check_branch
          %530 = sbr.rel (%p528) target = $region92
        $region91: #{tpu_custom_call.1} parent=71 // pred_region
          %531 = dma.done [#allocation9], 1024
        $region92: #{tpu_custom_call.1} parent=71 // pred_fallthru
          _
        // Predicated region
        $region93: #{tpu_custom_call.1} parent=71 // pred_check
          %p532 = pneg %p248
        $region94: #{tpu_custom_call.1} parent=71 // pred_check_branch
          %534 = sbr.rel (%p532) target = $region96
        $region95: #{tpu_custom_call.1} parent=71 // pred_region
          %535 = dma.done [#allocation12], 1024
        $region96: #{tpu_custom_call.1} parent=71 // pred_fallthru
          _
        // Predicated region
        $region97: #{tpu_custom_call.1} parent=71 // pred_check
          %p536 = pneg %p290
        $region98: #{tpu_custom_call.1} parent=71 // pred_check_branch
          %538 = sbr.rel (%p536) target = $region100
        $region99: #{tpu_custom_call.1} parent=71 // pred_region
          %539 = dma.done [#allocation12], 2048
        $region100: #{tpu_custom_call.1} parent=71 // pred_fallthru
          _
        %s540 = sand.u32 %s46, 1
        %s541 = scalar_lea.sflag [#allocation3], %s540
        %s542 = sand.u32 %s46, 1
        %s543 = smul.addr %s542, 256
        %s544 = scalar_lea.vmem [#allocation2], %s543
        %p545 = pneg %p59
        %p546 = pneg %p56
        %p547 = pneg %p80
        %p548 = pneg %p77
        %p549 = pneg %p101
        %p550 = pneg %p98
        %p551 = pneg %p122
        %p552 = pneg %p119
        %p553 = pneg %p143
        %p554 = pneg %p140
        %p555 = pneg %p164
        %p556 = pneg %p161
        %p557 = pneg %p185
        %p558 = pneg %p182
        %p559 = pneg %p206
        %p560 = pneg %p203
        %p561 = pneg %p227
        %p562 = pneg %p224
        %p563 = pneg %p248
        %p564 = pneg %p245
        %p565 = pneg %p269
        %p566 = pneg %p266
        %p567 = pneg %p290
        %p568 = pneg %p287
        %p569 = pneg %p311
        %p570 = pneg %p308
        %p571 = pneg %p337
        %p572 = pneg %p334
        %s573 = sand.u32 %s324, 1
        %s574 = scalar_lea.sflag [#allocation4], %s573
        %s575 = sand.u32 %s324, 1
        %s576 = smul.addr %s575, 256
        %s577 = scalar_lea.vmem [#allocation14], %s576
        %p578 = pneg %p363
        %p579 = pneg %p360
        %s580 = sand.u32 %s350, 1
        %s581 = scalar_lea.sflag [#allocation16], %s580
        %s582 = sand.u32 %s350, 1
        %s583 = smul.addr %s582, 128
        %s584 = scalar_lea.vmem [#allocation15], %s583
        %s585 = smul.u32 16, %s38
        %s586 = smul.u32 16, %s38
        %s587 = smul.u32 16, %s38
        %v589 = vld [vmem:[%s511] sm:$0xff]
        %v590 = vld [vmem:[%s511 + $0x8] sm:$0xff]
        %v591 = vld [vmem:[%s511 + $0x10] sm:$0xff]
        %v592 = vld [vmem:[%s511 + $0x18] sm:$0xff]
        %v593 = vld [vmem:[%s511 + $0x20] sm:$0xff]
        %v594 = vld [vmem:[%s511 + $0x28] sm:$0xff]
        %v595 = vld [vmem:[%s511 + $0x30] sm:$0xff]
        %v596 = vld [vmem:[%s511 + $0x38] sm:$0xff]
        %v597 = vld [vmem:[%s511 + $0x40] sm:$0xff]
        %v598 = vld [vmem:[%s511 + $0x48] sm:$0xff]
        %v599 = vld [vmem:[%s511 + $0x50] sm:$0xff]
        %v600 = vld [vmem:[%s511 + $0x58] sm:$0xff]
        %v601 = vld [vmem:[%s511 + $0x60] sm:$0xff]
        %v602 = vld [vmem:[%s511 + $0x68] sm:$0xff]
        %v603 = vld [vmem:[%s511 + $0x70] sm:$0xff]
        %v604 = vld [vmem:[%s511 + $0x78] sm:$0xff]
        %v605 = vld [vmem:[%s511 + $0x80] sm:$0xff]
        %v606 = vld [vmem:[%s511 + $0x88] sm:$0xff]
        %v607 = vld [vmem:[%s511 + $0x90] sm:$0xff]
        %v608 = vld [vmem:[%s511 + $0x98] sm:$0xff]
        %v609 = vld [vmem:[%s511 + $0xa0] sm:$0xff]
        %v610 = vld [vmem:[%s511 + $0xa8] sm:$0xff]
        %v611 = vld [vmem:[%s511 + $0xb0] sm:$0xff]
        %v612 = vld [vmem:[%s511 + $0xb8] sm:$0xff]
        %v613 = vld [vmem:[%s511 + $0xc0] sm:$0xff]
        %v614 = vld [vmem:[%s511 + $0xc8] sm:$0xff]
        %v615 = vld [vmem:[%s511 + $0xd0] sm:$0xff]
        %v616 = vld [vmem:[%s511 + $0xd8] sm:$0xff]
        %v617 = vld [vmem:[%s511 + $0xe0] sm:$0xff]
        %v618 = vld [vmem:[%s511 + $0xe8] sm:$0xff]
        %v619 = vld [vmem:[%s511 + $0xf0] sm:$0xff]
        %v620 = vld [vmem:[%s511 + $0xf8] sm:$0xff]
        %v621 = vpack.c.bf16 %v591, %v589
        %v622 = vpack.c.bf16 %v592, %v590
        %v623 = vpack.c.bf16 %v595, %v593
        %v624 = vpack.c.bf16 %v596, %v594
        %v625 = vpack.c.bf16 %v599, %v597
        %v626 = vpack.c.bf16 %v600, %v598
        %v627 = vpack.c.bf16 %v603, %v601
        %v628 = vpack.c.bf16 %v604, %v602
        %v629 = vpack.c.bf16 %v607, %v605
        %v630 = vpack.c.bf16 %v608, %v606
        %v631 = vpack.c.bf16 %v611, %v609
        %v632 = vpack.c.bf16 %v612, %v610
        %v633 = vpack.c.bf16 %v615, %v613
        %v634 = vpack.c.bf16 %v616, %v614
        %v635 = vpack.c.bf16 %v619, %v617
        %v636 = vpack.c.bf16 %v620, %v618
        %v637 = vld [vmem:[#allocation5] sm:$0xf]
        %v638 = vld [vmem:[#allocation5 + $0x4] sm:$0xf]
        %v639 = vld [vmem:[#allocation5 + $0x8] sm:$0xf]
        %v640 = vld [vmem:[#allocation5 + $0xc] sm:$0xf]
        %v641 = vld [vmem:[#allocation5 + $0x10] sm:$0xf]
        %v642 = vld [vmem:[#allocation5 + $0x14] sm:$0xf]
        %v643 = vld [vmem:[#allocation5 + $0x18] sm:$0xf]
        %v644 = vld [vmem:[#allocation5 + $0x1c] sm:$0xf]
        %v645 = vld [vmem:[#allocation5 + $0x20] sm:$0xf]
        %v646 = vld [vmem:[#allocation5 + $0x24] sm:$0xf]
        %v647 = vld [vmem:[#allocation5 + $0x28] sm:$0xf]
        %v648 = vld [vmem:[#allocation5 + $0x2c] sm:$0xf]
        %v649 = vld [vmem:[#allocation5 + $0x30] sm:$0xf]
        %v650 = vld [vmem:[#allocation5 + $0x34] sm:$0xf]
        %v651 = vld [vmem:[#allocation5 + $0x38] sm:$0xf]
        %v652 = vld [vmem:[#allocation5 + $0x3c] sm:$0xf]
        %v653 = vld [vmem:[#allocation5 + $0x40] sm:$0xf]
        %v654 = vld [vmem:[#allocation5 + $0x44] sm:$0xf]
        %v655 = vld [vmem:[#allocation5 + $0x48] sm:$0xf]
        %v656 = vld [vmem:[#allocation5 + $0x4c] sm:$0xf]
        %v657 = vld [vmem:[#allocation5 + $0x50] sm:$0xf]
        %v658 = vld [vmem:[#allocation5 + $0x54] sm:$0xf]
        %v659 = vld [vmem:[#allocation5 + $0x58] sm:$0xf]
        %v660 = vld [vmem:[#allocation5 + $0x5c] sm:$0xf]
        %v661 = vld [vmem:[#allocation5 + $0x60] sm:$0xf]
        %v662 = vld [vmem:[#allocation5 + $0x64] sm:$0xf]
        %v663 = vld [vmem:[#allocation5 + $0x68] sm:$0xf]
        %v664 = vld [vmem:[#allocation5 + $0x6c] sm:$0xf]
        %v665 = vld [vmem:[#allocation5 + $0x70] sm:$0xf]
        %v666 = vld [vmem:[#allocation5 + $0x74] sm:$0xf]
        %v667 = vld [vmem:[#allocation5 + $0x78] sm:$0xf]
        %v668 = vld [vmem:[#allocation5 + $0x7c] sm:$0xf]
        %v669 = vld [vmem:[%s2] sm:$0x1]
        %v671 = vlaneseq
        %v672 = vshrl.u32 %v671, 7
        %v673 = vsub.s32 0, %v672
        %v674 = vrot.slane %v669, %v673
        %v708 = vunpack.c.l.b16 %v637
        %v709 = vunpack.c.l.b16 %v638
        %v710 = vunpack.c.l.b16 %v639
        %v711 = vunpack.c.l.b16 %v640
        %v712 = vunpack.c.l.b16 %v641
        %v713 = vunpack.c.l.b16 %v642
        %v714 = vunpack.c.l.b16 %v643
        %v715 = vunpack.c.l.b16 %v644
        %v716 = vunpack.c.l.b16 %v645
        %v717 = vunpack.c.l.b16 %v646
        %v718 = vunpack.c.l.b16 %v647
        %v719 = vunpack.c.l.b16 %v648
        %v720 = vunpack.c.l.b16 %v649
        %v721 = vunpack.c.l.b16 %v650
        %v722 = vunpack.c.l.b16 %v651
        %v723 = vunpack.c.l.b16 %v652
        %v724 = vunpack.c.l.b16 %v653
        %v725 = vunpack.c.l.b16 %v654
        %v726 = vunpack.c.l.b16 %v655
        %v727 = vunpack.c.l.b16 %v656
        %v728 = vunpack.c.l.b16 %v657
        %v729 = vunpack.c.l.b16 %v658
        %v730 = vunpack.c.l.b16 %v659
        %v731 = vunpack.c.l.b16 %v660
        %v732 = vunpack.c.l.b16 %v661
        %v733 = vunpack.c.l.b16 %v662
        %v734 = vunpack.c.l.b16 %v663
        %v735 = vunpack.c.l.b16 %v664
        %v736 = vunpack.c.l.b16 %v665
        %v737 = vunpack.c.l.b16 %v666
        %v738 = vunpack.c.l.b16 %v667
        %v739 = vunpack.c.l.b16 %v668
        %v740 = vpack.c.b16 %v709, %v708
        %v741 = vpack.c.b16 %v711, %v710
        %v742 = vpack.c.b16 %v713, %v712
        %v743 = vpack.c.b16 %v715, %v714
        %v744 = vpack.c.b16 %v717, %v716
        %v745 = vpack.c.b16 %v719, %v718
        %v746 = vpack.c.b16 %v721, %v720
        %v747 = vpack.c.b16 %v723, %v722
        %v748 = vpack.c.b16 %v725, %v724
        %v749 = vpack.c.b16 %v727, %v726
        %v750 = vpack.c.b16 %v729, %v728
        %v751 = vpack.c.b16 %v731, %v730
        %v752 = vpack.c.b16 %v733, %v732
        %v753 = vpack.c.b16 %v735, %v734
        %v754 = vpack.c.b16 %v737, %v736
        %v755 = vpack.c.b16 %v739, %v738
        %772 = vmatprep.subr.bf16.mxu0 0
        %773 = vmatpush1.bf16.msra.mxu0 %v740
        %774 = vmatprep.subr.bf16.mxu0 0
        %775 = vmatpush1.bf16.msra.mxu0 %v741
        %776 = vmatprep.subr.bf16.mxu0 0
        %777 = vmatpush1.bf16.msra.mxu0 %v742
        %778 = vmatprep.subr.bf16.mxu0 0
        %779 = vmatpush1.bf16.msra.mxu0 %v743
        %780 = vmatprep.subr.bf16.mxu0 0
        %781 = vmatpush1.bf16.msra.mxu0 %v744
        %782 = vmatprep.subr.bf16.mxu0 0
        %783 = vmatpush1.bf16.msra.mxu0 %v745
        %784 = vmatprep.subr.bf16.mxu0 0
        %785 = vmatpush1.bf16.msra.mxu0 %v746
        %786 = vmatprep.subr.bf16.mxu0 0
        %787 = vmatpush1.bf16.msra.mxu0 %v747
        %788 = vmatprep.subr.bf16.mxu0 0
        %789 = vmatpush1.bf16.msra.mxu0 %v748
        %790 = vmatprep.subr.bf16.mxu0 0
        %791 = vmatpush1.bf16.msra.mxu0 %v749
        %792 = vmatprep.subr.bf16.mxu0 0
        %793 = vmatpush1.bf16.msra.mxu0 %v750
        %794 = vmatprep.subr.bf16.mxu0 0
        %795 = vmatpush1.bf16.msra.mxu0 %v751
        %796 = vmatprep.subr.bf16.mxu0 0
        %797 = vmatpush1.bf16.msra.mxu0 %v752
        %798 = vmatprep.subr.bf16.mxu0 0
        %799 = vmatpush1.bf16.msra.mxu0 %v753
        %800 = vmatprep.subr.bf16.mxu0 0
        %801 = vmatpush1.bf16.msra.mxu0 %v754
        %802 = vmatprep.subr.bf16.mxu0 0
        %803 = vmatpush1.bf16.msra.mxu0 %v755
        %804 = vmatprep.mubr.bf16.mxu0 %v622
        %805 = vmatmul.mubr.bf16.gmra.mrb[0].mxu0 %v621
        %v806 = vpop.f32.mrb[0].mxu0
        %v807 = vadd.f32 %v674, %v806
        %v808 = vpop.f32.mrb[0].mxu0
        %v809 = vpop.f32.mrb[0].mxu0
        %v810 = vadd.f32 %v674, %v809
        %v811 = vpop.f32.mrb[0].mxu0
        %812 = vmatprep.mubr.bf16.mxu0 %v624
        %813 = vmatmul.mubr.bf16.gmra.mrb[0].mxu0 %v623
        %v814 = vpop.f32.mrb[0].mxu0
        %v815 = vadd.f32 %v674, %v814
        %v816 = vpop.f32.mrb[0].mxu0
        %v817 = vpop.f32.mrb[0].mxu0
        %v818 = vadd.f32 %v674, %v817
        %v819 = vpop.f32.mrb[0].mxu0
        %820 = vmatprep.mubr.bf16.mxu0 %v626
        %821 = vmatmul.mubr.bf16.gmra.mrb[0].mxu0 %v625
        %v822 = vpop.f32.mrb[0].mxu0
        %v823 = vadd.f32 %v674, %v822
        %v824 = vpop.f32.mrb[0].mxu0
        %v825 = vpop.f32.mrb[0].mxu0
        %v826 = vadd.f32 %v674, %v825
        %v827 = vpop.f32.mrb[0].mxu0
        %828 = vmatprep.mubr.bf16.mxu0 %v628
        %829 = vmatmul.mubr.bf16.gmra.mrb[0].mxu0 %v627
        %v830 = vpop.f32.mrb[0].mxu0
        %v831 = vadd.f32 %v674, %v830
        %v832 = vpop.f32.mrb[0].mxu0
        %v833 = vpop.f32.mrb[0].mxu0
        %v834 = vadd.f32 %v674, %v833
        %v835 = vpop.f32.mrb[0].mxu0
        %836 = vmatprep.mubr.bf16.mxu0 %v630
        %837 = vmatmul.mubr.bf16.gmra.mrb[0].mxu0 %v629
        %v838 = vpop.f32.mrb[0].mxu0
        %v839 = vadd.f32 %v674, %v838
        %v840 = vpop.f32.mrb[0].mxu0
        %v841 = vpop.f32.mrb[0].mxu0
        %v842 = vadd.f32 %v674, %v841
        %v843 = vpop.f32.mrb[0].mxu0
        %844 = vmatprep.mubr.bf16.mxu0 %v632
        %845 = vmatmul.mubr.bf16.gmra.mrb[0].mxu0 %v631
        %v846 = vpop.f32.mrb[0].mxu0
        %v847 = vadd.f32 %v674, %v846
        %v848 = vpop.f32.mrb[0].mxu0
        %v849 = vpop.f32.mrb[0].mxu0
        %v850 = vadd.f32 %v674, %v849
        %v851 = vpop.f32.mrb[0].mxu0
        %852 = vmatprep.mubr.bf16.mxu0 %v634
        %853 = vmatmul.mubr.bf16.gmra.mrb[0].mxu0 %v633
        %v854 = vpop.f32.mrb[0].mxu0
        %v855 = vadd.f32 %v674, %v854
        %v856 = vpop.f32.mrb[0].mxu0
        %v857 = vpop.f32.mrb[0].mxu0
        %v858 = vadd.f32 %v674, %v857
        %v859 = vpop.f32.mrb[0].mxu0
        %860 = vmatprep.mubr.bf16.mxu0 %v636
        %861 = vmatmul.mubr.bf16.gmra.mrb[0].mxu0 %v635
        %v862 = vpop.f32.mrb[0].mxu0
        %v863 = vadd.f32 %v674, %v862
        %v864 = vpop.f32.mrb[0].mxu0
        %v865 = vpop.f32.mrb[0].mxu0
        %v866 = vadd.f32 %v674, %v865
        %v867 = vpop.f32.mrb[0].mxu0
        %868 = vdwg.mxu0
        %v869 = vtanh.pop %v807
        %v870 = vtanh.pop %v810
        %v871 = vtanh.pop %v815
        %v872 = vtanh.pop %v818
        %v873 = vtanh.pop %v823
        %v874 = vtanh.pop %v826
        %v875 = vtanh.pop %v831
        %v876 = vtanh.pop %v834
        %v877 = vtanh.pop %v839
        %v878 = vtanh.pop %v842
        %v879 = vtanh.pop %v847
        %v880 = vtanh.pop %v850
        %v881 = vtanh.pop %v855
        %v882 = vtanh.pop %v858
        %v883 = vtanh.pop %v863
        %v884 = vtanh.pop %v866
        %v885 = vpack.c.bf16 %v870, %v869
        %v886 = vpack.c.bf16 %v872, %v871
        %v887 = vpack.c.bf16 %v874, %v873
        %v888 = vpack.c.bf16 %v876, %v875
        %v889 = vpack.c.bf16 %v878, %v877
        %v890 = vpack.c.bf16 %v880, %v879
        %v891 = vpack.c.bf16 %v882, %v881
        %v892 = vpack.c.bf16 %v884, %v883
        %v893 = vld [vmem:[#allocation7] sm:$0xf]
        %v894 = vld [vmem:[#allocation7 + $0x4] sm:$0xf]
        %v895 = vld [vmem:[#allocation7 + $0x8] sm:$0xf]
        %v896 = vld [vmem:[#allocation7 + $0xc] sm:$0xf]
        %v897 = vld [vmem:[#allocation7 + $0x10] sm:$0xf]
        %v898 = vld [vmem:[#allocation7 + $0x14] sm:$0xf]
        %v899 = vld [vmem:[#allocation7 + $0x18] sm:$0xf]
        %v900 = vld [vmem:[#allocation7 + $0x1c] sm:$0xf]
        %v901 = vld [vmem:[#allocation7 + $0x20] sm:$0xf]
        %v902 = vld [vmem:[#allocation7 + $0x24] sm:$0xf]
        %v903 = vld [vmem:[#allocation7 + $0x28] sm:$0xf]
        %v904 = vld [vmem:[#allocation7 + $0x2c] sm:$0xf]
        %v905 = vld [vmem:[#allocation7 + $0x30] sm:$0xf]
        %v906 = vld [vmem:[#allocation7 + $0x34] sm:$0xf]
        %v907 = vld [vmem:[#allocation7 + $0x38] sm:$0xf]
        %v908 = vld [vmem:[#allocation7 + $0x3c] sm:$0xf]
        %v909 = vld [vmem:[%s4] sm:$0x1]
        %v911 = vlaneseq
        %v912 = vshrl.u32 %v911, 7
        %v913 = vsub.s32 0, %v912
        %v914 = vrot.slane %v909, %v913
        %v932 = vunpack.c.l.b16 %v893
        %v933 = vunpack.c.l.b16 %v894
        %v934 = vunpack.c.l.b16 %v895
        %v935 = vunpack.c.l.b16 %v896
        %v936 = vunpack.c.l.b16 %v897
        %v937 = vunpack.c.l.b16 %v898
        %v938 = vunpack.c.l.b16 %v899
        %v939 = vunpack.c.l.b16 %v900
        %v940 = vunpack.c.l.b16 %v901
        %v941 = vunpack.c.l.b16 %v902
        %v942 = vunpack.c.l.b16 %v903
        %v943 = vunpack.c.l.b16 %v904
        %v944 = vunpack.c.l.b16 %v905
        %v945 = vunpack.c.l.b16 %v906
        %v946 = vunpack.c.l.b16 %v907
        %v947 = vunpack.c.l.b16 %v908
        %v948 = vpack.c.b16 %v933, %v932
        %v949 = vpack.c.b16 %v935, %v934
        %v950 = vpack.c.b16 %v937, %v936
        %v951 = vpack.c.b16 %v939, %v938
        %v952 = vpack.c.b16 %v941, %v940
        %v953 = vpack.c.b16 %v943, %v942
        %v954 = vpack.c.b16 %v945, %v944
        %v955 = vpack.c.b16 %v947, %v946
        %964 = vmatprep.subr.bf16.mxu0 0
        %965 = vmatpush1.bf16.msra.mxu0 %v948
        %966 = vmatprep.subr.bf16.mxu0 0
        %967 = vmatpush1.bf16.msra.mxu0 %v949
        %968 = vmatprep.subr.bf16.mxu0 0
        %969 = vmatpush1.bf16.msra.mxu0 %v950
        %970 = vmatprep.subr.bf16.mxu0 0
        %971 = vmatpush1.bf16.msra.mxu0 %v951
        %972 = vmatprep.subr.bf16.mxu0 0
        %973 = vmatpush1.bf16.msra.mxu0 %v952
        %974 = vmatprep.subr.bf16.mxu0 0
        %975 = vmatpush1.bf16.msra.mxu0 %v953
        %976 = vmatprep.subr.bf16.mxu0 0
        %977 = vmatpush1.bf16.msra.mxu0 %v954
        %978 = vmatprep.subr.bf16.mxu0 0
        %979 = vmatpush1.bf16.msra.mxu0 %v955
        %980 = vmatprep.subr.bf16.mxu0 0
        %981 = vmatpush1.bf16.msra.mxu0 0
        %982 = vmatprep.subr.bf16.mxu0 0
        %983 = vmatpush1.bf16.msra.mxu0 0
        %984 = vmatprep.subr.bf16.mxu0 0
        %985 = vmatpush1.bf16.msra.mxu0 0
        %986 = vmatprep.subr.bf16.mxu0 0
        %987 = vmatpush1.bf16.msra.mxu0 0
        %988 = vmatprep.subr.bf16.mxu0 0
        %989 = vmatpush1.bf16.msra.mxu0 0
        %990 = vmatprep.subr.bf16.mxu0 0
        %991 = vmatpush1.bf16.msra.mxu0 0
        %992 = vmatprep.subr.bf16.mxu0 0
        %993 = vmatpush1.bf16.msra.mxu0 0
        %994 = vmatprep.subr.bf16.mxu0 0
        %995 = vmatpush1.bf16.msra.mxu0 0
        %996 = vmatprep.mubr.bf16.mxu0 0
        %997 = vmatmul.mubr.bf16.gmra.mrb[0].mxu0 %v885
        %v998 = vpop.f32.mrb[0].mxu0
        %v999 = vadd.f32 %v914, %v998
        %v1000 = vpop.f32.mrb[0].mxu0
        %v1001 = vpop.f32.mrb[0].mxu0
        %v1002 = vadd.f32 %v914, %v1001
        %v1003 = vpop.f32.mrb[0].mxu0
        %1004 = vmatprep.mubr.bf16.mxu0 0
        %1005 = vmatmul.mubr.bf16.gmra.mrb[0].mxu0 %v886
        %v1006 = vpop.f32.mrb[0].mxu0
        %v1007 = vadd.f32 %v914, %v1006
        %v1008 = vpop.f32.mrb[0].mxu0
        %v1009 = vpop.f32.mrb[0].mxu0
        %v1010 = vadd.f32 %v914, %v1009
        %v1011 = vpop.f32.mrb[0].mxu0
        %1012 = vmatprep.mubr.bf16.mxu0 0
        %1013 = vmatmul.mubr.bf16.gmra.mrb[0].mxu0 %v887
        %v1014 = vpop.f32.mrb[0].mxu0
        %v1015 = vadd.f32 %v914, %v1014
        %v1016 = vpop.f32.mrb[0].mxu0
        %v1017 = vpop.f32.mrb[0].mxu0
        %v1018 = vadd.f32 %v914, %v1017
        %v1019 = vpop.f32.mrb[0].mxu0
        %1020 = vmatprep.mubr.bf16.mxu0 0
        %1021 = vmatmul.mubr.bf16.gmra.mrb[0].mxu0 %v888
        %v1022 = vpop.f32.mrb[0].mxu0
        %v1023 = vadd.f32 %v914, %v1022
        %v1024 = vpop.f32.mrb[0].mxu0
        %v1025 = vpop.f32.mrb[0].mxu0
        %v1026 = vadd.f32 %v914, %v1025
        %v1027 = vpop.f32.mrb[0].mxu0
        %1028 = vmatprep.mubr.bf16.mxu0 0
        %1029 = vmatmul.mubr.bf16.gmra.mrb[0].mxu0 %v889
        %v1030 = vpop.f32.mrb[0].mxu0
        %v1031 = vadd.f32 %v914, %v1030
        %v1032 = vpop.f32.mrb[0].mxu0
        %v1033 = vpop.f32.mrb[0].mxu0
        %v1034 = vadd.f32 %v914, %v1033
        %v1035 = vpop.f32.mrb[0].mxu0
        %1036 = vmatprep.mubr.bf16.mxu0 0
        %1037 = vmatmul.mubr.bf16.gmra.mrb[0].mxu0 %v890
        %v1038 = vpop.f32.mrb[0].mxu0
        %v1039 = vadd.f32 %v914, %v1038
        %v1040 = vpop.f32.mrb[0].mxu0
        %v1041 = vpop.f32.mrb[0].mxu0
        %v1042 = vadd.f32 %v914, %v1041
        %v1043 = vpop.f32.mrb[0].mxu0
        %1044 = vmatprep.mubr.bf16.mxu0 0
        %1045 = vmatmul.mubr.bf16.gmra.mrb[0].mxu0 %v891
        %v1046 = vpop.f32.mrb[0].mxu0
        %v1047 = vadd.f32 %v914, %v1046
        %v1048 = vpop.f32.mrb[0].mxu0
        %v1049 = vpop.f32.mrb[0].mxu0
        %v1050 = vadd.f32 %v914, %v1049
        %v1051 = vpop.f32.mrb[0].mxu0
        %1052 = vmatprep.mubr.bf16.mxu0 0
        %1053 = vmatmul.mubr.bf16.gmra.mrb[0].mxu0 %v892
        %v1054 = vpop.f32.mrb[0].mxu0
        %v1055 = vadd.f32 %v914, %v1054
        %v1056 = vpop.f32.mrb[0].mxu0
        %v1057 = vpop.f32.mrb[0].mxu0
        %v1058 = vadd.f32 %v914, %v1057
        %v1059 = vpop.f32.mrb[0].mxu0
        %1060 = vdwg.mxu0
        %v1061 = vtanh.pop %v999
        %v1062 = vtanh.pop %v1002
        %v1063 = vtanh.pop %v1007
        %v1064 = vtanh.pop %v1010
        %v1065 = vtanh.pop %v1015
        %v1066 = vtanh.pop %v1018
        %v1067 = vtanh.pop %v1023
        %v1068 = vtanh.pop %v1026
        %v1069 = vtanh.pop %v1031
        %v1070 = vtanh.pop %v1034
        %v1071 = vtanh.pop %v1039
        %v1072 = vtanh.pop %v1042
        %v1073 = vtanh.pop %v1047
        %v1074 = vtanh.pop %v1050
        %v1075 = vtanh.pop %v1055
        %v1076 = vtanh.pop %v1058
        %v1077 = vpack.c.bf16 %v1062, %v1061
        %v1078 = vpack.c.bf16 %v1064, %v1063
        %v1079 = vpack.c.bf16 %v1066, %v1065
        %v1080 = vpack.c.bf16 %v1068, %v1067
        %v1081 = vpack.c.bf16 %v1070, %v1069
        %v1082 = vpack.c.bf16 %v1072, %v1071
        %v1083 = vpack.c.bf16 %v1074, %v1073
        %v1084 = vpack.c.bf16 %v1076, %v1075
        %v1085 = vld [vmem:[#allocation8] sm:$0xf]
        %v1086 = vld [vmem:[#allocation8 + $0x4] sm:$0xf]
        %v1087 = vld [vmem:[#allocation8 + $0x8] sm:$0xf]
        %v1088 = vld [vmem:[#allocation8 + $0xc] sm:$0xf]
        %v1089 = vld [vmem:[#allocation8 + $0x10] sm:$0xf]
        %v1090 = vld [vmem:[#allocation8 + $0x14] sm:$0xf]
        %v1091 = vld [vmem:[#allocation8 + $0x18] sm:$0xf]
        %v1092 = vld [vmem:[#allocation8 + $0x1c] sm:$0xf]
        %v1093 = vld [vmem:[#allocation8 + $0x20] sm:$0xf]
        %v1094 = vld [vmem:[#allocation8 + $0x24] sm:$0xf]
        %v1095 = vld [vmem:[#allocation8 + $0x28] sm:$0xf]
        %v1096 = vld [vmem:[#allocation8 + $0x2c] sm:$0xf]
        %v1097 = vld [vmem:[#allocation8 + $0x30] sm:$0xf]
        %v1098 = vld [vmem:[#allocation8 + $0x34] sm:$0xf]
        %v1099 = vld [vmem:[#allocation8 + $0x38] sm:$0xf]
        %v1100 = vld [vmem:[#allocation8 + $0x3c] sm:$0xf]
        %v1101 = vld [vmem:[%s6] sm:$0x1]
        %v1103 = vlaneseq
        %v1104 = vshrl.u32 %v1103, 7
        %v1105 = vsub.s32 0, %v1104
        %v1106 = vrot.slane %v1101, %v1105
        %v1124 = vunpack.c.l.b16 %v1085
        %v1125 = vunpack.c.l.b16 %v1086
        %v1126 = vunpack.c.l.b16 %v1087
        %v1127 = vunpack.c.l.b16 %v1088
        %v1128 = vunpack.c.l.b16 %v1089
        %v1129 = vunpack.c.l.b16 %v1090
        %v1130 = vunpack.c.l.b16 %v1091
        %v1131 = vunpack.c.l.b16 %v1092
        %v1132 = vunpack.c.l.b16 %v1093
        %v1133 = vunpack.c.l.b16 %v1094
        %v1134 = vunpack.c.l.b16 %v1095
        %v1135 = vunpack.c.l.b16 %v1096
        %v1136 = vunpack.c.l.b16 %v1097
        %v1137 = vunpack.c.l.b16 %v1098
        %v1138 = vunpack.c.l.b16 %v1099
        %v1139 = vunpack.c.l.b16 %v1100
        %v1140 = vpack.c.b16 %v1125, %v1124
        %v1141 = vpack.c.b16 %v1127, %v1126
        %v1142 = vpack.c.b16 %v1129, %v1128
        %v1143 = vpack.c.b16 %v1131, %v1130
        %v1144 = vpack.c.b16 %v1133, %v1132
        %v1145 = vpack.c.b16 %v1135, %v1134
        %v1146 = vpack.c.b16 %v1137, %v1136
        %v1147 = vpack.c.b16 %v1139, %v1138
        %1156 = vmatprep.subr.bf16.mxu0 0
        %1157 = vmatpush1.bf16.msra.mxu0 %v1140
        %1158 = vmatprep.subr.bf16.mxu0 0
        %1159 = vmatpush1.bf16.msra.mxu0 %v1141
        %1160 = vmatprep.subr.bf16.mxu0 0
        %1161 = vmatpush1.bf16.msra.mxu0 %v1142
        %1162 = vmatprep.subr.bf16.mxu0 0
        %1163 = vmatpush1.bf16.msra.mxu0 %v1143
        %1164 = vmatprep.subr.bf16.mxu0 0
        %1165 = vmatpush1.bf16.msra.mxu0 %v1144
        %1166 = vmatprep.subr.bf16.mxu0 0
        %1167 = vmatpush1.bf16.msra.mxu0 %v1145
        %1168 = vmatprep.subr.bf16.mxu0 0
        %1169 = vmatpush1.bf16.msra.mxu0 %v1146
        %1170 = vmatprep.subr.bf16.mxu0 0
        %1171 = vmatpush1.bf16.msra.mxu0 %v1147
        %1172 = vmatprep.subr.bf16.mxu0 0
        %1173 = vmatpush1.bf16.msra.mxu0 0
        %1174 = vmatprep.subr.bf16.mxu0 0
        %1175 = vmatpush1.bf16.msra.mxu0 0
        %1176 = vmatprep.subr.bf16.mxu0 0
        %1177 = vmatpush1.bf16.msra.mxu0 0
        %1178 = vmatprep.subr.bf16.mxu0 0
        %1179 = vmatpush1.bf16.msra.mxu0 0
        %1180 = vmatprep.subr.bf16.mxu0 0
        %1181 = vmatpush1.bf16.msra.mxu0 0
        %1182 = vmatprep.subr.bf16.mxu0 0
        %1183 = vmatpush1.bf16.msra.mxu0 0
        %1184 = vmatprep.subr.bf16.mxu0 0
        %1185 = vmatpush1.bf16.msra.mxu0 0
        %1186 = vmatprep.subr.bf16.mxu0 0
        %1187 = vmatpush1.bf16.msra.mxu0 0
        %1188 = vmatprep.mubr.bf16.mxu0 0
        %1189 = vmatmul.mubr.bf16.gmra.mrb[0].mxu0 %v1077
        %v1190 = vpop.f32.mrb[0].mxu0
        %v1191 = vadd.f32 %v1106, %v1190
        %v1192 = vpop.f32.mrb[0].mxu0
        %v1193 = vpop.f32.mrb[0].mxu0
        %v1194 = vadd.f32 %v1106, %v1193
        %v1195 = vpop.f32.mrb[0].mxu0
        %1196 = vmatprep.mubr.bf16.mxu0 0
        %1197 = vmatmul.mubr.bf16.gmra.mrb[0].mxu0 %v1078
        %v1198 = vpop.f32.mrb[0].mxu0
        %v1199 = vadd.f32 %v1106, %v1198
        %v1200 = vpop.f32.mrb[0].mxu0
        %v1201 = vpop.f32.mrb[0].mxu0
        %v1202 = vadd.f32 %v1106, %v1201
        %v1203 = vpop.f32.mrb[0].mxu0
        %1204 = vmatprep.mubr.bf16.mxu0 0
        %1205 = vmatmul.mubr.bf16.gmra.mrb[0].mxu0 %v1079
        %v1206 = vpop.f32.mrb[0].mxu0
        %v1207 = vadd.f32 %v1106, %v1206
        %v1208 = vpop.f32.mrb[0].mxu0
        %v1209 = vpop.f32.mrb[0].mxu0
        %v1210 = vadd.f32 %v1106, %v1209
        %v1211 = vpop.f32.mrb[0].mxu0
        %1212 = vmatprep.mubr.bf16.mxu0 0
        %1213 = vmatmul.mubr.bf16.gmra.mrb[0].mxu0 %v1080
        %v1214 = vpop.f32.mrb[0].mxu0
        %v1215 = vadd.f32 %v1106, %v1214
        %v1216 = vpop.f32.mrb[0].mxu0
        %v1217 = vpop.f32.mrb[0].mxu0
        %v1218 = vadd.f32 %v1106, %v1217
        %v1219 = vpop.f32.mrb[0].mxu0
        %1220 = vmatprep.mubr.bf16.mxu0 0
        %1221 = vmatmul.mubr.bf16.gmra.mrb[0].mxu0 %v1081
        %v1222 = vpop.f32.mrb[0].mxu0
        %v1223 = vadd.f32 %v1106, %v1222
        %v1224 = vpop.f32.mrb[0].mxu0
        %v1225 = vpop.f32.mrb[0].mxu0
        %v1226 = vadd.f32 %v1106, %v1225
        %v1227 = vpop.f32.mrb[0].mxu0
        %1228 = vmatprep.mubr.bf16.mxu0 0
        %1229 = vmatmul.mubr.bf16.gmra.mrb[0].mxu0 %v1082
        %v1230 = vpop.f32.mrb[0].mxu0
        %v1231 = vadd.f32 %v1106, %v1230
        %v1232 = vpop.f32.mrb[0].mxu0
        %v1233 = vpop.f32.mrb[0].mxu0
        %v1234 = vadd.f32 %v1106, %v1233
        %v1235 = vpop.f32.mrb[0].mxu0
        %1236 = vmatprep.mubr.bf16.mxu0 0
        %1237 = vmatmul.mubr.bf16.gmra.mrb[0].mxu0 %v1083
        %v1238 = vpop.f32.mrb[0].mxu0
        %v1239 = vadd.f32 %v1106, %v1238
        %v1240 = vpop.f32.mrb[0].mxu0
        %v1241 = vpop.f32.mrb[0].mxu0
        %v1242 = vadd.f32 %v1106, %v1241
        %v1243 = vpop.f32.mrb[0].mxu0
        %1244 = vmatprep.mubr.bf16.mxu0 0
        %1245 = vmatmul.mubr.bf16.gmra.mrb[0].mxu0 %v1084
        %v1246 = vpop.f32.mrb[0].mxu0
        %v1247 = vadd.f32 %v1106, %v1246
        %v1248 = vpop.f32.mrb[0].mxu0
        %v1249 = vpop.f32.mrb[0].mxu0
        %v1250 = vadd.f32 %v1106, %v1249
        %v1251 = vpop.f32.mrb[0].mxu0
        %1252 = vdwg.mxu0
        %1253 = vst [vmem:[%s584] sm:$0xff] %v1191
        %1254 = vst [vmem:[%s584 + $0x8] sm:$0xff] %v1194
        %1255 = vst [vmem:[%s584 + $0x10] sm:$0xff] %v1199
        %1256 = vst [vmem:[%s584 + $0x18] sm:$0xff] %v1202
        %1257 = vst [vmem:[%s584 + $0x20] sm:$0xff] %v1207
        %1258 = vst [vmem:[%s584 + $0x28] sm:$0xff] %v1210
        %1259 = vst [vmem:[%s584 + $0x30] sm:$0xff] %v1215
        %1260 = vst [vmem:[%s584 + $0x38] sm:$0xff] %v1218
        %1261 = vst [vmem:[%s584 + $0x40] sm:$0xff] %v1223
        %1262 = vst [vmem:[%s584 + $0x48] sm:$0xff] %v1226
        %1263 = vst [vmem:[%s584 + $0x50] sm:$0xff] %v1231
        %1264 = vst [vmem:[%s584 + $0x58] sm:$0xff] %v1234
        %1265 = vst [vmem:[%s584 + $0x60] sm:$0xff] %v1239
        %1266 = vst [vmem:[%s584 + $0x68] sm:$0xff] %v1242
        %1267 = vst [vmem:[%s584 + $0x70] sm:$0xff] %v1247
        %1268 = vst [vmem:[%s584 + $0x78] sm:$0xff] %v1250
        %v1269 = vpack.c.bf16 %v1194, %v1191
        %v1270 = vpack.c.bf16 %v1202, %v1199
        %v1271 = vpack.c.bf16 %v1210, %v1207
        %v1272 = vpack.c.bf16 %v1218, %v1215
        %v1273 = vpack.c.bf16 %v1226, %v1223
        %v1274 = vpack.c.bf16 %v1234, %v1231
        %v1275 = vpack.c.bf16 %v1242, %v1239
        %v1276 = vpack.c.bf16 %v1250, %v1247
        %v1277 = vld [vmem:[#allocation10] sm:$0xf]
        %v1278 = vld [vmem:[#allocation10 + $0x4] sm:$0xf]
        %v1279 = vld [vmem:[#allocation10 + $0x8] sm:$0xf]
        %v1280 = vld [vmem:[#allocation10 + $0xc] sm:$0xf]
        %v1281 = vld [vmem:[#allocation10 + $0x10] sm:$0xf]
        %v1282 = vld [vmem:[#allocation10 + $0x14] sm:$0xf]
        %v1283 = vld [vmem:[#allocation10 + $0x18] sm:$0xf]
        %v1284 = vld [vmem:[#allocation10 + $0x1c] sm:$0xf]
        %v1285 = vld [vmem:[#allocation10 + $0x20] sm:$0xf]
        %v1286 = vld [vmem:[#allocation10 + $0x24] sm:$0xf]
        %v1287 = vld [vmem:[#allocation10 + $0x28] sm:$0xf]
        %v1288 = vld [vmem:[#allocation10 + $0x2c] sm:$0xf]
        %v1289 = vld [vmem:[#allocation10 + $0x30] sm:$0xf]
        %v1290 = vld [vmem:[#allocation10 + $0x34] sm:$0xf]
        %v1291 = vld [vmem:[#allocation10 + $0x38] sm:$0xf]
        %v1292 = vld [vmem:[#allocation10 + $0x3c] sm:$0xf]
        %v1293 = vld [vmem:[%s8] sm:$0x1]
        %v1295 = vlaneseq
        %v1296 = vshrl.u32 %v1295, 7
        %v1297 = vsub.s32 0, %v1296
        %v1298 = vrot.slane %v1293, %v1297
        %v1316 = vunpack.c.l.b16 %v1277
        %v1317 = vunpack.c.l.b16 %v1278
        %v1318 = vunpack.c.l.b16 %v1279
        %v1319 = vunpack.c.l.b16 %v1280
        %v1320 = vunpack.c.l.b16 %v1281
        %v1321 = vunpack.c.l.b16 %v1282
        %v1322 = vunpack.c.l.b16 %v1283
        %v1323 = vunpack.c.l.b16 %v1284
        %v1324 = vunpack.c.l.b16 %v1285
        %v1325 = vunpack.c.l.b16 %v1286
        %v1326 = vunpack.c.l.b16 %v1287
        %v1327 = vunpack.c.l.b16 %v1288
        %v1328 = vunpack.c.l.b16 %v1289
        %v1329 = vunpack.c.l.b16 %v1290
        %v1330 = vunpack.c.l.b16 %v1291
        %v1331 = vunpack.c.l.b16 %v1292
        %v1332 = vpack.c.b16 %v1317, %v1316
        %v1333 = vpack.c.b16 %v1319, %v1318
        %v1334 = vpack.c.b16 %v1321, %v1320
        %v1335 = vpack.c.b16 %v1323, %v1322
        %v1336 = vpack.c.b16 %v1325, %v1324
        %v1337 = vpack.c.b16 %v1327, %v1326
        %v1338 = vpack.c.b16 %v1329, %v1328
        %v1339 = vpack.c.b16 %v1331, %v1330
        %1348 = vmatprep.subr.bf16.mxu0 0
        %1349 = vmatpush1.bf16.msra.mxu0 %v1332
        %1350 = vmatprep.subr.bf16.mxu0 0
        %1351 = vmatpush1.bf16.msra.mxu0 %v1333
        %1352 = vmatprep.subr.bf16.mxu0 0
        %1353 = vmatpush1.bf16.msra.mxu0 %v1334
        %1354 = vmatprep.subr.bf16.mxu0 0
        %1355 = vmatpush1.bf16.msra.mxu0 %v1335
        %1356 = vmatprep.subr.bf16.mxu0 0
        %1357 = vmatpush1.bf16.msra.mxu0 %v1336
        %1358 = vmatprep.subr.bf16.mxu0 0
        %1359 = vmatpush1.bf16.msra.mxu0 %v1337
        %1360 = vmatprep.subr.bf16.mxu0 0
        %1361 = vmatpush1.bf16.msra.mxu0 %v1338
        %1362 = vmatprep.subr.bf16.mxu0 0
        %1363 = vmatpush1.bf16.msra.mxu0 %v1339
        %1364 = vmatprep.subr.bf16.mxu0 0
        %1365 = vmatpush1.bf16.msra.mxu0 0
        %1366 = vmatprep.subr.bf16.mxu0 0
        %1367 = vmatpush1.bf16.msra.mxu0 0
        %1368 = vmatprep.subr.bf16.mxu0 0
        %1369 = vmatpush1.bf16.msra.mxu0 0
        %1370 = vmatprep.subr.bf16.mxu0 0
        %1371 = vmatpush1.bf16.msra.mxu0 0
        %1372 = vmatprep.subr.bf16.mxu0 0
        %1373 = vmatpush1.bf16.msra.mxu0 0
        %1374 = vmatprep.subr.bf16.mxu0 0
        %1375 = vmatpush1.bf16.msra.mxu0 0
        %1376 = vmatprep.subr.bf16.mxu0 0
        %1377 = vmatpush1.bf16.msra.mxu0 0
        %1378 = vmatprep.subr.bf16.mxu0 0
        %1379 = vmatpush1.bf16.msra.mxu0 0
        %1380 = vmatprep.mubr.bf16.mxu0 0
        %1381 = vmatmul.mubr.bf16.gmra.mrb[0].mxu0 %v1269
        %v1382 = vpop.f32.mrb[0].mxu0
        %v1383 = vadd.f32 %v1298, %v1382
        %v1384 = vpop.f32.mrb[0].mxu0
        %v1385 = vpop.f32.mrb[0].mxu0
        %v1386 = vadd.f32 %v1298, %v1385
        %v1387 = vpop.f32.mrb[0].mxu0
        %1388 = vmatprep.mubr.bf16.mxu0 0
        %1389 = vmatmul.mubr.bf16.gmra.mrb[0].mxu0 %v1270
        %v1390 = vpop.f32.mrb[0].mxu0
        %v1391 = vadd.f32 %v1298, %v1390
        %v1392 = vpop.f32.mrb[0].mxu0
        %v1393 = vpop.f32.mrb[0].mxu0
        %v1394 = vadd.f32 %v1298, %v1393
        %v1395 = vpop.f32.mrb[0].mxu0
        %1396 = vmatprep.mubr.bf16.mxu0 0
        %1397 = vmatmul.mubr.bf16.gmra.mrb[0].mxu0 %v1271
        %v1398 = vpop.f32.mrb[0].mxu0
        %v1399 = vadd.f32 %v1298, %v1398
        %v1400 = vpop.f32.mrb[0].mxu0
        %v1401 = vpop.f32.mrb[0].mxu0
        %v1402 = vadd.f32 %v1298, %v1401
        %v1403 = vpop.f32.mrb[0].mxu0
        %1404 = vmatprep.mubr.bf16.mxu0 0
        %1405 = vmatmul.mubr.bf16.gmra.mrb[0].mxu0 %v1272
        %v1406 = vpop.f32.mrb[0].mxu0
        %v1407 = vadd.f32 %v1298, %v1406
        %v1408 = vpop.f32.mrb[0].mxu0
        %v1409 = vpop.f32.mrb[0].mxu0
        %v1410 = vadd.f32 %v1298, %v1409
        %v1411 = vpop.f32.mrb[0].mxu0
        %1412 = vmatprep.mubr.bf16.mxu0 0
        %1413 = vmatmul.mubr.bf16.gmra.mrb[0].mxu0 %v1273
        %v1414 = vpop.f32.mrb[0].mxu0
        %v1415 = vadd.f32 %v1298, %v1414
        %v1416 = vpop.f32.mrb[0].mxu0
        %v1417 = vpop.f32.mrb[0].mxu0
        %v1418 = vadd.f32 %v1298, %v1417
        %v1419 = vpop.f32.mrb[0].mxu0
        %1420 = vmatprep.mubr.bf16.mxu0 0
        %1421 = vmatmul.mubr.bf16.gmra.mrb[0].mxu0 %v1274
        %v1422 = vpop.f32.mrb[0].mxu0
        %v1423 = vadd.f32 %v1298, %v1422
        %v1424 = vpop.f32.mrb[0].mxu0
        %v1425 = vpop.f32.mrb[0].mxu0
        %v1426 = vadd.f32 %v1298, %v1425
        %v1427 = vpop.f32.mrb[0].mxu0
        %1428 = vmatprep.mubr.bf16.mxu0 0
        %1429 = vmatmul.mubr.bf16.gmra.mrb[0].mxu0 %v1275
        %v1430 = vpop.f32.mrb[0].mxu0
        %v1431 = vadd.f32 %v1298, %v1430
        %v1432 = vpop.f32.mrb[0].mxu0
        %v1433 = vpop.f32.mrb[0].mxu0
        %v1434 = vadd.f32 %v1298, %v1433
        %v1435 = vpop.f32.mrb[0].mxu0
        %1436 = vmatprep.mubr.bf16.mxu0 0
        %1437 = vmatmul.mubr.bf16.gmra.mrb[0].mxu0 %v1276
        %v1438 = vpop.f32.mrb[0].mxu0
        %v1439 = vadd.f32 %v1298, %v1438
        %v1440 = vpop.f32.mrb[0].mxu0
        %v1441 = vpop.f32.mrb[0].mxu0
        %v1442 = vadd.f32 %v1298, %v1441
        %v1443 = vpop.f32.mrb[0].mxu0
        %1444 = vdwg.mxu0
        %v1445 = vtanh.pop %v1383
        %v1446 = vtanh.pop %v1386
        %v1447 = vtanh.pop %v1391
        %v1448 = vtanh.pop %v1394
        %v1449 = vtanh.pop %v1399
        %v1450 = vtanh.pop %v1402
        %v1451 = vtanh.pop %v1407
        %v1452 = vtanh.pop %v1410
        %v1453 = vtanh.pop %v1415
        %v1454 = vtanh.pop %v1418
        %v1455 = vtanh.pop %v1423
        %v1456 = vtanh.pop %v1426
        %v1457 = vtanh.pop %v1431
        %v1458 = vtanh.pop %v1434
        %v1459 = vtanh.pop %v1439
        %v1460 = vtanh.pop %v1442
        %v1461 = vpack.c.bf16 %v1446, %v1445
        %v1462 = vpack.c.bf16 %v1448, %v1447
        %v1463 = vpack.c.bf16 %v1450, %v1449
        %v1464 = vpack.c.bf16 %v1452, %v1451
        %v1465 = vpack.c.bf16 %v1454, %v1453
        %v1466 = vpack.c.bf16 %v1456, %v1455
        %v1467 = vpack.c.bf16 %v1458, %v1457
        %v1468 = vpack.c.bf16 %v1460, %v1459
        %v1469 = vld [vmem:[#allocation11] sm:$0xf]
        %v1470 = vld [vmem:[#allocation11 + $0x4] sm:$0xf]
        %v1471 = vld [vmem:[#allocation11 + $0x8] sm:$0xf]
        %v1472 = vld [vmem:[#allocation11 + $0xc] sm:$0xf]
        %v1473 = vld [vmem:[#allocation11 + $0x10] sm:$0xf]
        %v1474 = vld [vmem:[#allocation11 + $0x14] sm:$0xf]
        %v1475 = vld [vmem:[#allocation11 + $0x18] sm:$0xf]
        %v1476 = vld [vmem:[#allocation11 + $0x1c] sm:$0xf]
        %v1477 = vld [vmem:[#allocation11 + $0x20] sm:$0xf]
        %v1478 = vld [vmem:[#allocation11 + $0x24] sm:$0xf]
        %v1479 = vld [vmem:[#allocation11 + $0x28] sm:$0xf]
        %v1480 = vld [vmem:[#allocation11 + $0x2c] sm:$0xf]
        %v1481 = vld [vmem:[#allocation11 + $0x30] sm:$0xf]
        %v1482 = vld [vmem:[#allocation11 + $0x34] sm:$0xf]
        %v1483 = vld [vmem:[#allocation11 + $0x38] sm:$0xf]
        %v1484 = vld [vmem:[#allocation11 + $0x3c] sm:$0xf]
        %v1485 = vld [vmem:[%s10] sm:$0x1]
        %v1487 = vlaneseq
        %v1488 = vshrl.u32 %v1487, 7
        %v1489 = vsub.s32 0, %v1488
        %v1490 = vrot.slane %v1485, %v1489
        %v1508 = vunpack.c.l.b16 %v1469
        %v1509 = vunpack.c.l.b16 %v1470
        %v1510 = vunpack.c.l.b16 %v1471
        %v1511 = vunpack.c.l.b16 %v1472
        %v1512 = vunpack.c.l.b16 %v1473
        %v1513 = vunpack.c.l.b16 %v1474
        %v1514 = vunpack.c.l.b16 %v1475
        %v1515 = vunpack.c.l.b16 %v1476
        %v1516 = vunpack.c.l.b16 %v1477
        %v1517 = vunpack.c.l.b16 %v1478
        %v1518 = vunpack.c.l.b16 %v1479
        %v1519 = vunpack.c.l.b16 %v1480
        %v1520 = vunpack.c.l.b16 %v1481
        %v1521 = vunpack.c.l.b16 %v1482
        %v1522 = vunpack.c.l.b16 %v1483
        %v1523 = vunpack.c.l.b16 %v1484
        %v1524 = vpack.c.b16 %v1509, %v1508
        %v1525 = vpack.c.b16 %v1511, %v1510
        %v1526 = vpack.c.b16 %v1513, %v1512
        %v1527 = vpack.c.b16 %v1515, %v1514
        %v1528 = vpack.c.b16 %v1517, %v1516
        %v1529 = vpack.c.b16 %v1519, %v1518
        %v1530 = vpack.c.b16 %v1521, %v1520
        %v1531 = vpack.c.b16 %v1523, %v1522
        %1540 = vmatprep.subr.bf16.mxu0 0
        %1541 = vmatpush1.bf16.msra.mxu0 %v1524
        %1542 = vmatprep.subr.bf16.mxu0 0
        %1543 = vmatpush1.bf16.msra.mxu0 %v1525
        %1544 = vmatprep.subr.bf16.mxu0 0
        %1545 = vmatpush1.bf16.msra.mxu0 %v1526
        %1546 = vmatprep.subr.bf16.mxu0 0
        %1547 = vmatpush1.bf16.msra.mxu0 %v1527
        %1548 = vmatprep.subr.bf16.mxu0 0
        %1549 = vmatpush1.bf16.msra.mxu0 %v1528
        %1550 = vmatprep.subr.bf16.mxu0 0
        %1551 = vmatpush1.bf16.msra.mxu0 %v1529
        %1552 = vmatprep.subr.bf16.mxu0 0
        %1553 = vmatpush1.bf16.msra.mxu0 %v1530
        %1554 = vmatprep.subr.bf16.mxu0 0
        %1555 = vmatpush1.bf16.msra.mxu0 %v1531
        %1556 = vmatprep.subr.bf16.mxu0 0
        %1557 = vmatpush1.bf16.msra.mxu0 0
        %1558 = vmatprep.subr.bf16.mxu0 0
        %1559 = vmatpush1.bf16.msra.mxu0 0
        %1560 = vmatprep.subr.bf16.mxu0 0
        %1561 = vmatpush1.bf16.msra.mxu0 0
        %1562 = vmatprep.subr.bf16.mxu0 0
        %1563 = vmatpush1.bf16.msra.mxu0 0
        %1564 = vmatprep.subr.bf16.mxu0 0
        %1565 = vmatpush1.bf16.msra.mxu0 0
        %1566 = vmatprep.subr.bf16.mxu0 0
        %1567 = vmatpush1.bf16.msra.mxu0 0
        %1568 = vmatprep.subr.bf16.mxu0 0
        %1569 = vmatpush1.bf16.msra.mxu0 0
        %1570 = vmatprep.subr.bf16.mxu0 0
        %1571 = vmatpush1.bf16.msra.mxu0 0
        %1572 = vmatprep.mubr.bf16.mxu0 0
        %1573 = vmatmul.mubr.bf16.gmra.mrb[0].mxu0 %v1461
        %v1574 = vpop.f32.mrb[0].mxu0
        %v1575 = vadd.f32 %v1490, %v1574
        %v1576 = vpop.f32.mrb[0].mxu0
        %v1577 = vpop.f32.mrb[0].mxu0
        %v1578 = vadd.f32 %v1490, %v1577
        %v1579 = vpop.f32.mrb[0].mxu0
        %1580 = vmatprep.mubr.bf16.mxu0 0
        %1581 = vmatmul.mubr.bf16.gmra.mrb[0].mxu0 %v1462
        %v1582 = vpop.f32.mrb[0].mxu0
        %v1583 = vadd.f32 %v1490, %v1582
        %v1584 = vpop.f32.mrb[0].mxu0
        %v1585 = vpop.f32.mrb[0].mxu0
        %v1586 = vadd.f32 %v1490, %v1585
        %v1587 = vpop.f32.mrb[0].mxu0
        %1588 = vmatprep.mubr.bf16.mxu0 0
        %1589 = vmatmul.mubr.bf16.gmra.mrb[0].mxu0 %v1463
        %v1590 = vpop.f32.mrb[0].mxu0
        %v1591 = vadd.f32 %v1490, %v1590
        %v1592 = vpop.f32.mrb[0].mxu0
        %v1593 = vpop.f32.mrb[0].mxu0
        %v1594 = vadd.f32 %v1490, %v1593
        %v1595 = vpop.f32.mrb[0].mxu0
        %1596 = vmatprep.mubr.bf16.mxu0 0
        %1597 = vmatmul.mubr.bf16.gmra.mrb[0].mxu0 %v1464
        %v1598 = vpop.f32.mrb[0].mxu0
        %v1599 = vadd.f32 %v1490, %v1598
        %v1600 = vpop.f32.mrb[0].mxu0
        %v1601 = vpop.f32.mrb[0].mxu0
        %v1602 = vadd.f32 %v1490, %v1601
        %v1603 = vpop.f32.mrb[0].mxu0
        %1604 = vmatprep.mubr.bf16.mxu0 0
        %1605 = vmatmul.mubr.bf16.gmra.mrb[0].mxu0 %v1465
        %v1606 = vpop.f32.mrb[0].mxu0
        %v1607 = vadd.f32 %v1490, %v1606
        %v1608 = vpop.f32.mrb[0].mxu0
        %v1609 = vpop.f32.mrb[0].mxu0
        %v1610 = vadd.f32 %v1490, %v1609
        %v1611 = vpop.f32.mrb[0].mxu0
        %1612 = vmatprep.mubr.bf16.mxu0 0
        %1613 = vmatmul.mubr.bf16.gmra.mrb[0].mxu0 %v1466
        %v1614 = vpop.f32.mrb[0].mxu0
        %v1615 = vadd.f32 %v1490, %v1614
        %v1616 = vpop.f32.mrb[0].mxu0
        %v1617 = vpop.f32.mrb[0].mxu0
        %v1618 = vadd.f32 %v1490, %v1617
        %v1619 = vpop.f32.mrb[0].mxu0
        %1620 = vmatprep.mubr.bf16.mxu0 0
        %1621 = vmatmul.mubr.bf16.gmra.mrb[0].mxu0 %v1467
        %v1622 = vpop.f32.mrb[0].mxu0
        %v1623 = vadd.f32 %v1490, %v1622
        %v1624 = vpop.f32.mrb[0].mxu0
        %v1625 = vpop.f32.mrb[0].mxu0
        %v1626 = vadd.f32 %v1490, %v1625
        %v1627 = vpop.f32.mrb[0].mxu0
        %1628 = vmatprep.mubr.bf16.mxu0 0
        %1629 = vmatmul.mubr.bf16.gmra.mrb[0].mxu0 %v1468
        %v1630 = vpop.f32.mrb[0].mxu0
        %v1631 = vadd.f32 %v1490, %v1630
        %v1632 = vpop.f32.mrb[0].mxu0
        %v1633 = vpop.f32.mrb[0].mxu0
        %v1634 = vadd.f32 %v1490, %v1633
        %v1635 = vpop.f32.mrb[0].mxu0
        %1636 = vdwg.mxu0
        %v1637 = vtanh.pop %v1575
        %v1638 = vtanh.pop %v1578
        %v1639 = vtanh.pop %v1583
        %v1640 = vtanh.pop %v1586
        %v1641 = vtanh.pop %v1591
        %v1642 = vtanh.pop %v1594
        %v1643 = vtanh.pop %v1599
        %v1644 = vtanh.pop %v1602
        %v1645 = vtanh.pop %v1607
        %v1646 = vtanh.pop %v1610
        %v1647 = vtanh.pop %v1615
        %v1648 = vtanh.pop %v1618
        %v1649 = vtanh.pop %v1623
        %v1650 = vtanh.pop %v1626
        %v1651 = vtanh.pop %v1631
        %v1652 = vtanh.pop %v1634
        %v1653 = vpack.c.bf16 %v1638, %v1637
        %v1654 = vpack.c.bf16 %v1640, %v1639
        %v1655 = vpack.c.bf16 %v1642, %v1641
        %v1656 = vpack.c.bf16 %v1644, %v1643
        %v1657 = vpack.c.bf16 %v1646, %v1645
        %v1658 = vpack.c.bf16 %v1648, %v1647
        %v1659 = vpack.c.bf16 %v1650, %v1649
        %v1660 = vpack.c.bf16 %v1652, %v1651
        %v1661 = vld [vmem:[#allocation13] sm:$0xff]
        %v1662 = vld [vmem:[#allocation13 + $0x8] sm:$0xff]
        %v1663 = vld [vmem:[#allocation13 + $0x10] sm:$0xff]
        %v1664 = vld [vmem:[#allocation13 + $0x18] sm:$0xff]
        %v1665 = vld [vmem:[#allocation13 + $0x20] sm:$0xff]
        %v1666 = vld [vmem:[#allocation13 + $0x28] sm:$0xff]
        %v1667 = vld [vmem:[#allocation13 + $0x30] sm:$0xff]
        %v1668 = vld [vmem:[#allocation13 + $0x38] sm:$0xff]
        %v1669 = vld [vmem:[#allocation13 + $0x40] sm:$0xff]
        %v1670 = vld [vmem:[#allocation13 + $0x48] sm:$0xff]
        %v1671 = vld [vmem:[#allocation13 + $0x50] sm:$0xff]
        %v1672 = vld [vmem:[#allocation13 + $0x58] sm:$0xff]
        %v1673 = vld [vmem:[#allocation13 + $0x60] sm:$0xff]
        %v1674 = vld [vmem:[#allocation13 + $0x68] sm:$0xff]
        %v1675 = vld [vmem:[#allocation13 + $0x70] sm:$0xff]
        %v1676 = vld [vmem:[#allocation13 + $0x78] sm:$0xff]
        %v1677 = vld [vmem:[%s12] sm:$0x3]
        %v1679 = vlaneseq
        %v1680 = vshrl.u32 %v1679, 7
        %v1681 = vsub.s32 0, %v1680
        %v1682 = vrot.slane %v1677, %v1681
        %v1683 = vlaneseq
        %v1684 = vshrl.u32 %v1683, 7
        %v1685 = vsub.s32 1, %v1684
        %v1686 = vrot.slane %v1677, %v1685
        %v1705 = vunpack.c.l.b16 %v1661
        %v1706 = vunpack.c.h.b16 %v1661
        %v1707 = vunpack.c.l.b16 %v1662
        %v1708 = vunpack.c.h.b16 %v1662
        %v1709 = vunpack.c.l.b16 %v1663
        %v1710 = vunpack.c.h.b16 %v1663
        %v1711 = vunpack.c.l.b16 %v1664
        %v1712 = vunpack.c.h.b16 %v1664
        %v1713 = vunpack.c.l.b16 %v1665
        %v1714 = vunpack.c.h.b16 %v1665
        %v1715 = vunpack.c.l.b16 %v1666
        %v1716 = vunpack.c.h.b16 %v1666
        %v1717 = vunpack.c.l.b16 %v1667
        %v1718 = vunpack.c.h.b16 %v1667
        %v1719 = vunpack.c.l.b16 %v1668
        %v1720 = vunpack.c.h.b16 %v1668
        %v1721 = vunpack.c.l.b16 %v1669
        %v1722 = vunpack.c.h.b16 %v1669
        %v1723 = vunpack.c.l.b16 %v1670
        %v1724 = vunpack.c.h.b16 %v1670
        %v1725 = vunpack.c.l.b16 %v1671
        %v1726 = vunpack.c.h.b16 %v1671
        %v1727 = vunpack.c.l.b16 %v1672
        %v1728 = vunpack.c.h.b16 %v1672
        %v1729 = vunpack.c.l.b16 %v1673
        %v1730 = vunpack.c.h.b16 %v1673
        %v1731 = vunpack.c.l.b16 %v1674
        %v1732 = vunpack.c.h.b16 %v1674
        %v1733 = vunpack.c.l.b16 %v1675
        %v1734 = vunpack.c.h.b16 %v1675
        %v1735 = vunpack.c.l.b16 %v1676
        %v1736 = vunpack.c.h.b16 %v1676
        %v1737 = vpack.c.b16 %v1707, %v1705
        %v1738 = vpack.c.b16 %v1708, %v1706
        %v1739 = vpack.c.b16 %v1711, %v1709
        %v1740 = vpack.c.b16 %v1712, %v1710
        %v1741 = vpack.c.b16 %v1715, %v1713
        %v1742 = vpack.c.b16 %v1716, %v1714
        %v1743 = vpack.c.b16 %v1719, %v1717
        %v1744 = vpack.c.b16 %v1720, %v1718
        %v1745 = vpack.c.b16 %v1723, %v1721
        %v1746 = vpack.c.b16 %v1724, %v1722
        %v1747 = vpack.c.b16 %v1727, %v1725
        %v1748 = vpack.c.b16 %v1728, %v1726
        %v1749 = vpack.c.b16 %v1731, %v1729
        %v1750 = vpack.c.b16 %v1732, %v1730
        %v1751 = vpack.c.b16 %v1735, %v1733
        %v1752 = vpack.c.b16 %v1736, %v1734
        %1769 = vmatprep.subr.bf16.mxu0 %v1738
        %1770 = vmatpush1.bf16.msra.mxu0 %v1737
        %1771 = vmatprep.subr.bf16.mxu0 %v1740
        %1772 = vmatpush1.bf16.msra.mxu0 %v1739
        %1773 = vmatprep.subr.bf16.mxu0 %v1742
        %1774 = vmatpush1.bf16.msra.mxu0 %v1741
        %1775 = vmatprep.subr.bf16.mxu0 %v1744
        %1776 = vmatpush1.bf16.msra.mxu0 %v1743
        %1777 = vmatprep.subr.bf16.mxu0 %v1746
        %1778 = vmatpush1.bf16.msra.mxu0 %v1745
        %1779 = vmatprep.subr.bf16.mxu0 %v1748
        %1780 = vmatpush1.bf16.msra.mxu0 %v1747
        %1781 = vmatprep.subr.bf16.mxu0 %v1750
        %1782 = vmatpush1.bf16.msra.mxu0 %v1749
        %1783 = vmatprep.subr.bf16.mxu0 %v1752
        %1784 = vmatpush1.bf16.msra.mxu0 %v1751
        %1785 = vmatprep.subr.bf16.mxu0 0
        %1786 = vmatpush1.bf16.msra.mxu0 0
        %1787 = vmatprep.subr.bf16.mxu0 0
        %1788 = vmatpush1.bf16.msra.mxu0 0
        %1789 = vmatprep.subr.bf16.mxu0 0
        %1790 = vmatpush1.bf16.msra.mxu0 0
        %1791 = vmatprep.subr.bf16.mxu0 0
        %1792 = vmatpush1.bf16.msra.mxu0 0
        %1793 = vmatprep.subr.bf16.mxu0 0
        %1794 = vmatpush1.bf16.msra.mxu0 0
        %1795 = vmatprep.subr.bf16.mxu0 0
        %1796 = vmatpush1.bf16.msra.mxu0 0
        %1797 = vmatprep.subr.bf16.mxu0 0
        %1798 = vmatpush1.bf16.msra.mxu0 0
        %1799 = vmatprep.subr.bf16.mxu0 0
        %1800 = vmatpush1.bf16.msra.mxu0 0
        %1801 = vmatprep.mubr.bf16.mxu0 0
        %1802 = vmatmul.mubr.bf16.gmra.mrb[0].mxu0 %v1653
        %v1803 = vpop.f32.mrb[0].mxu0
        %v1804 = vadd.f32 %v1682, %v1803
        %v1805 = vpop.f32.mrb[0].mxu0
        %v1806 = vadd.f32 %v1686, %v1805
        %v1807 = vpop.f32.mrb[0].mxu0
        %v1808 = vadd.f32 %v1682, %v1807
        %v1809 = vpop.f32.mrb[0].mxu0
        %v1810 = vadd.f32 %v1686, %v1809
        %1811 = vmatprep.mubr.bf16.mxu0 0
        %1812 = vmatmul.mubr.bf16.gmra.mrb[0].mxu0 %v1654
        %v1813 = vpop.f32.mrb[0].mxu0
        %v1814 = vadd.f32 %v1682, %v1813
        %v1815 = vpop.f32.mrb[0].mxu0
        %v1816 = vadd.f32 %v1686, %v1815
        %v1817 = vpop.f32.mrb[0].mxu0
        %v1818 = vadd.f32 %v1682, %v1817
        %v1819 = vpop.f32.mrb[0].mxu0
        %v1820 = vadd.f32 %v1686, %v1819
        %1821 = vmatprep.mubr.bf16.mxu0 0
        %1822 = vmatmul.mubr.bf16.gmra.mrb[0].mxu0 %v1655
        %v1823 = vpop.f32.mrb[0].mxu0
        %v1824 = vadd.f32 %v1682, %v1823
        %v1825 = vpop.f32.mrb[0].mxu0
        %v1826 = vadd.f32 %v1686, %v1825
        %v1827 = vpop.f32.mrb[0].mxu0
        %v1828 = vadd.f32 %v1682, %v1827
        %v1829 = vpop.f32.mrb[0].mxu0
        %v1830 = vadd.f32 %v1686, %v1829
        %1831 = vmatprep.mubr.bf16.mxu0 0
        %1832 = vmatmul.mubr.bf16.gmra.mrb[0].mxu0 %v1656
        %v1833 = vpop.f32.mrb[0].mxu0
        %v1834 = vadd.f32 %v1682, %v1833
        %v1835 = vpop.f32.mrb[0].mxu0
        %v1836 = vadd.f32 %v1686, %v1835
        %v1837 = vpop.f32.mrb[0].mxu0
        %v1838 = vadd.f32 %v1682, %v1837
        %v1839 = vpop.f32.mrb[0].mxu0
        %v1840 = vadd.f32 %v1686, %v1839
        %1841 = vmatprep.mubr.bf16.mxu0 0
        %1842 = vmatmul.mubr.bf16.gmra.mrb[0].mxu0 %v1657
        %v1843 = vpop.f32.mrb[0].mxu0
        %v1844 = vadd.f32 %v1682, %v1843
        %v1845 = vpop.f32.mrb[0].mxu0
        %v1846 = vadd.f32 %v1686, %v1845
        %v1847 = vpop.f32.mrb[0].mxu0
        %v1848 = vadd.f32 %v1682, %v1847
        %v1849 = vpop.f32.mrb[0].mxu0
        %v1850 = vadd.f32 %v1686, %v1849
        %1851 = vmatprep.mubr.bf16.mxu0 0
        %1852 = vmatmul.mubr.bf16.gmra.mrb[0].mxu0 %v1658
        %v1853 = vpop.f32.mrb[0].mxu0
        %v1854 = vadd.f32 %v1682, %v1853
        %v1855 = vpop.f32.mrb[0].mxu0
        %v1856 = vadd.f32 %v1686, %v1855
        %v1857 = vpop.f32.mrb[0].mxu0
        %v1858 = vadd.f32 %v1682, %v1857
        %v1859 = vpop.f32.mrb[0].mxu0
        %v1860 = vadd.f32 %v1686, %v1859
        %1861 = vmatprep.mubr.bf16.mxu0 0
        %1862 = vmatmul.mubr.bf16.gmra.mrb[0].mxu0 %v1659
        %v1863 = vpop.f32.mrb[0].mxu0
        %v1864 = vadd.f32 %v1682, %v1863
        %v1865 = vpop.f32.mrb[0].mxu0
        %v1866 = vadd.f32 %v1686, %v1865
        %v1867 = vpop.f32.mrb[0].mxu0
        %v1868 = vadd.f32 %v1682, %v1867
        %v1869 = vpop.f32.mrb[0].mxu0
        %v1870 = vadd.f32 %v1686, %v1869
        %1871 = vmatprep.mubr.bf16.mxu0 0
        %1872 = vmatmul.mubr.bf16.gmra.mrb[0].mxu0 %v1660
        %v1873 = vpop.f32.mrb[0].mxu0
        %v1874 = vadd.f32 %v1682, %v1873
        %v1875 = vpop.f32.mrb[0].mxu0
        %v1876 = vadd.f32 %v1686, %v1875
        %v1877 = vpop.f32.mrb[0].mxu0
        %v1878 = vadd.f32 %v1682, %v1877
        %v1879 = vpop.f32.mrb[0].mxu0
        %v1880 = vadd.f32 %v1686, %v1879
        %1881 = vdwg.mxu0
        %v1882 = vtanh.pop %v1804
        %v1883 = vtanh.pop %v1806
        %v1884 = vtanh.pop %v1808
        %v1885 = vtanh.pop %v1810
        %v1886 = vtanh.pop %v1814
        %v1887 = vtanh.pop %v1816
        %v1888 = vtanh.pop %v1818
        %v1889 = vtanh.pop %v1820
        %v1890 = vtanh.pop %v1824
        %v1891 = vtanh.pop %v1826
        %v1892 = vtanh.pop %v1828
        %v1893 = vtanh.pop %v1830
        %v1894 = vtanh.pop %v1834
        %v1895 = vtanh.pop %v1836
        %v1896 = vtanh.pop %v1838
        %v1897 = vtanh.pop %v1840
        %v1898 = vtanh.pop %v1844
        %v1899 = vtanh.pop %v1846
        %v1900 = vtanh.pop %v1848
        %v1901 = vtanh.pop %v1850
        %v1902 = vtanh.pop %v1854
        %v1903 = vtanh.pop %v1856
        %v1904 = vtanh.pop %v1858
        %v1905 = vtanh.pop %v1860
        %v1906 = vtanh.pop %v1864
        %v1907 = vtanh.pop %v1866
        %v1908 = vtanh.pop %v1868
        %v1909 = vtanh.pop %v1870
        %v1910 = vtanh.pop %v1874
        %v1911 = vtanh.pop %v1876
        %v1912 = vtanh.pop %v1878
        %v1913 = vtanh.pop %v1880
        %v1914 = vmul.f32 %v1882, 1.442695
        %v1915 = vpow.pop %v1914
        %v1916 = vmul.f32 %v1883, 1.442695
        %v1917 = vpow.pop %v1916
        %v1918 = vmul.f32 %v1884, 1.442695
        %v1919 = vpow.pop %v1918
        %v1920 = vmul.f32 %v1885, 1.442695
        %v1921 = vpow.pop %v1920
        %v1922 = vmul.f32 %v1886, 1.442695
        %v1923 = vpow.pop %v1922
        %v1924 = vmul.f32 %v1887, 1.442695
        %v1925 = vpow.pop %v1924
        %v1926 = vmul.f32 %v1888, 1.442695
        %v1927 = vpow.pop %v1926
        %v1928 = vmul.f32 %v1889, 1.442695
        %v1929 = vpow.pop %v1928
        %v1930 = vmul.f32 %v1890, 1.442695
        %v1931 = vpow.pop %v1930
        %v1932 = vmul.f32 %v1891, 1.442695
        %v1933 = vpow.pop %v1932
        %v1934 = vmul.f32 %v1892, 1.442695
        %v1935 = vpow.pop %v1934
        %v1936 = vmul.f32 %v1893, 1.442695
        %v1937 = vpow.pop %v1936
        %v1938 = vmul.f32 %v1894, 1.442695
        %v1939 = vpow.pop %v1938
        %v1940 = vmul.f32 %v1895, 1.442695
        %v1941 = vpow.pop %v1940
        %v1942 = vmul.f32 %v1896, 1.442695
        %v1943 = vpow.pop %v1942
        %v1944 = vmul.f32 %v1897, 1.442695
        %v1945 = vpow.pop %v1944
        %v1946 = vmul.f32 %v1898, 1.442695
        %v1947 = vpow.pop %v1946
        %v1948 = vmul.f32 %v1899, 1.442695
        %v1949 = vpow.pop %v1948
        %v1950 = vmul.f32 %v1900, 1.442695
        %v1951 = vpow.pop %v1950
        %v1952 = vmul.f32 %v1901, 1.442695
        %v1953 = vpow.pop %v1952
        %v1954 = vmul.f32 %v1902, 1.442695
        %v1955 = vpow.pop %v1954
        %v1956 = vmul.f32 %v1903, 1.442695
        %v1957 = vpow.pop %v1956
        %v1958 = vmul.f32 %v1904, 1.442695
        %v1959 = vpow.pop %v1958
        %v1960 = vmul.f32 %v1905, 1.442695
        %v1961 = vpow.pop %v1960
        %v1962 = vmul.f32 %v1906, 1.442695
        %v1963 = vpow.pop %v1962
        %v1964 = vmul.f32 %v1907, 1.442695
        %v1965 = vpow.pop %v1964
        %v1966 = vmul.f32 %v1908, 1.442695
        %v1967 = vpow.pop %v1966
        %v1968 = vmul.f32 %v1909, 1.442695
        %v1969 = vpow.pop %v1968
        %v1970 = vmul.f32 %v1910, 1.442695
        %v1971 = vpow.pop %v1970
        %v1972 = vmul.f32 %v1911, 1.442695
        %v1973 = vpow.pop %v1972
        %v1974 = vmul.f32 %v1912, 1.442695
        %v1975 = vpow.pop %v1974
        %v1976 = vmul.f32 %v1913, 1.442695
        %v1977 = vpow.pop %v1976
        %v1978 = vadd.f32 %v1915, %v1917
        %1979 = vadd.xlane.f32.xlu0 %v1978
        %v1980 = vpop.xlane.xlu0 %1979
        %v1981 = vadd.f32 %v1919, %v1921
        %1982 = vadd.xlane.f32.xlu0 %v1981
        %v1983 = vpop.xlane.xlu0 %1982
        %v1984 = vadd.f32 %v1923, %v1925
        %1985 = vadd.xlane.f32.xlu0 %v1984
        %v1986 = vpop.xlane.xlu0 %1985
        %v1987 = vadd.f32 %v1927, %v1929
        %1988 = vadd.xlane.f32.xlu0 %v1987
        %v1989 = vpop.xlane.xlu0 %1988
        %v1990 = vadd.f32 %v1931, %v1933
        %1991 = vadd.xlane.f32.xlu0 %v1990
        %v1992 = vpop.xlane.xlu0 %1991
        %v1993 = vadd.f32 %v1935, %v1937
        %1994 = vadd.xlane.f32.xlu0 %v1993
        %v1995 = vpop.xlane.xlu0 %1994
        %v1996 = vadd.f32 %v1939, %v1941
        %1997 = vadd.xlane.f32.xlu0 %v1996
        %v1998 = vpop.xlane.xlu0 %1997
        %v1999 = vadd.f32 %v1943, %v1945
        %2000 = vadd.xlane.f32.xlu0 %v1999
        %v2001 = vpop.xlane.xlu0 %2000
        %v2002 = vadd.f32 %v1947, %v1949
        %2003 = vadd.xlane.f32.xlu0 %v2002
        %v2004 = vpop.xlane.xlu0 %2003
        %v2005 = vadd.f32 %v1951, %v1953
        %2006 = vadd.xlane.f32.xlu0 %v2005
        %v2007 = vpop.xlane.xlu0 %2006
        %v2008 = vadd.f32 %v1955, %v1957
        %2009 = vadd.xlane.f32.xlu0 %v2008
        %v2010 = vpop.xlane.xlu0 %2009
        %v2011 = vadd.f32 %v1959, %v1961
        %2012 = vadd.xlane.f32.xlu0 %v2011
        %v2013 = vpop.xlane.xlu0 %2012
        %v2014 = vadd.f32 %v1963, %v1965
        %2015 = vadd.xlane.f32.xlu0 %v2014
        %v2016 = vpop.xlane.xlu0 %2015
        %v2017 = vadd.f32 %v1967, %v1969
        %2018 = vadd.xlane.f32.xlu0 %v2017
        %v2019 = vpop.xlane.xlu0 %2018
        %v2020 = vadd.f32 %v1971, %v1973
        %2021 = vadd.xlane.f32.xlu0 %v2020
        %v2022 = vpop.xlane.xlu0 %2021
        %v2023 = vadd.f32 %v1975, %v1977
        %2024 = vadd.xlane.f32.xlu0 %v2023
        %v2025 = vpop.xlane.xlu0 %2024
        %vm2026 = vcmp.ne.f32.partialorder %v589, 0.0
        %vm2027 = vcmp.ne.f32.partialorder %v590, 0.0
        %vm2028 = vcmp.ne.f32.partialorder %v591, 0.0
        %vm2029 = vcmp.ne.f32.partialorder %v592, 0.0
        %vm2030 = vcmp.ne.f32.partialorder %v593, 0.0
        %vm2031 = vcmp.ne.f32.partialorder %v594, 0.0
        %vm2032 = vcmp.ne.f32.partialorder %v595, 0.0
        %vm2033 = vcmp.ne.f32.partialorder %v596, 0.0
        %vm2034 = vcmp.ne.f32.partialorder %v597, 0.0
        %vm2035 = vcmp.ne.f32.partialorder %v598, 0.0
        %vm2036 = vcmp.ne.f32.partialorder %v599, 0.0
        %vm2037 = vcmp.ne.f32.partialorder %v600, 0.0
        %vm2038 = vcmp.ne.f32.partialorder %v601, 0.0
        %vm2039 = vcmp.ne.f32.partialorder %v602, 0.0
        %vm2040 = vcmp.ne.f32.partialorder %v603, 0.0
        %vm2041 = vcmp.ne.f32.partialorder %v604, 0.0
        %vm2042 = vcmp.ne.f32.partialorder %v605, 0.0
        %vm2043 = vcmp.ne.f32.partialorder %v606, 0.0
        %vm2044 = vcmp.ne.f32.partialorder %v607, 0.0
        %vm2045 = vcmp.ne.f32.partialorder %v608, 0.0
        %vm2046 = vcmp.ne.f32.partialorder %v609, 0.0
        %vm2047 = vcmp.ne.f32.partialorder %v610, 0.0
        %vm2048 = vcmp.ne.f32.partialorder %v611, 0.0
        %vm2049 = vcmp.ne.f32.partialorder %v612, 0.0
        %vm2050 = vcmp.ne.f32.partialorder %v613, 0.0
        %vm2051 = vcmp.ne.f32.partialorder %v614, 0.0
        %vm2052 = vcmp.ne.f32.partialorder %v615, 0.0
        %vm2053 = vcmp.ne.f32.partialorder %v616, 0.0
        %vm2054 = vcmp.ne.f32.partialorder %v617, 0.0
        %vm2055 = vcmp.ne.f32.partialorder %v618, 0.0
        %vm2056 = vcmp.ne.f32.partialorder %v619, 0.0
        %vm2057 = vcmp.ne.f32.partialorder %v620, 0.0
        %v2058 = vsel %vm2026, 1, 0
        %v2059 = vsel %vm2027, 1, 0
        %v2060 = vsel %vm2028, 1, 0
        %v2061 = vsel %vm2029, 1, 0
        %v2062 = vsel %vm2030, 1, 0
        %v2063 = vsel %vm2031, 1, 0
        %v2064 = vsel %vm2032, 1, 0
        %v2065 = vsel %vm2033, 1, 0
        %v2066 = vsel %vm2034, 1, 0
        %v2067 = vsel %vm2035, 1, 0
        %v2068 = vsel %vm2036, 1, 0
        %v2069 = vsel %vm2037, 1, 0
        %v2070 = vsel %vm2038, 1, 0
        %v2071 = vsel %vm2039, 1, 0
        %v2072 = vsel %vm2040, 1, 0
        %v2073 = vsel %vm2041, 1, 0
        %v2074 = vsel %vm2042, 1, 0
        %v2075 = vsel %vm2043, 1, 0
        %v2076 = vsel %vm2044, 1, 0
        %v2077 = vsel %vm2045, 1, 0
        %v2078 = vsel %vm2046, 1, 0
        %v2079 = vsel %vm2047, 1, 0
        %v2080 = vsel %vm2048, 1, 0
        %v2081 = vsel %vm2049, 1, 0
        %v2082 = vsel %vm2050, 1, 0
        %v2083 = vsel %vm2051, 1, 0
        %v2084 = vsel %vm2052, 1, 0
        %v2085 = vsel %vm2053, 1, 0
        %v2086 = vsel %vm2054, 1, 0
        %v2087 = vsel %vm2055, 1, 0
        %v2088 = vsel %vm2056, 1, 0
        %v2089 = vsel %vm2057, 1, 0
        %v2090 = vcvt.s32.f32 %v2058
        %v2091 = vcvt.s32.f32 %v2059
        %v2092 = vcvt.s32.f32 %v2060
        %v2093 = vcvt.s32.f32 %v2061
        %v2094 = vcvt.s32.f32 %v2062
        %v2095 = vcvt.s32.f32 %v2063
        %v2096 = vcvt.s32.f32 %v2064
        %v2097 = vcvt.s32.f32 %v2065
        %v2098 = vcvt.s32.f32 %v2066
        %v2099 = vcvt.s32.f32 %v2067
        %v2100 = vcvt.s32.f32 %v2068
        %v2101 = vcvt.s32.f32 %v2069
        %v2102 = vcvt.s32.f32 %v2070
        %v2103 = vcvt.s32.f32 %v2071
        %v2104 = vcvt.s32.f32 %v2072
        %v2105 = vcvt.s32.f32 %v2073
        %v2106 = vcvt.s32.f32 %v2074
        %v2107 = vcvt.s32.f32 %v2075
        %v2108 = vcvt.s32.f32 %v2076
        %v2109 = vcvt.s32.f32 %v2077
        %v2110 = vcvt.s32.f32 %v2078
        %v2111 = vcvt.s32.f32 %v2079
        %v2112 = vcvt.s32.f32 %v2080
        %v2113 = vcvt.s32.f32 %v2081
        %v2114 = vcvt.s32.f32 %v2082
        %v2115 = vcvt.s32.f32 %v2083
        %v2116 = vcvt.s32.f32 %v2084
        %v2117 = vcvt.s32.f32 %v2085
        %v2118 = vcvt.s32.f32 %v2086
        %v2119 = vcvt.s32.f32 %v2087
        %v2120 = vcvt.s32.f32 %v2088
        %v2121 = vcvt.s32.f32 %v2089
        %v2122 = vadd.f32 %v2090, %v2091
        %2123 = vadd.xlane.f32.xlu0 %v2122
        %v2124 = vpop.xlane.xlu0 %2123
        %v2125 = vadd.f32 %v2092, %v2093
        %2126 = vadd.xlane.f32.xlu0 %v2125
        %v2127 = vpop.xlane.xlu0 %2126
        %v2128 = vadd.f32 %v2094, %v2095
        %2129 = vadd.xlane.f32.xlu0 %v2128
        %v2130 = vpop.xlane.xlu0 %2129
        %v2131 = vadd.f32 %v2096, %v2097
        %2132 = vadd.xlane.f32.xlu0 %v2131
        %v2133 = vpop.xlane.xlu0 %2132
        %v2134 = vadd.f32 %v2098, %v2099
        %2135 = vadd.xlane.f32.xlu0 %v2134
        %v2136 = vpop.xlane.xlu0 %2135
        %v2137 = vadd.f32 %v2100, %v2101
        %2138 = vadd.xlane.f32.xlu0 %v2137
        %v2139 = vpop.xlane.xlu0 %2138
        %v2140 = vadd.f32 %v2102, %v2103
        %2141 = vadd.xlane.f32.xlu0 %v2140
        %v2142 = vpop.xlane.xlu0 %2141
        %v2143 = vadd.f32 %v2104, %v2105
        %2144 = vadd.xlane.f32.xlu0 %v2143
        %v2145 = vpop.xlane.xlu0 %2144
        %v2146 = vadd.f32 %v2106, %v2107
        %2147 = vadd.xlane.f32.xlu0 %v2146
        %v2148 = vpop.xlane.xlu0 %2147
        %v2149 = vadd.f32 %v2108, %v2109
        %2150 = vadd.xlane.f32.xlu0 %v2149
        %v2151 = vpop.xlane.xlu0 %2150
        %v2152 = vadd.f32 %v2110, %v2111
        %2153 = vadd.xlane.f32.xlu0 %v2152
        %v2154 = vpop.xlane.xlu0 %2153
        %v2155 = vadd.f32 %v2112, %v2113
        %2156 = vadd.xlane.f32.xlu0 %v2155
        %v2157 = vpop.xlane.xlu0 %2156
        %v2158 = vadd.f32 %v2114, %v2115
        %2159 = vadd.xlane.f32.xlu0 %v2158
        %v2160 = vpop.xlane.xlu0 %2159
        %v2161 = vadd.f32 %v2116, %v2117
        %2162 = vadd.xlane.f32.xlu0 %v2161
        %v2163 = vpop.xlane.xlu0 %2162
        %v2164 = vadd.f32 %v2118, %v2119
        %2165 = vadd.xlane.f32.xlu0 %v2164
        %v2166 = vpop.xlane.xlu0 %2165
        %v2167 = vadd.f32 %v2120, %v2121
        %2168 = vadd.xlane.f32.xlu0 %v2167
        %v2169 = vpop.xlane.xlu0 %2168
        %v2170 = vrcp.pop %v1980
        %v2171 = vrcp.pop %v1983
        %v2172 = vrcp.pop %v1986
        %v2173 = vrcp.pop %v1989
        %v2174 = vrcp.pop %v1992
        %v2175 = vrcp.pop %v1995
        %v2176 = vrcp.pop %v1998
        %v2177 = vrcp.pop %v2001
        %v2178 = vrcp.pop %v2004
        %v2179 = vrcp.pop %v2007
        %v2180 = vrcp.pop %v2010
        %v2181 = vrcp.pop %v2013
        %v2182 = vrcp.pop %v2016
        %v2183 = vrcp.pop %v2019
        %v2184 = vrcp.pop %v2022
        %v2185 = vrcp.pop %v2025
        %v2186 = vmul.f32 %v2124, %v2170
        %v2187 = vmul.f32 %v2127, %v2171
        %v2188 = vmul.f32 %v2130, %v2172
        %v2189 = vmul.f32 %v2133, %v2173
        %v2190 = vmul.f32 %v2136, %v2174
        %v2191 = vmul.f32 %v2139, %v2175
        %v2192 = vmul.f32 %v2142, %v2176
        %v2193 = vmul.f32 %v2145, %v2177
        %v2194 = vmul.f32 %v2148, %v2178
        %v2195 = vmul.f32 %v2151, %v2179
        %v2196 = vmul.f32 %v2154, %v2180
        %v2197 = vmul.f32 %v2157, %v2181
        %v2198 = vmul.f32 %v2160, %v2182
        %v2199 = vmul.f32 %v2163, %v2183
        %v2200 = vmul.f32 %v2166, %v2184
        %v2201 = vmul.f32 %v2169, %v2185
        %v2202 = vmul.f32 %v1915, %v2186
        %v2203 = vmul.f32 %v1917, %v2186
        %v2204 = vmul.f32 %v1919, %v2187
        %v2205 = vmul.f32 %v1921, %v2187
        %v2206 = vmul.f32 %v1923, %v2188
        %v2207 = vmul.f32 %v1925, %v2188
        %v2208 = vmul.f32 %v1927, %v2189
        %v2209 = vmul.f32 %v1929, %v2189
        %v2210 = vmul.f32 %v1931, %v2190
        %v2211 = vmul.f32 %v1933, %v2190
        %v2212 = vmul.f32 %v1935, %v2191
        %v2213 = vmul.f32 %v1937, %v2191
        %v2214 = vmul.f32 %v1939, %v2192
        %v2215 = vmul.f32 %v1941, %v2192
        %v2216 = vmul.f32 %v1943, %v2193
        %v2217 = vmul.f32 %v1945, %v2193
        %v2218 = vmul.f32 %v1947, %v2194
        %v2219 = vmul.f32 %v1949, %v2194
        %v2220 = vmul.f32 %v1951, %v2195
        %v2221 = vmul.f32 %v1953, %v2195
        %v2222 = vmul.f32 %v1955, %v2196
        %v2223 = vmul.f32 %v1957, %v2196
        %v2224 = vmul.f32 %v1959, %v2197
        %v2225 = vmul.f32 %v1961, %v2197
        %v2226 = vmul.f32 %v1963, %v2198
        %v2227 = vmul.f32 %v1965, %v2198
        %v2228 = vmul.f32 %v1967, %v2199
        %v2229 = vmul.f32 %v1969, %v2199
        %v2230 = vmul.f32 %v1971, %v2200
        %v2231 = vmul.f32 %v1973, %v2200
        %v2232 = vmul.f32 %v1975, %v2201
        %v2233 = vmul.f32 %v1977, %v2201
        %2234 = vst [vmem:[%s577] sm:$0xff] %v2202
        %2235 = vst [vmem:[%s577 + $0x8] sm:$0xff] %v2203
        %2236 = vst [vmem:[%s577 + $0x10] sm:$0xff] %v2204
        %2237 = vst [vmem:[%s577 + $0x18] sm:$0xff] %v2205
        %2238 = vst [vmem:[%s577 + $0x20] sm:$0xff] %v2206
        %2239 = vst [vmem:[%s577 + $0x28] sm:$0xff] %v2207
        %2240 = vst [vmem:[%s577 + $0x30] sm:$0xff] %v2208
        %2241 = vst [vmem:[%s577 + $0x38] sm:$0xff] %v2209
        %2242 = vst [vmem:[%s577 + $0x40] sm:$0xff] %v2210
        %2243 = vst [vmem:[%s577 + $0x48] sm:$0xff] %v2211
        %2244 = vst [vmem:[%s577 + $0x50] sm:$0xff] %v2212
        %2245 = vst [vmem:[%s577 + $0x58] sm:$0xff] %v2213
        %2246 = vst [vmem:[%s577 + $0x60] sm:$0xff] %v2214
        %2247 = vst [vmem:[%s577 + $0x68] sm:$0xff] %v2215
        %2248 = vst [vmem:[%s577 + $0x70] sm:$0xff] %v2216
        %2249 = vst [vmem:[%s577 + $0x78] sm:$0xff] %v2217
        %2250 = vst [vmem:[%s577 + $0x80] sm:$0xff] %v2218
        %2251 = vst [vmem:[%s577 + $0x88] sm:$0xff] %v2219
        %2252 = vst [vmem:[%s577 + $0x90] sm:$0xff] %v2220
        %2253 = vst [vmem:[%s577 + $0x98] sm:$0xff] %v2221
        %2254 = vst [vmem:[%s577 + $0xa0] sm:$0xff] %v2222
        %2255 = vst [vmem:[%s577 + $0xa8] sm:$0xff] %v2223
        %2256 = vst [vmem:[%s577 + $0xb0] sm:$0xff] %v2224
        %2257 = vst [vmem:[%s577 + $0xb8] sm:$0xff] %v2225
        %2258 = vst [vmem:[%s577 + $0xc0] sm:$0xff] %v2226
        %2259 = vst [vmem:[%s577 + $0xc8] sm:$0xff] %v2227
        %2260 = vst [vmem:[%s577 + $0xd0] sm:$0xff] %v2228
        %2261 = vst [vmem:[%s577 + $0xd8] sm:$0xff] %v2229
        %2262 = vst [vmem:[%s577 + $0xe0] sm:$0xff] %v2230
        %2263 = vst [vmem:[%s577 + $0xe8] sm:$0xff] %v2231
        %2264 = vst [vmem:[%s577 + $0xf0] sm:$0xff] %v2232
        %2265 = vst [vmem:[%s577 + $0xf8] sm:$0xff] %v2233
        %s2266 = sand.u32 %s324, 1
        %s2267 = scalar_lea.sflag [#allocation4], %s2266
        %s2268 = sand.u32 %s324, 1
        %s2269 = smul.addr %s2268, 256
        %s2270 = scalar_lea.vmem [#allocation14], %s2269
        %s2271 = sand.u32 %s350, 1
        %s2272 = scalar_lea.sflag [#allocation16], %s2271
        %s2273 = sand.u32 %s350, 1
        %s2274 = smul.addr %s2273, 128
        %s2275 = scalar_lea.vmem [#allocation15], %s2274
        // Predicated region
        $region101: #{tpu_custom_call.1} parent=71 // pred_check
          %p2276 = pneg %p334
        $region102: #{tpu_custom_call.1} parent=71 // pred_check_branch
          %2278 = sbr.rel (%p2276) target = $region104
        $region103: #{tpu_custom_call.1} parent=71 // pred_region
          %s2279 = smul.u32 16, %s38
          %s2281 = ssub.s32 4096, 4096
          %2282 = vsyncadd %s2267, %s2281
          %s2283 = smul.addr %s2279, 2
          %s2284 = smul.addr %s2283, 128
          %s2285 = scalar_lea.hbm %s13, %s2284
          %s2286 = sshll.u32 %s2270, 4
          %s2287 = int_to_ptr.vmem [resolvable:$true] %s2286
          %2292 = dma.vmem_to_hbm [thread:$0]  %s2287, 4096, %s2285, %s2267, 256, 256, 16
        $region104: #{tpu_custom_call.1} parent=71 // pred_fallthru
          _
        // Predicated region
        $region105: #{tpu_custom_call.1} parent=71 // pred_check
          %p2293 = pneg %p360
        $region106: #{tpu_custom_call.1} parent=71 // pred_check_branch
          %2295 = sbr.rel (%p2293) target = $region108
        $region107: #{tpu_custom_call.1} parent=71 // pred_region
          %s2296 = smul.u32 16, %s38
          %s2298 = ssub.s32 2048, 2048
          %2299 = vsyncadd %s2272, %s2298
          %s2300 = smul.addr %s2296, 128
          %s2301 = scalar_lea.hbm %s14, %s2300
          %s2302 = sshll.u32 %s2275, 4
          %s2303 = int_to_ptr.vmem [resolvable:$true] %s2302
          %2308 = dma.vmem_to_hbm [thread:$0]  %s2303, 2048, %s2301, %s2272, 128, 128, 8
        $region108: #{tpu_custom_call.1} parent=71 // pred_fallthru
          _
      $region72: #{tpu_custom_call.1} parent=5 // pred_fallthru
        _
      %p2309 = scmp.le.s32.totalorder 2, %s33
      // Predicated region
      $region109: #{tpu_custom_call.1} parent=5 // pred_check
        %p2310 = pneg %p2309
      $region110: #{tpu_custom_call.1} parent=5 // pred_check_branch
        %2312 = sbr.rel (%p2310) target = $region112
      $region111: #{tpu_custom_call.1} parent=5 // pred_region
        %s2313 = ssub.s32 %s33, 2
        // Predicated region
        $region113: #{tpu_custom_call.1} parent=111 // pred_check
          %p2314 = pneg %p340
        $region114: #{tpu_custom_call.1} parent=111 // pred_check_branch
          %2316 = sbr.rel (%p2314) target = $region116
        $region115: #{tpu_custom_call.1} parent=111 // pred_region
          %s2317 = sand.u32 %s325, 1
          %s2318 = scalar_lea.sflag [#allocation4], %s2317
          %s2319 = sand.u32 %s325, 1
          %s2320 = smul.addr %s2319, 256
          %s2321 = scalar_lea.vmem [#allocation14], %s2320
          %2322 = dma.done %s2318, 4096
        $region116: #{tpu_custom_call.1} parent=111 // pred_fallthru
          _
        // Predicated region
        $region117: #{tpu_custom_call.1} parent=111 // pred_check
          %p2323 = pneg %p366
        $region118: #{tpu_custom_call.1} parent=111 // pred_check_branch
          %2325 = sbr.rel (%p2323) target = $region120
        $region119: #{tpu_custom_call.1} parent=111 // pred_region
          %s2326 = sand.u32 %s351, 1
          %s2327 = scalar_lea.sflag [#allocation16], %s2326
          %s2328 = sand.u32 %s351, 1
          %s2329 = smul.addr %s2328, 128
          %s2330 = scalar_lea.vmem [#allocation15], %s2329
          %2331 = dma.done %s2327, 2048
        $region120: #{tpu_custom_call.1} parent=111 // pred_fallthru
          _
      $region112: #{tpu_custom_call.1} parent=5 // pred_fallthru
        _
    $region6: #{tpu_custom_call.1} parent=1 // loop_footer
      %s37 = sadd.s32 1, %s33
    $region7: #{tpu_custom_call.1} parent=1 // loop_footer_branch
      %32 = sbr.rel target = $region3
    $region8: #{tpu_custom_call.1} parent=1 // loop_exit
      _
    %2332 = vsyncpa [#allocation3], 1
    %s2333 = scalar_lea.sflag [#allocation3], 1
    %2334 = vsyncpa %s2333, 1
    %2335 = vsyncpa [#allocation6], 1
    %2336 = vsyncpa [#allocation9], 1
    %2337 = vsyncpa [#allocation12], 1
    %2338 = vsyncpa [#allocation4], 1
    %s2339 = scalar_lea.sflag [#allocation4], 1
    %2340 = vsyncpa %s2339, 1
    %2341 = vsyncpa [#allocation16], 1
    %s2342 = scalar_lea.sflag [#allocation16], 1
    %2343 = vsyncpa %s2342, 1

</llo_original>
